<compile_context>
chip_gen: v6e
topology: v6e:2x2x1
jax: 0.10.0
libtpu: 0.0.40
codegen_flags: <defaults>
</compile_context>

<pallas_src>
import functools

import jax
import jax.numpy as jnp
from jax.experimental import pallas as pl
from jax.experimental.pallas import tpu as pltpu


def _mosaic_params(dims):
    """dimension_semantics compiler params, tolerant of older pltpu APIs."""
    cls = getattr(pltpu, "CompilerParams", None) or getattr(pltpu, "TPUCompilerParams", None)
    if cls is None:
        return None
    try:
        return cls(dimension_semantics=dims)
    except TypeError:
        return None


# ----------------------------- Pallas kernels ------------------------------

def _resblock_kernel(xp_ref, w1_ref, b1_ref, w2_ref, b2_ref, s_ref, t_ref, o_ref,
                     *, cin, lout1, lout2):
    """Fused ResidualBlock (eval mode); one batch element per grid step.

    xp_ref : (1, Lp2, 2*cin)  pair-packed, zero-padded (8 left / 8 right) input
    w1_ref : (3, 2*cin, cout) conv1 weights with BN1 folded, taps packed 2-by-2
    b1_ref : (1, cout)        conv1 bias with BN1 folded
    w2_ref : (6, cout, cout)  conv2 weights with BN2 folded
    b2_ref : (1, cout)        conv2 bias with BN2 folded
    s_ref  : (1, cout)        trailing c_norm scale (ones for last block)
    t_ref  : (1, cout)        trailing c_norm shift (zeros for last block)
    o_ref  : (1, lout2, cout)
    """
    xv = xp_ref[0]                                       # (Lp2, 2*cin)

    # conv1 (kernel 6, stride 2) + bn1 + relu == 3 shifted matmuls on paired rows
    acc = jnp.dot(xv[0:lout1, :], w1_ref[0], preferred_element_type=jnp.float32)
    acc += jnp.dot(xv[1:1 + lout1, :], w1_ref[1], preferred_element_type=jnp.float32)
    acc += jnp.dot(xv[2:2 + lout1, :], w1_ref[2], preferred_element_type=jnp.float32)
    h = jnp.maximum(acc + b1_ref[...], 0.0)              # (lout1, cout)

    # conv2 (kernel 6, stride 1) + bn2 == 6 shifted matmuls
    acc2 = jnp.dot(h[0:lout2, :], w2_ref[0], preferred_element_type=jnp.float32)
    for j in range(1, 6):
        acc2 += jnp.dot(h[j:j + lout2, :], w2_ref[j], preferred_element_type=jnp.float32)

    # identity branch: downsample1(m1(x)) + downsample1(m2(x)) with frozen
    # all-ones 1x1 stride-2 weights == per-position scalar sum_cin(x[2t-1]+x[2t])
    # broadcast over output channels.  x[i] == xp0[i+8]; pair p of the packed
    # input holds (xp0[2p] channels | xp0[2p+1] channels).
    ident = (jnp.sum(xv[3:3 + lout2, cin:2 * cin], axis=-1, keepdims=True)
             + jnp.sum(xv[4:4 + lout2, 0:cin], axis=-1, keepdims=True))

    y = jnp.maximum(acc2 + b2_ref[...] + ident, 0.0)     # residual add + relu
    o_ref[0] = y * s_ref[...] + t_ref[...]               # trailing c_norm affine


def _weather_mlp_kernel(*refs, n_layers):
    """Entire weather MLP (Linear+ReLU [+LayerNorm] per layer) in one kernel."""
    z_ref, o_ref = refs[0], refs[-1]
    prefs = refs[1:-1]
    z = z_ref[...]
    k = 0
    for i in range(n_layers):
        w = prefs[k][...]
        b = prefs[k + 1][...]
        k += 2
        z = jnp.maximum(jnp.dot(z, w, preferred_element_type=jnp.float32) + b, 0.0)
        if i < n_layers - 1:
            g = prefs[k][...]
            be = prefs[k + 1][...]
            k += 2
            mu = jnp.mean(z, axis=-1, keepdims=True)
            var = jnp.mean((z - mu) ** 2, axis=-1, keepdims=True)
            z = (z - mu) * jax.lax.rsqrt(var + 1e-5) * g + be
    o_ref[...] = z


def _head_kernel(h_ref, g_ref, be_ref, w1_ref, b1_ref, w2_ref, b2_ref, o_ref):
    """final_norm (LayerNorm) + cl1 + ReLU + classifier + sigmoid, fused."""
    h = h_ref[...]
    mu = jnp.mean(h, axis=-1, keepdims=True)
    var = jnp.mean((h - mu) ** 2, axis=-1, keepdims=True)
    h = (h - mu) * jax.lax.rsqrt(var + 1e-5) * g_ref[...] + be_ref[...]
    h = jnp.maximum(jnp.dot(h, w1_ref[...], preferred_element_type=jnp.float32)
                    + b1_ref[...], 0.0)
    y = jnp.dot(h, w2_ref[...], preferred_element_type=jnp.float32) + b2_ref[...]
    o_ref[...] = 1.0 / (1.0 + jnp.exp(-y))


# ------------------------------- JAX glue -----------------------------------

def bn_eval_affine(bn, eps=1e-5):
    scale = bn["gamma"] * jax.lax.rsqrt(bn["var"] + eps)
    shift = bn["beta"] - bn["mean"] * scale
    return scale, shift


def residual_block(x, bp):
    """Fused ResidualBlock(inC -> outC, kernel=6, stride=2).  x: (B, L, Cin)."""
    B, L, Cin = x.shape
    Cout = bp["W1"].shape[-1]
    Lpad = L + 16                       # ZeroPad2d((8, 8, 0, 0))
    extra = Lpad % 2                    # make length even for pair-packing
    xp = jnp.pad(x, ((0, 0), (8, 8 + extra), (0, 0)))
    Lp2 = (Lpad + extra) // 2
    xpair = xp.reshape(B, Lp2, 2 * Cin)            # contiguous pair-packing
    Lout1 = (Lpad - 6) // 2 + 1
    Lout2 = Lout1 - 5

    return pl.pallas_call(
        functools.partial(_resblock_kernel, cin=Cin, lout1=Lout1, lout2=Lout2),
        out_shape=jax.ShapeDtypeStruct((B, Lout2, Cout), jnp.float32),
        grid=(B,),
        in_specs=[
            pl.BlockSpec((1, Lp2, 2 * Cin), lambda b: (b, 0, 0)),
            pl.BlockSpec((3, 2 * Cin, Cout), lambda b: (0, 0, 0)),
            pl.BlockSpec((1, Cout), lambda b: (0, 0)),
            pl.BlockSpec((6, Cout, Cout), lambda b: (0, 0, 0)),
            pl.BlockSpec((1, Cout), lambda b: (0, 0)),
            pl.BlockSpec((1, Cout), lambda b: (0, 0)),
            pl.BlockSpec((1, Cout), lambda b: (0, 0)),
        ],
        out_specs=pl.BlockSpec((1, Lout2, Cout), lambda b: (b, 0, 0)),
        compiler_params=_mosaic_params(("parallel",)),   # megacore-friendly batch axis
    )(xpair, bp["W1"], bp["b1"], bp["W2"], bp["b2"], bp["sn"], bp["tn"])


def weather_forward(folded, z):
    layers = folded["weather"]
    n = len(layers)
    args = [z]
    for i, lp in enumerate(layers):
        args += [lp["w"], lp["b"]]
        if i < n - 1:
            args += [lp["g"], lp["be"]]
    out_dim = layers[-1]["w"].shape[-1]
    return pl.pallas_call(
        functools.partial(_weather_mlp_kernel, n_layers=n),
        out_shape=jax.ShapeDtypeStruct((z.shape[0], out_dim), jnp.float32),
    )(*args)


def head_forward(folded, h):
    hp = folded["head"]
    out_dim = hp["w2"].shape[-1]
    return pl.pallas_call(
        _head_kernel,
        out_shape=jax.ShapeDtypeStruct((h.shape[0], out_dim), jnp.float32),
    )(h, hp["g"], hp["be"], hp["w1"], hp["b1"], hp["w2"], hp["b2"])


def resnet_forward(folded, genome, weather):
    # genome: (B, gene_length, gene_dim) channels-last == btch['input_genome'].permute
    # TODO(synk): input_dropout / Dropout / d1 are eval-mode identities here.
    x = genome.astype(jnp.float32)
    z = weather.astype(jnp.float32)
    for bp in folded["blocks"]:
        x = residual_block(x, bp)          # ends in relu (+ folded c_norm affine)
    z = weather_forward(folded, z)
    B, Lc, C = x.shape
    x_flat = jnp.transpose(x, (0, 2, 1)).reshape(B, C * Lc)   # NCW channel-major flatten
    h = jnp.concatenate([x_flat, z], axis=1)
    return head_forward(folded, h)


# --------------------- parameter creation & BN folding ----------------------

def _init_conv(key, k, cin, cout):
    kw, kb = jax.random.split(key)
    bound = (cin * k) ** -0.5
    w = jax.random.uniform(kw, (k, cin, cout), jnp.float32, -bound, bound)
    b = jax.random.uniform(kb, (cout,), jnp.float32, -bound, bound)
    return w, b


def _init_linear(key, din, dout):
    kw, kb = jax.random.split(key)
    bound = din ** -0.5
    w = jax.random.uniform(kw, (din, dout), jnp.float32, -bound, bound)
    b = jax.random.uniform(kb, (dout,), jnp.float32, -bound, bound)
    return w, b


def _init_bn(key, c):
    k1, k2, k3, k4 = jax.random.split(key, 4)
    return dict(
        gamma=1.0 + 0.1 * jax.random.normal(k1, (c,), jnp.float32),
        beta=0.1 * jax.random.normal(k2, (c,), jnp.float32),
        mean=0.1 * jax.random.normal(k3, (c,), jnp.float32),
        var=1.0 + 0.5 * jax.random.uniform(k4, (c,), jnp.float32),
    )


def _init_ln(key, c):
    k1, k2 = jax.random.split(key)
    gamma = 1.0 + 0.1 * jax.random.normal(k1, (c,), jnp.float32)
    beta = 0.1 * jax.random.normal(k2, (c,), jnp.float32)
    return gamma, beta


def init_params(key, gene_dim, gene_length, conv_filters, linear_units,
                n_units_output, out_dim):
    params = {"conv_blocks": [], "conv_norms": [], "linear": [], "linear_norms": []}
    cin = gene_dim
    Lc = gene_length
    for i, cout in enumerate(conv_filters):
        key, k1, k2, k3, k4 = jax.random.split(key, 5)
        w1, b1 = _init_conv(k1, 6, cin, cout)
        w2, b2 = _init_conv(k2, 6, cout, cout)
        params["conv_blocks"].append(
            dict(w1=w1, b1=b1, w2=w2, b2=b2, bn1=_init_bn(k3, cout), bn2=_init_bn(k4, cout)))
        if i < len(conv_filters) - 1:
            key, k5 = jax.random.split(key)
            params["conv_norms"].append(_init_bn(k5, cout))
        cin = cout
        Lc = Lc // 2 + 1                                  # ResidualBlock output length
    conv_out_size = conv_filters[-1] * Lc

    din = 2
    for i, dout in enumerate(linear_units):
        key, k1 = jax.random.split(key)
        params["linear"].append(_init_linear(k1, din, dout))
        if i < len(linear_units) - 1:
            key, k2 = jax.random.split(key)
            params["linear_norms"].append(_init_ln(k2, dout))
        din = dout
    weather_out_size = linear_units[-1]

    total = conv_out_size + weather_out_size
    key, k1, k2, k3 = jax.random.split(key, 4)
    g, b = _init_ln(k1, total)
    params["final_norm"] = dict(gamma=g, beta=b)
    params["cl1"] = _init_linear(k2, total, n_units_output)
    params["classifier"] = _init_linear(k3, n_units_output, out_dim)
    return params


def fold_params(params):
    """Fold eval-mode BatchNorms into conv weights and pre-pack kernel inputs."""
    folded = {"blocks": [], "weather": [], "head": None}
    blocks = params["conv_blocks"]
    for i, p in enumerate(blocks):
        cin = p["w1"].shape[1]
        cout = p["w1"].shape[-1]
        s1, t1 = bn_eval_affine(p["bn1"])
        s2, t2 = bn_eval_affine(p["bn2"])
        w1 = p["w1"] * s1                      # (6, cin, cout), BN1 folded
        b1 = p["b1"] * s1 + t1
        w2 = p["w2"] * s2                      # (6, cout, cout), BN2 folded
        b2 = p["b2"] * s2 + t2
        if i < len(blocks) - 1:                # trailing c_norm{i} (eval BN affine)
            sn, tn = bn_eval_affine(params["conv_norms"][i])
        else:
            sn = jnp.ones((cout,), jnp.float32)
            tn = jnp.zeros((cout,), jnp.float32)
        folded["blocks"].append(dict(
            W1=w1.reshape(3, 2 * cin, cout),   # taps packed 2-by-2 to match pair-packed input
            b1=b1.reshape(1, cout),
            W2=w2,
            b2=b2.reshape(1, cout),
            sn=sn.reshape(1, cout),
            tn=tn.reshape(1, cout),
        ))

    lins = params["linear"]
    for i, (w, b) in enumerate(lins):
        entry = dict(w=w, b=b.reshape(1, -1))
        if i < len(lins) - 1:
            g, be = params["linear_norms"][i]
            entry["g"] = g.reshape(1, -1)
            entry["be"] = be.reshape(1, -1)
        folded["weather"].append(entry)

    folded["head"] = dict(
        g=params["final_norm"]["gamma"].reshape(1, -1),
        be=params["final_norm"]["beta"].reshape(1, -1),
        w1=params["cl1"][0], b1=params["cl1"][1].reshape(1, -1),
        w2=params["classifier"][0], b2=params["classifier"][1].reshape(1, -1),
    )
    return folded


# ---------------------------------- main -------------------------------------

if __name__ == "__main__":
    B = 2              # batch_size
    GENE_DIM = 4       # gene_dimension (conv in-channels)
    GENE_LEN = 16      # gene_length
    CONV_FILTERS = [16, 16]     # frozen_trial.suggest_int('n_conv_filters_l{i}')
    LINEAR_UNITS = [16, 16]     # frozen_trial.suggest_int('n_units_l{i}')
    N_UNITS_OUTPUT = 32         # frozen_trial.suggest_int('n_units_output')
    OUT_DIM = 1                 # XE = False

    key = jax.random.PRNGKey(0)
    kp, kg, kw = jax.random.split(key, 3)
    params = init_params(kp, GENE_DIM, GENE_LEN, CONV_FILTERS, LINEAR_UNITS,
                         N_UNITS_OUTPUT, OUT_DIM)
    folded = fold_params(params)

    genome = jax.random.normal(kg, (B, GENE_LEN, GENE_DIM), jnp.float32)
    weather = jax.random.normal(kw, (B, 2), jnp.float32)

    fwd = jax.jit(resnet_forward)
    out = fwd(folded, genome, weather)
    out = jax.block_until_ready(out)
    assert out.shape == (B, OUT_DIM), out.shape
    assert bool(jnp.all((out >= 0.0) & (out <= 1.0)))
    print("KERNEL_OK")
</pallas_src>

<mosaic_0001>
module attributes {stable_mosaic.version = 11 : i64} {
  func.func @_resblock_kernel(%arg0: i32, %arg1: memref<1x16x8xf32, #tpu.memory_space<vmem>>, %arg2: memref<3x8x16xf32, #tpu.memory_space<vmem>>, %arg3: memref<1x16xf32, #tpu.memory_space<vmem>>, %arg4: memref<6x16x16xf32, #tpu.memory_space<vmem>>, %arg5: memref<1x16xf32, #tpu.memory_space<vmem>>, %arg6: memref<1x16xf32, #tpu.memory_space<vmem>>, %arg7: memref<1x16xf32, #tpu.memory_space<vmem>>, %arg8: memref<1x9x16xf32, #tpu.memory_space<vmem>>) attributes {dimension_semantics = [#tpu.dimension_semantics<parallel>], iteration_bounds = array<i64: 2>, scalar_prefetch = 0 : i64, scratch_operands = 0 : i64, tpu.core_type = #tpu.core_type<tc>, window_params = [{transform_indices = @transform_0, window_bounds = array<i64: 1, 16, 8>}, {pipeline_mode = #tpu.pipeline_mode<synchronous>, transform_indices = @transform_1, window_bounds = array<i64: 3, 8, 16>}, {pipeline_mode = #tpu.pipeline_mode<synchronous>, transform_indices = @transform_2, window_bounds = array<i64: 1, 16>}, {pipeline_mode = #tpu.pipeline_mode<synchronous>, transform_indices = @transform_3, window_bounds = array<i64: 6, 16, 16>}, {pipeline_mode = #tpu.pipeline_mode<synchronous>, transform_indices = @transform_4, window_bounds = array<i64: 1, 16>}, {pipeline_mode = #tpu.pipeline_mode<synchronous>, transform_indices = @transform_5, window_bounds = array<i64: 1, 16>}, {pipeline_mode = #tpu.pipeline_mode<synchronous>, transform_indices = @transform_6, window_bounds = array<i64: 1, 16>}, {transform_indices = @transform_7, window_bounds = array<i64: 1, 9, 16>}]} {
    %c0 = arith.constant 0 : index
    %c0_0 = arith.constant 0 : index
    %c0_1 = arith.constant 0 : index
    %0 = vector.load %arg1[%c0, %c0_0, %c0_1] : memref<1x16x8xf32, #tpu.memory_space<vmem>>, vector<1x16x8xf32>
    %1 = vector.shape_cast %0 : vector<1x16x8xf32> to vector<16x8xf32>
    %2 = vector.extract_strided_slice %1 {offsets = [0, 0], sizes = [14, 8], strides = [1, 1]} : vector<16x8xf32> to vector<14x8xf32>
    %c0_2 = arith.constant 0 : index
    %c0_3 = arith.constant 0 : index
    %c0_4 = arith.constant 0 : index
    %3 = vector.load %arg2[%c0_2, %c0_3, %c0_4] : memref<3x8x16xf32, #tpu.memory_space<vmem>>, vector<1x8x16xf32>
    %4 = vector.shape_cast %3 : vector<1x8x16xf32> to vector<8x16xf32>
    %cst = arith.constant dense<0.000000e+00> : vector<14x16xf32>
    %5 = tpu.matmul %2, %4, %cst {dimension_numbers = #tpu.dot_dimension_numbers<[1], [0], [0], [1], [0, 0, 1, 1], [], []>} : vector<14x8xf32>, vector<8x16xf32>, vector<14x16xf32> -> vector<14x16xf32>
    %6 = vector.extract_strided_slice %1 {offsets = [1, 0], sizes = [14, 8], strides = [1, 1]} : vector<16x8xf32> to vector<14x8xf32>
    %c1 = arith.constant 1 : index
    %c0_5 = arith.constant 0 : index
    %c0_6 = arith.constant 0 : index
    %7 = vector.load %arg2[%c1, %c0_5, %c0_6] : memref<3x8x16xf32, #tpu.memory_space<vmem>>, vector<1x8x16xf32>
    %8 = vector.shape_cast %7 : vector<1x8x16xf32> to vector<8x16xf32>
    %cst_7 = arith.constant dense<0.000000e+00> : vector<14x16xf32>
    %9 = tpu.matmul %6, %8, %cst_7 {dimension_numbers = #tpu.dot_dimension_numbers<[1], [0], [0], [1], [0, 0, 1, 1], [], []>} : vector<14x8xf32>, vector<8x16xf32>, vector<14x16xf32> -> vector<14x16xf32>
    %10 = arith.addf %5, %9 : vector<14x16xf32>
    %11 = vector.extract_strided_slice %1 {offsets = [2, 0], sizes = [14, 8], strides = [1, 1]} : vector<16x8xf32> to vector<14x8xf32>
    %c2 = arith.constant 2 : index
    %c0_8 = arith.constant 0 : index
    %c0_9 = arith.constant 0 : index
    %12 = vector.load %arg2[%c2, %c0_8, %c0_9] : memref<3x8x16xf32, #tpu.memory_space<vmem>>, vector<1x8x16xf32>
    %13 = vector.shape_cast %12 : vector<1x8x16xf32> to vector<8x16xf32>
    %cst_10 = arith.constant dense<0.000000e+00> : vector<14x16xf32>
    %14 = tpu.matmul %11, %13, %cst_10 {dimension_numbers = #tpu.dot_dimension_numbers<[1], [0], [0], [1], [0, 0, 1, 1], [], []>} : vector<14x8xf32>, vector<8x16xf32>, vector<14x16xf32> -> vector<14x16xf32>
    %15 = arith.addf %10, %14 : vector<14x16xf32>
    %c0_11 = arith.constant 0 : index
    %c0_12 = arith.constant 0 : index
    %16 = vector.load %arg3[%c0_11, %c0_12] : memref<1x16xf32, #tpu.memory_space<vmem>>, vector<1x16xf32>
    %17 = vector.broadcast %16 : vector<1x16xf32> to vector<14x16xf32>
    %18 = arith.addf %15, %17 : vector<14x16xf32>
    %cst_13 = arith.constant 0.000000e+00 : f32
    %19 = vector.broadcast %cst_13 : f32 to vector<14x16xf32>
    %20 = arith.maximumf %18, %19 : vector<14x16xf32>
    %21 = vector.extract_strided_slice %20 {offsets = [0, 0], sizes = [9, 16], strides = [1, 1]} : vector<14x16xf32> to vector<9x16xf32>
    %c0_14 = arith.constant 0 : index
    %c0_15 = arith.constant 0 : index
    %c0_16 = arith.constant 0 : index
    %22 = vector.load %arg4[%c0_14, %c0_15, %c0_16] : memref<6x16x16xf32, #tpu.memory_space<vmem>>, vector<1x16x16xf32>
    %23 = vector.shape_cast %22 : vector<1x16x16xf32> to vector<16x16xf32>
    %cst_17 = arith.constant dense<0.000000e+00> : vector<9x16xf32>
    %24 = tpu.matmul %21, %23, %cst_17 {dimension_numbers = #tpu.dot_dimension_numbers<[1], [0], [0], [1], [0, 0, 1, 1], [], []>} : vector<9x16xf32>, vector<16x16xf32>, vector<9x16xf32> -> vector<9x16xf32>
    %25 = vector.extract_strided_slice %20 {offsets = [1, 0], sizes = [9, 16], strides = [1, 1]} : vector<14x16xf32> to vector<9x16xf32>
    %c1_18 = arith.constant 1 : index
    %c0_19 = arith.constant 0 : index
    %c0_20 = arith.constant 0 : index
    %26 = vector.load %arg4[%c1_18, %c0_19, %c0_20] : memref<6x16x16xf32, #tpu.memory_space<vmem>>, vector<1x16x16xf32>
    %27 = vector.shape_cast %26 : vector<1x16x16xf32> to vector<16x16xf32>
    %cst_21 = arith.constant dense<0.000000e+00> : vector<9x16xf32>
    %28 = tpu.matmul %25, %27, %cst_21 {dimension_numbers = #tpu.dot_dimension_numbers<[1], [0], [0], [1], [0, 0, 1, 1], [], []>} : vector<9x16xf32>, vector<16x16xf32>, vector<9x16xf32> -> vector<9x16xf32>
    %29 = arith.addf %24, %28 : vector<9x16xf32>
    %30 = vector.extract_strided_slice %20 {offsets = [2, 0], sizes = [9, 16], strides = [1, 1]} : vector<14x16xf32> to vector<9x16xf32>
    %c2_22 = arith.constant 2 : index
    %c0_23 = arith.constant 0 : index
    %c0_24 = arith.constant 0 : index
    %31 = vector.load %arg4[%c2_22, %c0_23, %c0_24] : memref<6x16x16xf32, #tpu.memory_space<vmem>>, vector<1x16x16xf32>
    %32 = vector.shape_cast %31 : vector<1x16x16xf32> to vector<16x16xf32>
    %cst_25 = arith.constant dense<0.000000e+00> : vector<9x16xf32>
    %33 = tpu.matmul %30, %32, %cst_25 {dimension_numbers = #tpu.dot_dimension_numbers<[1], [0], [0], [1], [0, 0, 1, 1], [], []>} : vector<9x16xf32>, vector<16x16xf32>, vector<9x16xf32> -> vector<9x16xf32>
    %34 = arith.addf %29, %33 : vector<9x16xf32>
    %35 = vector.extract_strided_slice %20 {offsets = [3, 0], sizes = [9, 16], strides = [1, 1]} : vector<14x16xf32> to vector<9x16xf32>
    %c3 = arith.constant 3 : index
    %c0_26 = arith.constant 0 : index
    %c0_27 = arith.constant 0 : index
    %36 = vector.load %arg4[%c3, %c0_26, %c0_27] : memref<6x16x16xf32, #tpu.memory_space<vmem>>, vector<1x16x16xf32>
    %37 = vector.shape_cast %36 : vector<1x16x16xf32> to vector<16x16xf32>
    %cst_28 = arith.constant dense<0.000000e+00> : vector<9x16xf32>
    %38 = tpu.matmul %35, %37, %cst_28 {dimension_numbers = #tpu.dot_dimension_numbers<[1], [0], [0], [1], [0, 0, 1, 1], [], []>} : vector<9x16xf32>, vector<16x16xf32>, vector<9x16xf32> -> vector<9x16xf32>
    %39 = arith.addf %34, %38 : vector<9x16xf32>
    %40 = vector.extract_strided_slice %20 {offsets = [4, 0], sizes = [9, 16], strides = [1, 1]} : vector<14x16xf32> to vector<9x16xf32>
    %c4 = arith.constant 4 : index
    %c0_29 = arith.constant 0 : index
    %c0_30 = arith.constant 0 : index
    %41 = vector.load %arg4[%c4, %c0_29, %c0_30] : memref<6x16x16xf32, #tpu.memory_space<vmem>>, vector<1x16x16xf32>
    %42 = vector.shape_cast %41 : vector<1x16x16xf32> to vector<16x16xf32>
    %cst_31 = arith.constant dense<0.000000e+00> : vector<9x16xf32>
    %43 = tpu.matmul %40, %42, %cst_31 {dimension_numbers = #tpu.dot_dimension_numbers<[1], [0], [0], [1], [0, 0, 1, 1], [], []>} : vector<9x16xf32>, vector<16x16xf32>, vector<9x16xf32> -> vector<9x16xf32>
    %44 = arith.addf %39, %43 : vector<9x16xf32>
    %45 = vector.extract_strided_slice %20 {offsets = [5, 0], sizes = [9, 16], strides = [1, 1]} : vector<14x16xf32> to vector<9x16xf32>
    %c5 = arith.constant 5 : index
    %c0_32 = arith.constant 0 : index
    %c0_33 = arith.constant 0 : index
    %46 = vector.load %arg4[%c5, %c0_32, %c0_33] : memref<6x16x16xf32, #tpu.memory_space<vmem>>, vector<1x16x16xf32>
    %47 = vector.shape_cast %46 : vector<1x16x16xf32> to vector<16x16xf32>
    %cst_34 = arith.constant dense<0.000000e+00> : vector<9x16xf32>
    %48 = tpu.matmul %45, %47, %cst_34 {dimension_numbers = #tpu.dot_dimension_numbers<[1], [0], [0], [1], [0, 0, 1, 1], [], []>} : vector<9x16xf32>, vector<16x16xf32>, vector<9x16xf32> -> vector<9x16xf32>
    %49 = arith.addf %44, %48 : vector<9x16xf32>
    %50 = vector.extract_strided_slice %1 {offsets = [3, 4], sizes = [9, 4], strides = [1, 1]} : vector<16x8xf32> to vector<9x4xf32>
    %cst_35 = arith.constant dense<0.000000e+00> : vector<9xf32>
    %51 = vector.multi_reduction <add>, %50, %cst_35 [1] : vector<9x4xf32> to vector<9xf32>
    %52 = vector.shape_cast %51 : vector<9xf32> to vector<9x1xf32>
    %53 = vector.extract_strided_slice %1 {offsets = [4, 0], sizes = [9, 4], strides = [1, 1]} : vector<16x8xf32> to vector<9x4xf32>
    %cst_36 = arith.constant dense<0.000000e+00> : vector<9xf32>
    %54 = vector.multi_reduction <add>, %53, %cst_36 [1] : vector<9x4xf32> to vector<9xf32>
    %55 = vector.shape_cast %54 : vector<9xf32> to vector<9x1xf32>
    %56 = arith.addf %52, %55 : vector<9x1xf32>
    %c0_37 = arith.constant 0 : index
    %c0_38 = arith.constant 0 : index
    %57 = vector.load %arg5[%c0_37, %c0_38] : memref<1x16xf32, #tpu.memory_space<vmem>>, vector<1x16xf32>
    %58 = vector.broadcast %57 : vector<1x16xf32> to vector<9x16xf32>
    %59 = arith.addf %49, %58 : vector<9x16xf32>
    %60 = vector.broadcast %56 : vector<9x1xf32> to vector<9x16xf32>
    %61 = arith.addf %59, %60 : vector<9x16xf32>
    %cst_39 = arith.constant 0.000000e+00 : f32
    %62 = vector.broadcast %cst_39 : f32 to vector<9x16xf32>
    %63 = arith.maximumf %61, %62 : vector<9x16xf32>
    %c0_40 = arith.constant 0 : index
    %c0_41 = arith.constant 0 : index
    %64 = vector.load %arg6[%c0_40, %c0_41] : memref<1x16xf32, #tpu.memory_space<vmem>>, vector<1x16xf32>
    %65 = vector.broadcast %64 : vector<1x16xf32> to vector<9x16xf32>
    %66 = arith.mulf %63, %65 : vector<9x16xf32>
    %c0_42 = arith.constant 0 : index
    %c0_43 = arith.constant 0 : index
    %67 = vector.load %arg7[%c0_42, %c0_43] : memref<1x16xf32, #tpu.memory_space<vmem>>, vector<1x16xf32>
    %68 = vector.broadcast %67 : vector<1x16xf32> to vector<9x16xf32>
    %69 = arith.addf %66, %68 : vector<9x16xf32>
    %c0_44 = arith.constant 0 : index
    %c0_45 = arith.constant 0 : index
    %c0_46 = arith.constant 0 : index
    %70 = vector.load %arg8[%c0_44, %c0_45, %c0_46] : memref<1x9x16xf32, #tpu.memory_space<vmem>>, vector<1x9x16xf32>
    %71 = vector.shape_cast %70 : vector<1x9x16xf32> to vector<9x16xf32>
    %72 = vector.shape_cast %69 : vector<9x16xf32> to vector<1x9x16xf32>
    tpu.vector_store %arg8[%c0_44, %c0_45, %c0_46], %72 {strides = array<i32>} : memref<1x9x16xf32, #tpu.memory_space<vmem>>, vector<1x9x16xf32>,
    return
  }
  func.func @transform_0(%arg0: i32) -> (i32, i32, i32) {
    %c0_i32 = arith.constant 0 : i32
    %c0_i32_0 = arith.constant 0 : i32
    %c0_i32_1 = arith.constant 0 : i32
    return %arg0, %c0_i32, %c0_i32_0 : i32, i32, i32
  }
  func.func @transform_1(%arg0: i32) -> (i32, i32, i32) {
    %c0_i32 = arith.constant 0 : i32
    %c0_i32_0 = arith.constant 0 : i32
    %c0_i32_1 = arith.constant 0 : i32
    %c0_i32_2 = arith.constant 0 : i32
    return %c0_i32, %c0_i32_0, %c0_i32_1 : i32, i32, i32
  }
  func.func @transform_2(%arg0: i32) -> (i32, i32) {
    %c0_i32 = arith.constant 0 : i32
    %c0_i32_0 = arith.constant 0 : i32
    %c0_i32_1 = arith.constant 0 : i32
    return %c0_i32, %c0_i32_0 : i32, i32
  }
  func.func @transform_3(%arg0: i32) -> (i32, i32, i32) {
    %c0_i32 = arith.constant 0 : i32
    %c0_i32_0 = arith.constant 0 : i32
    %c0_i32_1 = arith.constant 0 : i32
    %c0_i32_2 = arith.constant 0 : i32
    return %c0_i32, %c0_i32_0, %c0_i32_1 : i32, i32, i32
  }
  func.func @transform_4(%arg0: i32) -> (i32, i32) {
    %c0_i32 = arith.constant 0 : i32
    %c0_i32_0 = arith.constant 0 : i32
    %c0_i32_1 = arith.constant 0 : i32
    return %c0_i32, %c0_i32_0 : i32, i32
  }
  func.func @transform_5(%arg0: i32) -> (i32, i32) {
    %c0_i32 = arith.constant 0 : i32
    %c0_i32_0 = arith.constant 0 : i32
    %c0_i32_1 = arith.constant 0 : i32
    return %c0_i32, %c0_i32_0 : i32, i32
  }
  func.func @transform_6(%arg0: i32) -> (i32, i32) {
    %c0_i32 = arith.constant 0 : i32
    %c0_i32_0 = arith.constant 0 : i32
    %c0_i32_1 = arith.constant 0 : i32
    return %c0_i32, %c0_i32_0 : i32, i32
  }
  func.func @transform_7(%arg0: i32) -> (i32, i32, i32) {
    %c0_i32 = arith.constant 0 : i32
    %c0_i32_0 = arith.constant 0 : i32
    %c0_i32_1 = arith.constant 0 : i32
    return %arg0, %c0_i32, %c0_i32_0 : i32, i32, i32
  }
}

module attributes {stable_mosaic.version = 11 : i64} {
  func.func @_weather_mlp_kernel(%arg0: memref<2x2xf32, #tpu.memory_space<vmem>>, %arg1: memref<2x16xf32, #tpu.memory_space<vmem>>, %arg2: memref<1x16xf32, #tpu.memory_space<vmem>>, %arg3: memref<1x16xf32, #tpu.memory_space<vmem>>, %arg4: memref<1x16xf32, #tpu.memory_space<vmem>>, %arg5: memref<16x16xf32, #tpu.memory_space<vmem>>, %arg6: memref<1x16xf32, #tpu.memory_space<vmem>>, %arg7: memref<2x16xf32, #tpu.memory_space<vmem>>) attributes {dimension_semantics = [], scalar_prefetch = 0 : i64, scratch_operands = 0 : i64, tpu.core_type = #tpu.core_type<tc>} {
    %c0 = arith.constant 0 : index
    %c0_0 = arith.constant 0 : index
    %0 = vector.load %arg0[%c0, %c0_0] : memref<2x2xf32, #tpu.memory_space<vmem>>, vector<2x2xf32>
    %c0_1 = arith.constant 0 : index
    %c0_2 = arith.constant 0 : index
    %1 = vector.load %arg1[%c0_1, %c0_2] : memref<2x16xf32, #tpu.memory_space<vmem>>, vector<2x16xf32>
    %c0_3 = arith.constant 0 : index
    %c0_4 = arith.constant 0 : index
    %2 = vector.load %arg2[%c0_3, %c0_4] : memref<1x16xf32, #tpu.memory_space<vmem>>, vector<1x16xf32>
    %cst = arith.constant dense<0.000000e+00> : vector<2x16xf32>
    %3 = tpu.matmul %0, %1, %cst {dimension_numbers = #tpu.dot_dimension_numbers<[1], [0], [0], [1], [0, 0, 1, 1], [], []>} : vector<2x2xf32>, vector<2x16xf32>, vector<2x16xf32> -> vector<2x16xf32>
    %4 = vector.broadcast %2 : vector<1x16xf32> to vector<2x16xf32>
    %5 = arith.addf %3, %4 : vector<2x16xf32>
    %cst_5 = arith.constant 0.000000e+00 : f32
    %6 = vector.broadcast %cst_5 : f32 to vector<2x16xf32>
    %7 = arith.maximumf %5, %6 : vector<2x16xf32>
    %c0_6 = arith.constant 0 : index
    %c0_7 = arith.constant 0 : index
    %8 = vector.load %arg3[%c0_6, %c0_7] : memref<1x16xf32, #tpu.memory_space<vmem>>, vector<1x16xf32>
    %c0_8 = arith.constant 0 : index
    %c0_9 = arith.constant 0 : index
    %9 = vector.load %arg4[%c0_8, %c0_9] : memref<1x16xf32, #tpu.memory_space<vmem>>, vector<1x16xf32>
    %cst_10 = arith.constant dense<0.000000e+00> : vector<2xf32>
    %10 = vector.multi_reduction <add>, %7, %cst_10 [1] : vector<2x16xf32> to vector<2xf32>
    %11 = vector.shape_cast %10 : vector<2xf32> to vector<2x1xf32>
    %cst_11 = arith.constant 1.600000e+01 : f32
    %12 = vector.broadcast %cst_11 : f32 to vector<2x1xf32>
    %13 = arith.divf %11, %12 : vector<2x1xf32>
    %14 = vector.broadcast %13 : vector<2x1xf32> to vector<2x16xf32>
    %15 = arith.subf %7, %14 : vector<2x16xf32>
    %16 = arith.mulf %15, %15 : vector<2x16xf32>
    %cst_12 = arith.constant dense<0.000000e+00> : vector<2xf32>
    %17 = vector.multi_reduction <add>, %16, %cst_12 [1] : vector<2x16xf32> to vector<2xf32>
    %18 = vector.shape_cast %17 : vector<2xf32> to vector<2x1xf32>
    %cst_13 = arith.constant 1.600000e+01 : f32
    %19 = vector.broadcast %cst_13 : f32 to vector<2x1xf32>
    %20 = arith.divf %18, %19 : vector<2x1xf32>
    %21 = vector.broadcast %13 : vector<2x1xf32> to vector<2x16xf32>
    %22 = arith.subf %7, %21 : vector<2x16xf32>
    %cst_14 = arith.constant 9.99999974E-6 : f32
    %23 = vector.broadcast %cst_14 : f32 to vector<2x1xf32>
    %24 = arith.addf %20, %23 : vector<2x1xf32>
    %25 = math.rsqrt %24 : vector<2x1xf32>
    %26 = vector.broadcast %25 : vector<2x1xf32> to vector<2x16xf32>
    %27 = arith.mulf %22, %26 : vector<2x16xf32>
    %28 = vector.broadcast %8 : vector<1x16xf32> to vector<2x16xf32>
    %29 = arith.mulf %27, %28 : vector<2x16xf32>
    %30 = vector.broadcast %9 : vector<1x16xf32> to vector<2x16xf32>
    %31 = arith.addf %29, %30 : vector<2x16xf32>
    %c0_15 = arith.constant 0 : index
    %c0_16 = arith.constant 0 : index
    %32 = vector.load %arg5[%c0_15, %c0_16] : memref<16x16xf32, #tpu.memory_space<vmem>>, vector<16x16xf32>
    %c0_17 = arith.constant 0 : index
    %c0_18 = arith.constant 0 : index
    %33 = vector.load %arg6[%c0_17, %c0_18] : memref<1x16xf32, #tpu.memory_space<vmem>>, vector<1x16xf32>
    %cst_19 = arith.constant dense<0.000000e+00> : vector<2x16xf32>
    %34 = tpu.matmul %31, %32, %cst_19 {dimension_numbers = #tpu.dot_dimension_numbers<[1], [0], [0], [1], [0, 0, 1, 1], [], []>} : vector<2x16xf32>, vector<16x16xf32>, vector<2x16xf32> -> vector<2x16xf32>
    %35 = vector.broadcast %33 : vector<1x16xf32> to vector<2x16xf32>
    %36 = arith.addf %34, %35 : vector<2x16xf32>
    %cst_20 = arith.constant 0.000000e+00 : f32
    %37 = vector.broadcast %cst_20 : f32 to vector<2x16xf32>
    %38 = arith.maximumf %36, %37 : vector<2x16xf32>
    %c0_21 = arith.constant 0 : index
    %c0_22 = arith.constant 0 : index
    %39 = vector.load %arg7[%c0_21, %c0_22] : memref<2x16xf32, #tpu.memory_space<vmem>>, vector<2x16xf32>
    tpu.vector_store %arg7[%c0_21, %c0_22], %38 {strides = array<i32>} : memref<2x16xf32, #tpu.memory_space<vmem>>, vector<2x16xf32>,
    return
  }
}

module attributes {stable_mosaic.version = 11 : i64} {
  func.func @_resblock_kernel(%arg0: i32, %arg1: memref<1x13x32xf32, #tpu.memory_space<vmem>>, %arg2: memref<3x32x16xf32, #tpu.memory_space<vmem>>, %arg3: memref<1x16xf32, #tpu.memory_space<vmem>>, %arg4: memref<6x16x16xf32, #tpu.memory_space<vmem>>, %arg5: memref<1x16xf32, #tpu.memory_space<vmem>>, %arg6: memref<1x16xf32, #tpu.memory_space<vmem>>, %arg7: memref<1x16xf32, #tpu.memory_space<vmem>>, %arg8: memref<1x5x16xf32, #tpu.memory_space<vmem>>) attributes {dimension_semantics = [#tpu.dimension_semantics<parallel>], iteration_bounds = array<i64: 2>, scalar_prefetch = 0 : i64, scratch_operands = 0 : i64, tpu.core_type = #tpu.core_type<tc>, window_params = [{transform_indices = @transform_0, window_bounds = array<i64: 1, 13, 32>}, {pipeline_mode = #tpu.pipeline_mode<synchronous>, transform_indices = @transform_1, window_bounds = array<i64: 3, 32, 16>}, {pipeline_mode = #tpu.pipeline_mode<synchronous>, transform_indices = @transform_2, window_bounds = array<i64: 1, 16>}, {pipeline_mode = #tpu.pipeline_mode<synchronous>, transform_indices = @transform_3, window_bounds = array<i64: 6, 16, 16>}, {pipeline_mode = #tpu.pipeline_mode<synchronous>, transform_indices = @transform_4, window_bounds = array<i64: 1, 16>}, {pipeline_mode = #tpu.pipeline_mode<synchronous>, transform_indices = @transform_5, window_bounds = array<i64: 1, 16>}, {pipeline_mode = #tpu.pipeline_mode<synchronous>, transform_indices = @transform_6, window_bounds = array<i64: 1, 16>}, {transform_indices = @transform_7, window_bounds = array<i64: 1, 5, 16>}]} {
    %c0 = arith.constant 0 : index
    %c0_0 = arith.constant 0 : index
    %c0_1 = arith.constant 0 : index
    %0 = vector.load %arg1[%c0, %c0_0, %c0_1] : memref<1x13x32xf32, #tpu.memory_space<vmem>>, vector<1x13x32xf32>
    %1 = vector.shape_cast %0 : vector<1x13x32xf32> to vector<13x32xf32>
    %2 = vector.extract_strided_slice %1 {offsets = [0, 0], sizes = [10, 32], strides = [1, 1]} : vector<13x32xf32> to vector<10x32xf32>
    %c0_2 = arith.constant 0 : index
    %c0_3 = arith.constant 0 : index
    %c0_4 = arith.constant 0 : index
    %3 = vector.load %arg2[%c0_2, %c0_3, %c0_4] : memref<3x32x16xf32, #tpu.memory_space<vmem>>, vector<1x32x16xf32>
    %4 = vector.shape_cast %3 : vector<1x32x16xf32> to vector<32x16xf32>
    %cst = arith.constant dense<0.000000e+00> : vector<10x16xf32>
    %5 = tpu.matmul %2, %4, %cst {dimension_numbers = #tpu.dot_dimension_numbers<[1], [0], [0], [1], [0, 0, 1, 1], [], []>} : vector<10x32xf32>, vector<32x16xf32>, vector<10x16xf32> -> vector<10x16xf32>
    %6 = vector.extract_strided_slice %1 {offsets = [1, 0], sizes = [10, 32], strides = [1, 1]} : vector<13x32xf32> to vector<10x32xf32>
    %c1 = arith.constant 1 : index
    %c0_5 = arith.constant 0 : index
    %c0_6 = arith.constant 0 : index
    %7 = vector.load %arg2[%c1, %c0_5, %c0_6] : memref<3x32x16xf32, #tpu.memory_space<vmem>>, vector<1x32x16xf32>
    %8 = vector.shape_cast %7 : vector<1x32x16xf32> to vector<32x16xf32>
    %cst_7 = arith.constant dense<0.000000e+00> : vector<10x16xf32>
    %9 = tpu.matmul %6, %8, %cst_7 {dimension_numbers = #tpu.dot_dimension_numbers<[1], [0], [0], [1], [0, 0, 1, 1], [], []>} : vector<10x32xf32>, vector<32x16xf32>, vector<10x16xf32> -> vector<10x16xf32>
    %10 = arith.addf %5, %9 : vector<10x16xf32>
    %11 = vector.extract_strided_slice %1 {offsets = [2, 0], sizes = [10, 32], strides = [1, 1]} : vector<13x32xf32> to vector<10x32xf32>
    %c2 = arith.constant 2 : index
    %c0_8 = arith.constant 0 : index
    %c0_9 = arith.constant 0 : index
    %12 = vector.load %arg2[%c2, %c0_8, %c0_9] : memref<3x32x16xf32, #tpu.memory_space<vmem>>, vector<1x32x16xf32>
    %13 = vector.shape_cast %12 : vector<1x32x16xf32> to vector<32x16xf32>
    %cst_10 = arith.constant dense<0.000000e+00> : vector<10x16xf32>
    %14 = tpu.matmul %11, %13, %cst_10 {dimension_numbers = #tpu.dot_dimension_numbers<[1], [0], [0], [1], [0, 0, 1, 1], [], []>} : vector<10x32xf32>, vector<32x16xf32>, vector<10x16xf32> -> vector<10x16xf32>
    %15 = arith.addf %10, %14 : vector<10x16xf32>
    %c0_11 = arith.constant 0 : index
    %c0_12 = arith.constant 0 : index
    %16 = vector.load %arg3[%c0_11, %c0_12] : memref<1x16xf32, #tpu.memory_space<vmem>>, vector<1x16xf32>
    %17 = vector.broadcast %16 : vector<1x16xf32> to vector<10x16xf32>
    %18 = arith.addf %15, %17 : vector<10x16xf32>
    %cst_13 = arith.constant 0.000000e+00 : f32
    %19 = vector.broadcast %cst_13 : f32 to vector<10x16xf32>
    %20 = arith.maximumf %18, %19 : vector<10x16xf32>
    %21 = vector.extract_strided_slice %20 {offsets = [0, 0], sizes = [5, 16], strides = [1, 1]} : vector<10x16xf32> to vector<5x16xf32>
    %c0_14 = arith.constant 0 : index
    %c0_15 = arith.constant 0 : index
    %c0_16 = arith.constant 0 : index
    %22 = vector.load %arg4[%c0_14, %c0_15, %c0_16] : memref<6x16x16xf32, #tpu.memory_space<vmem>>, vector<1x16x16xf32>
    %23 = vector.shape_cast %22 : vector<1x16x16xf32> to vector<16x16xf32>
    %cst_17 = arith.constant dense<0.000000e+00> : vector<5x16xf32>
    %24 = tpu.matmul %21, %23, %cst_17 {dimension_numbers = #tpu.dot_dimension_numbers<[1], [0], [0], [1], [0, 0, 1, 1], [], []>} : vector<5x16xf32>, vector<16x16xf32>, vector<5x16xf32> -> vector<5x16xf32>
    %25 = vector.extract_strided_slice %20 {offsets = [1, 0], sizes = [5, 16], strides = [1, 1]} : vector<10x16xf32> to vector<5x16xf32>
    %c1_18 = arith.constant 1 : index
    %c0_19 = arith.constant 0 : index
    %c0_20 = arith.constant 0 : index
    %26 = vector.load %arg4[%c1_18, %c0_19, %c0_20] : memref<6x16x16xf32, #tpu.memory_space<vmem>>, vector<1x16x16xf32>
    %27 = vector.shape_cast %26 : vector<1x16x16xf32> to vector<16x16xf32>
    %cst_21 = arith.constant dense<0.000000e+00> : vector<5x16xf32>
    %28 = tpu.matmul %25, %27, %cst_21 {dimension_numbers = #tpu.dot_dimension_numbers<[1], [0], [0], [1], [0, 0, 1, 1], [], []>} : vector<5x16xf32>, vector<16x16xf32>, vector<5x16xf32> -> vector<5x16xf32>
    %29 = arith.addf %24, %28 : vector<5x16xf32>
    %30 = vector.extract_strided_slice %20 {offsets = [2, 0], sizes = [5, 16], strides = [1, 1]} : vector<10x16xf32> to vector<5x16xf32>
    %c2_22 = arith.constant 2 : index
    %c0_23 = arith.constant 0 : index
    %c0_24 = arith.constant 0 : index
    %31 = vector.load %arg4[%c2_22, %c0_23, %c0_24] : memref<6x16x16xf32, #tpu.memory_space<vmem>>, vector<1x16x16xf32>
    %32 = vector.shape_cast %31 : vector<1x16x16xf32> to vector<16x16xf32>
    %cst_25 = arith.constant dense<0.000000e+00> : vector<5x16xf32>
    %33 = tpu.matmul %30, %32, %cst_25 {dimension_numbers = #tpu.dot_dimension_numbers<[1], [0], [0], [1], [0, 0, 1, 1], [], []>} : vector<5x16xf32>, vector<16x16xf32>, vector<5x16xf32> -> vector<5x16xf32>
    %34 = arith.addf %29, %33 : vector<5x16xf32>
    %35 = vector.extract_strided_slice %20 {offsets = [3, 0], sizes = [5, 16], strides = [1, 1]} : vector<10x16xf32> to vector<5x16xf32>
    %c3 = arith.constant 3 : index
    %c0_26 = arith.constant 0 : index
    %c0_27 = arith.constant 0 : index
    %36 = vector.load %arg4[%c3, %c0_26, %c0_27] : memref<6x16x16xf32, #tpu.memory_space<vmem>>, vector<1x16x16xf32>
    %37 = vector.shape_cast %36 : vector<1x16x16xf32> to vector<16x16xf32>
    %cst_28 = arith.constant dense<0.000000e+00> : vector<5x16xf32>
    %38 = tpu.matmul %35, %37, %cst_28 {dimension_numbers = #tpu.dot_dimension_numbers<[1], [0], [0], [1], [0, 0, 1, 1], [], []>} : vector<5x16xf32>, vector<16x16xf32>, vector<5x16xf32> -> vector<5x16xf32>
    %39 = arith.addf %34, %38 : vector<5x16xf32>
    %40 = vector.extract_strided_slice %20 {offsets = [4, 0], sizes = [5, 16], strides = [1, 1]} : vector<10x16xf32> to vector<5x16xf32>
    %c4 = arith.constant 4 : index
    %c0_29 = arith.constant 0 : index
    %c0_30 = arith.constant 0 : index
    %41 = vector.load %arg4[%c4, %c0_29, %c0_30] : memref<6x16x16xf32, #tpu.memory_space<vmem>>, vector<1x16x16xf32>
    %42 = vector.shape_cast %41 : vector<1x16x16xf32> to vector<16x16xf32>
    %cst_31 = arith.constant dense<0.000000e+00> : vector<5x16xf32>
    %43 = tpu.matmul %40, %42, %cst_31 {dimension_numbers = #tpu.dot_dimension_numbers<[1], [0], [0], [1], [0, 0, 1, 1], [], []>} : vector<5x16xf32>, vector<16x16xf32>, vector<5x16xf32> -> vector<5x16xf32>
    %44 = arith.addf %39, %43 : vector<5x16xf32>
    %45 = vector.extract_strided_slice %20 {offsets = [5, 0], sizes = [5, 16], strides = [1, 1]} : vector<10x16xf32> to vector<5x16xf32>
    %c5 = arith.constant 5 : index
    %c0_32 = arith.constant 0 : index
    %c0_33 = arith.constant 0 : index
    %46 = vector.load %arg4[%c5, %c0_32, %c0_33] : memref<6x16x16xf32, #tpu.memory_space<vmem>>, vector<1x16x16xf32>
    %47 = vector.shape_cast %46 : vector<1x16x16xf32> to vector<16x16xf32>
    %cst_34 = arith.constant dense<0.000000e+00> : vector<5x16xf32>
    %48 = tpu.matmul %45, %47, %cst_34 {dimension_numbers = #tpu.dot_dimension_numbers<[1], [0], [0], [1], [0, 0, 1, 1], [], []>} : vector<5x16xf32>, vector<16x16xf32>, vector<5x16xf32> -> vector<5x16xf32>
    %49 = arith.addf %44, %48 : vector<5x16xf32>
    %50 = vector.extract_strided_slice %1 {offsets = [3, 16], sizes = [5, 16], strides = [1, 1]} : vector<13x32xf32> to vector<5x16xf32>
    %cst_35 = arith.constant dense<0.000000e+00> : vector<5xf32>
    %51 = vector.multi_reduction <add>, %50, %cst_35 [1] : vector<5x16xf32> to vector<5xf32>
    %52 = vector.shape_cast %51 : vector<5xf32> to vector<5x1xf32>
    %53 = vector.extract_strided_slice %1 {offsets = [4, 0], sizes = [5, 16], strides = [1, 1]} : vector<13x32xf32> to vector<5x16xf32>
    %cst_36 = arith.constant dense<0.000000e+00> : vector<5xf32>
    %54 = vector.multi_reduction <add>, %53, %cst_36 [1] : vector<5x16xf32> to vector<5xf32>
    %55 = vector.shape_cast %54 : vector<5xf32> to vector<5x1xf32>
    %56 = arith.addf %52, %55 : vector<5x1xf32>
    %c0_37 = arith.constant 0 : index
    %c0_38 = arith.constant 0 : index
    %57 = vector.load %arg5[%c0_37, %c0_38] : memref<1x16xf32, #tpu.memory_space<vmem>>, vector<1x16xf32>
    %58 = vector.broadcast %57 : vector<1x16xf32> to vector<5x16xf32>
    %59 = arith.addf %49, %58 : vector<5x16xf32>
    %60 = vector.broadcast %56 : vector<5x1xf32> to vector<5x16xf32>
    %61 = arith.addf %59, %60 : vector<5x16xf32>
    %cst_39 = arith.constant 0.000000e+00 : f32
    %62 = vector.broadcast %cst_39 : f32 to vector<5x16xf32>
    %63 = arith.maximumf %61, %62 : vector<5x16xf32>
    %c0_40 = arith.constant 0 : index
    %c0_41 = arith.constant 0 : index
    %64 = vector.load %arg6[%c0_40, %c0_41] : memref<1x16xf32, #tpu.memory_space<vmem>>, vector<1x16xf32>
    %65 = vector.broadcast %64 : vector<1x16xf32> to vector<5x16xf32>
    %66 = arith.mulf %63, %65 : vector<5x16xf32>
    %c0_42 = arith.constant 0 : index
    %c0_43 = arith.constant 0 : index
    %67 = vector.load %arg7[%c0_42, %c0_43] : memref<1x16xf32, #tpu.memory_space<vmem>>, vector<1x16xf32>
    %68 = vector.broadcast %67 : vector<1x16xf32> to vector<5x16xf32>
    %69 = arith.addf %66, %68 : vector<5x16xf32>
    %c0_44 = arith.constant 0 : index
    %c0_45 = arith.constant 0 : index
    %c0_46 = arith.constant 0 : index
    %70 = vector.load %arg8[%c0_44, %c0_45, %c0_46] : memref<1x5x16xf32, #tpu.memory_space<vmem>>, vector<1x5x16xf32>
    %71 = vector.shape_cast %70 : vector<1x5x16xf32> to vector<5x16xf32>
    %72 = vector.shape_cast %69 : vector<5x16xf32> to vector<1x5x16xf32>
    tpu.vector_store %arg8[%c0_44, %c0_45, %c0_46], %72 {strides = array<i32>} : memref<1x5x16xf32, #tpu.memory_space<vmem>>, vector<1x5x16xf32>,
    return
  }
  func.func @transform_0(%arg0: i32) -> (i32, i32, i32) {
    %c0_i32 = arith.constant 0 : i32
    %c0_i32_0 = arith.constant 0 : i32
    %c0_i32_1 = arith.constant 0 : i32
    return %arg0, %c0_i32, %c0_i32_0 : i32, i32, i32
  }
  func.func @transform_1(%arg0: i32) -> (i32, i32, i32) {
    %c0_i32 = arith.constant 0 : i32
    %c0_i32_0 = arith.constant 0 : i32
    %c0_i32_1 = arith.constant 0 : i32
    %c0_i32_2 = arith.constant 0 : i32
    return %c0_i32, %c0_i32_0, %c0_i32_1 : i32, i32, i32
  }
  func.func @transform_2(%arg0: i32) -> (i32, i32) {
    %c0_i32 = arith.constant 0 : i32
    %c0_i32_0 = arith.constant 0 : i32
    %c0_i32_1 = arith.constant 0 : i32
    return %c0_i32, %c0_i32_0 : i32, i32
  }
  func.func @transform_3(%arg0: i32) -> (i32, i32, i32) {
    %c0_i32 = arith.constant 0 : i32
    %c0_i32_0 = arith.constant 0 : i32
    %c0_i32_1 = arith.constant 0 : i32
    %c0_i32_2 = arith.constant 0 : i32
    return %c0_i32, %c0_i32_0, %c0_i32_1 : i32, i32, i32
  }
  func.func @transform_4(%arg0: i32) -> (i32, i32) {
    %c0_i32 = arith.constant 0 : i32
    %c0_i32_0 = arith.constant 0 : i32
    %c0_i32_1 = arith.constant 0 : i32
    return %c0_i32, %c0_i32_0 : i32, i32
  }
  func.func @transform_5(%arg0: i32) -> (i32, i32) {
    %c0_i32 = arith.constant 0 : i32
    %c0_i32_0 = arith.constant 0 : i32
    %c0_i32_1 = arith.constant 0 : i32
    return %c0_i32, %c0_i32_0 : i32, i32
  }
  func.func @transform_6(%arg0: i32) -> (i32, i32) {
    %c0_i32 = arith.constant 0 : i32
    %c0_i32_0 = arith.constant 0 : i32
    %c0_i32_1 = arith.constant 0 : i32
    return %c0_i32, %c0_i32_0 : i32, i32
  }
  func.func @transform_7(%arg0: i32) -> (i32, i32, i32) {
    %c0_i32 = arith.constant 0 : i32
    %c0_i32_0 = arith.constant 0 : i32
    %c0_i32_1 = arith.constant 0 : i32
    return %arg0, %c0_i32, %c0_i32_0 : i32, i32, i32
  }
}

module attributes {stable_mosaic.version = 11 : i64} {
  func.func @_head_kernel(%arg0: memref<2x96xf32, #tpu.memory_space<vmem>>, %arg1: memref<1x96xf32, #tpu.memory_space<vmem>>, %arg2: memref<1x96xf32, #tpu.memory_space<vmem>>, %arg3: memref<96x32xf32, #tpu.memory_space<vmem>>, %arg4: memref<1x32xf32, #tpu.memory_space<vmem>>, %arg5: memref<32x1xf32, #tpu.memory_space<vmem>>, %arg6: memref<1x1xf32, #tpu.memory_space<vmem>>, %arg7: memref<2x1xf32, #tpu.memory_space<vmem>>) attributes {dimension_semantics = [], scalar_prefetch = 0 : i64, scratch_operands = 0 : i64, tpu.core_type = #tpu.core_type<tc>} {
    %c0 = arith.constant 0 : index
    %c0_0 = arith.constant 0 : index
    %0 = vector.load %arg0[%c0, %c0_0] : memref<2x96xf32, #tpu.memory_space<vmem>>, vector<2x96xf32>
    %cst = arith.constant dense<0.000000e+00> : vector<2xf32>
    %1 = vector.multi_reduction <add>, %0, %cst [1] : vector<2x96xf32> to vector<2xf32>
    %2 = vector.shape_cast %1 : vector<2xf32> to vector<2x1xf32>
    %cst_1 = arith.constant 9.600000e+01 : f32
    %3 = vector.broadcast %cst_1 : f32 to vector<2x1xf32>
    %4 = arith.divf %2, %3 : vector<2x1xf32>
    %5 = vector.broadcast %4 : vector<2x1xf32> to vector<2x96xf32>
    %6 = arith.subf %0, %5 : vector<2x96xf32>
    %7 = arith.mulf %6, %6 : vector<2x96xf32>
    %cst_2 = arith.constant dense<0.000000e+00> : vector<2xf32>
    %8 = vector.multi_reduction <add>, %7, %cst_2 [1] : vector<2x96xf32> to vector<2xf32>
    %9 = vector.shape_cast %8 : vector<2xf32> to vector<2x1xf32>
    %cst_3 = arith.constant 9.600000e+01 : f32
    %10 = vector.broadcast %cst_3 : f32 to vector<2x1xf32>
    %11 = arith.divf %9, %10 : vector<2x1xf32>
    %12 = vector.broadcast %4 : vector<2x1xf32> to vector<2x96xf32>
    %13 = arith.subf %0, %12 : vector<2x96xf32>
    %cst_4 = arith.constant 9.99999974E-6 : f32
    %14 = vector.broadcast %cst_4 : f32 to vector<2x1xf32>
    %15 = arith.addf %11, %14 : vector<2x1xf32>
    %16 = math.rsqrt %15 : vector<2x1xf32>
    %17 = vector.broadcast %16 : vector<2x1xf32> to vector<2x96xf32>
    %18 = arith.mulf %13, %17 : vector<2x96xf32>
    %c0_5 = arith.constant 0 : index
    %c0_6 = arith.constant 0 : index
    %19 = vector.load %arg1[%c0_5, %c0_6] : memref<1x96xf32, #tpu.memory_space<vmem>>, vector<1x96xf32>
    %20 = vector.broadcast %19 : vector<1x96xf32> to vector<2x96xf32>
    %21 = arith.mulf %18, %20 : vector<2x96xf32>
    %c0_7 = arith.constant 0 : index
    %c0_8 = arith.constant 0 : index
    %22 = vector.load %arg2[%c0_7, %c0_8] : memref<1x96xf32, #tpu.memory_space<vmem>>, vector<1x96xf32>
    %23 = vector.broadcast %22 : vector<1x96xf32> to vector<2x96xf32>
    %24 = arith.addf %21, %23 : vector<2x96xf32>
    %c0_9 = arith.constant 0 : index
    %c0_10 = arith.constant 0 : index
    %25 = vector.load %arg3[%c0_9, %c0_10] : memref<96x32xf32, #tpu.memory_space<vmem>>, vector<96x32xf32>
    %cst_11 = arith.constant dense<0.000000e+00> : vector<2x32xf32>
    %26 = tpu.matmul %24, %25, %cst_11 {dimension_numbers = #tpu.dot_dimension_numbers<[1], [0], [0], [1], [0, 0, 1, 1], [], []>} : vector<2x96xf32>, vector<96x32xf32>, vector<2x32xf32> -> vector<2x32xf32>
    %c0_12 = arith.constant 0 : index
    %c0_13 = arith.constant 0 : index
    %27 = vector.load %arg4[%c0_12, %c0_13] : memref<1x32xf32, #tpu.memory_space<vmem>>, vector<1x32xf32>
    %28 = vector.broadcast %27 : vector<1x32xf32> to vector<2x32xf32>
    %29 = arith.addf %26, %28 : vector<2x32xf32>
    %cst_14 = arith.constant 0.000000e+00 : f32
    %30 = vector.broadcast %cst_14 : f32 to vector<2x32xf32>
    %31 = arith.maximumf %29, %30 : vector<2x32xf32>
    %c0_15 = arith.constant 0 : index
    %c0_16 = arith.constant 0 : index
    %32 = vector.load %arg5[%c0_15, %c0_16] : memref<32x1xf32, #tpu.memory_space<vmem>>, vector<32x1xf32>
    %cst_17 = arith.constant dense<0.000000e+00> : vector<2x1xf32>
    %33 = tpu.matmul %31, %32, %cst_17 {dimension_numbers = #tpu.dot_dimension_numbers<[1], [0], [0], [1], [0, 0, 1, 1], [], []>} : vector<2x32xf32>, vector<32x1xf32>, vector<2x1xf32> -> vector<2x1xf32>
    %c0_18 = arith.constant 0 : index
    %c0_19 = arith.constant 0 : index
    %34 = vector.load %arg6[%c0_18, %c0_19] : memref<1x1xf32, #tpu.memory_space<vmem>>, vector<1x1xf32>
    %35 = vector.broadcast %34 : vector<1x1xf32> to vector<2x1xf32>
    %36 = arith.addf %33, %35 : vector<2x1xf32>
    %cst_20 = arith.constant 0.000000e+00 : f32
    %37 = vector.broadcast %cst_20 : f32 to vector<2x1xf32>
    %38 = arith.subf %37, %36 : vector<2x1xf32>
    %39 = math.exp %38 : vector<2x1xf32>
    %cst_21 = arith.constant 1.000000e+00 : f32
    %40 = vector.broadcast %cst_21 : f32 to vector<2x1xf32>
    %41 = arith.addf %40, %39 : vector<2x1xf32>
    %cst_22 = arith.constant 1.000000e+00 : f32
    %42 = vector.broadcast %cst_22 : f32 to vector<2x1xf32>
    %43 = arith.divf %42, %41 : vector<2x1xf32>
    %c0_23 = arith.constant 0 : index
    %c0_24 = arith.constant 0 : index
    %44 = vector.load %arg7[%c0_23, %c0_24] : memref<2x1xf32, #tpu.memory_space<vmem>>, vector<2x1xf32>
    tpu.vector_store %arg7[%c0_23, %c0_24], %43 {strides = array<i32>} : memref<2x1xf32, #tpu.memory_space<vmem>>, vector<2x1xf32>,
    return
  }
}

</mosaic_0001>

<llo_original>
// kernel: resnet_forward.6
$region0: #{resnet_forward.6}
  #allocation0 [shape = 'u32[]', space=smem, size = 0x4, offset = 0x4, fixed_abs, tag = 'smem constant byte address 0x4 - core index']
  #allocation1 [shape = 'u32[144,128]{1,0:T(1,128)}', space=vmem, size = 0x12000, scoped, tag = 'internal scratch']
  %s0 = inlined_call_operand.vmem [shape: f32[2,2], index: 0, kind: input, shape index: {}]
  %s1 = inlined_call_operand.vmem [shape: f32[2,16], index: 1, kind: input, shape index: {}]
  %s2 = inlined_call_operand.vmem [shape: f32[1,16], index: 2, kind: input, shape index: {}]
  %s3 = inlined_call_operand.vmem [shape: f32[1,16], index: 3, kind: input, shape index: {}]
  %s4 = inlined_call_operand.vmem [shape: f32[1,16], index: 4, kind: input, shape index: {}]
  %s5 = inlined_call_operand.vmem [shape: f32[16,16], index: 5, kind: input, shape index: {}]
  %s6 = inlined_call_operand.vmem [shape: f32[1,16], index: 6, kind: input, shape index: {}]
  %s7 = inlined_call_operand.vmem [shape: f32[2,16], index: 7, kind: output, shape index: {}]
  %s8 = sld [smem:[#allocation0]]
  $region38: #{resnet_forward.6} parent=0
    _
  %s10 = ssub.s32 1, %s8
  %s11 = scalar_select 0, %s10, %s8
  // Predicated region
  $region2: #{resnet_forward.6} parent=0 // pred_check
    _
  $region3: #{resnet_forward.6} parent=0 // pred_check_branch
    %13 = sbr.rel (0) target = $region5
  $region4: #{resnet_forward.6} parent=0 // pred_region
    _
  $region5: #{resnet_forward.6} parent=0 // pred_fallthru
    _
  // Predicated region
  $region6: #{resnet_forward.6} parent=0 // pred_check
    _
  $region7: #{resnet_forward.6} parent=0 // pred_check_branch
    %15 = sbr.rel (0) target = $region9
  $region8: #{resnet_forward.6} parent=0 // pred_region
    _
  $region9: #{resnet_forward.6} parent=0 // pred_fallthru
    _
  // Predicated region
  $region10: #{resnet_forward.6} parent=0 // pred_check
    _
  $region11: #{resnet_forward.6} parent=0 // pred_check_branch
    %17 = sbr.rel (0) target = $region13
  $region12: #{resnet_forward.6} parent=0 // pred_region
    _
  $region13: #{resnet_forward.6} parent=0 // pred_fallthru
    _
  // Predicated region
  $region14: #{resnet_forward.6} parent=0 // pred_check
    _
  $region15: #{resnet_forward.6} parent=0 // pred_check_branch
    %19 = sbr.rel (0) target = $region17
  $region16: #{resnet_forward.6} parent=0 // pred_region
    _
  $region17: #{resnet_forward.6} parent=0 // pred_fallthru
    _
  // Predicated region
  $region18: #{resnet_forward.6} parent=0 // pred_check
    _
  $region19: #{resnet_forward.6} parent=0 // pred_check_branch
    %21 = sbr.rel (0) target = $region21
  $region20: #{resnet_forward.6} parent=0 // pred_region
    _
  $region21: #{resnet_forward.6} parent=0 // pred_fallthru
    _
  // Predicated region
  $region22: #{resnet_forward.6} parent=0 // pred_check
    _
  $region23: #{resnet_forward.6} parent=0 // pred_check_branch
    %23 = sbr.rel (0) target = $region25
  $region24: #{resnet_forward.6} parent=0 // pred_region
    _
  $region25: #{resnet_forward.6} parent=0 // pred_fallthru
    _
  // Predicated region
  $region26: #{resnet_forward.6} parent=0 // pred_check
    _
  $region27: #{resnet_forward.6} parent=0 // pred_check_branch
    %25 = sbr.rel (0) target = $region29
  $region28: #{resnet_forward.6} parent=0 // pred_region
    _
  $region29: #{resnet_forward.6} parent=0 // pred_fallthru
    _
  %v26 = vld [vmem:[%s0] sm:$0x3]
  %v27 = vld [vmem:[%s1] sm:$0x3]
  %v28 = vld [vmem:[%s2] sm:$0x1]
  %v30 = vlaneseq
  %v31 = vshrl.u32 %v30, 7
  %v32 = vsub.s32 0, %v31
  %v33 = vrot.slane %v28, %v32
  %vm35 = vcmask 15360
  %v37 = vsel %vm35, %v26, 0
  %vm39 = vcmask 1041408
  %v41 = vsel %vm39, %v27, 0
  %43 = vmatprep.subr.mxu0 0.0
  %44 = vmatpush1.msra.mxu0 0.0
  %45 = vmatprep.subr.mxu0 0.0
  %46 = vmatpush1.msra.mxu0 0.0
  %47 = vmatprep.subr.mxu0 0.0
  %48 = vmatpush1.msra.mxu0 0.0
  %49 = vmatprep.subr.mxu0 0.0
  %50 = vmatpush1.msra.mxu0 0.0
  %51 = vmatprep.subr.mxu0 0.0
  %52 = vmatpush1.msra.mxu0 0.0
  %53 = vmatprep.subr.mxu0 0.0
  %54 = vmatpush1.msra.mxu0 0.0
  %55 = vmatprep.subr.mxu0 0.0
  %56 = vmatpush1.msra.mxu0 0.0
  %57 = vmatprep.subr.mxu0 0.0
  %58 = vmatpush1.msra.mxu0 0.0
  %59 = vmatprep.subr.mxu0 0.0
  %60 = vmatpush1.msra.mxu0 0.0
  %61 = vmatprep.subr.mxu0 0.0
  %62 = vmatpush1.msra.mxu0 0.0
  %63 = vmatprep.subr.mxu0 0.0
  %64 = vmatpush1.msra.mxu0 0.0
  %65 = vmatprep.subr.mxu0 0.0
  %66 = vmatpush1.msra.mxu0 0.0
  %67 = vmatprep.subr.mxu0 0.0
  %68 = vmatpush1.msra.mxu0 0.0
  %69 = vmatprep.subr.mxu0 0.0
  %70 = vmatpush1.msra.mxu0 0.0
  %71 = vmatprep.subr.mxu0 0.0
  %72 = vmatpush1.msra.mxu0 0.0
  %73 = vmatprep.subr.mxu0 0.0
  %74 = vmatpush1.msra.mxu0 %v41
  %75 = vmatprep.subr.mxu0 0.0
  %76 = vmatpush2.msra.mxu0 0.0
  %77 = vmatprep.subr.mxu0 0.0
  %78 = vmatpush2.msra.mxu0 0.0
  %79 = vmatprep.subr.mxu0 0.0
  %80 = vmatpush2.msra.mxu0 0.0
  %81 = vmatprep.subr.mxu0 0.0
  %82 = vmatpush2.msra.mxu0 0.0
  %83 = vmatprep.subr.mxu0 0.0
  %84 = vmatpush2.msra.mxu0 0.0
  %85 = vmatprep.subr.mxu0 0.0
  %86 = vmatpush2.msra.mxu0 0.0
  %87 = vmatprep.subr.mxu0 0.0
  %88 = vmatpush2.msra.mxu0 0.0
  %89 = vmatprep.subr.mxu0 0.0
  %90 = vmatpush2.msra.mxu0 0.0
  %91 = vmatprep.subr.mxu0 0.0
  %92 = vmatpush2.msra.mxu0 0.0
  %93 = vmatprep.subr.mxu0 0.0
  %94 = vmatpush2.msra.mxu0 0.0
  %95 = vmatprep.subr.mxu0 0.0
  %96 = vmatpush2.msra.mxu0 0.0
  %97 = vmatprep.subr.mxu0 0.0
  %98 = vmatpush2.msra.mxu0 0.0
  %99 = vmatprep.subr.mxu0 0.0
  %100 = vmatpush2.msra.mxu0 0.0
  %101 = vmatprep.subr.mxu0 0.0
  %102 = vmatpush2.msra.mxu0 0.0
  %103 = vmatprep.subr.mxu0 0.0
  %104 = vmatpush2.msra.mxu0 0.0
  %105 = vmatprep.subr.mxu0 0.0
  %106 = vmatpush2.msra.mxu0 0.0
  %107 = vmatprep.mubr.f32.mxu0 0.0
  %108 = vmatmul.mubr.f32.gmra.mxu0 %v37
  %v109 = vpop.f32.mrf.mxu0
  %v110 = vadd.f32 %v33, %v109
  %v111 = vpop.f32.mrf.mxu0
  %112 = vdwg.mxu0
  %v113 = vmax.f32 %v110, 0.0
  %v114 = vld [vmem:[%s3] sm:$0x1]
  %v115 = vld [vmem:[%s4] sm:$0x1]
  %vm116 = vcmask 123904
  %v117 = vsel %vm116, %v113, 0.0
  %118 = vadd.xlane.f32.xlu0 %v117
  %v119 = vpop.xlane.xlu0 %118
  %v120 = vrcp.pop 16.0
  %v121 = vmul.f32 %v119, %v120
  %v122 = vsub.f32 %v113, %v121
  %v123 = vmul.f32 %v122, %v122
  %v124 = vsel %vm116, %v123, 0.0
  %125 = vadd.xlane.f32.xlu0 %v124
  %v126 = vpop.xlane.xlu0 %125
  %v127 = vmul.f32 %v126, %v120
  %v128 = vadd.f32 %v127, 1e-05
  %v129 = vrsqrt.pop %v128
  %v130 = vmul.f32 %v122, %v129
  %v132 = vlaneseq
  %v133 = vshrl.u32 %v132, 7
  %v134 = vsub.s32 0, %v133
  %v135 = vrot.slane %v114, %v134
  %v137 = vmul.f32 %v130, %v135
  %v139 = vlaneseq
  %v140 = vshrl.u32 %v139, 7
  %v141 = vsub.s32 0, %v140
  %v142 = vrot.slane %v115, %v141
  %v144 = vadd.f32 %v137, %v142
  %v145 = vld [vmem:[%s5] sm:$0xff]
  %v146 = vld [vmem:[%s5 + $0x8] sm:$0xff]
  %v147 = vld [vmem:[%s6] sm:$0x1]
  %v149 = vlaneseq
  %v150 = vshrl.u32 %v149, 7
  %v151 = vsub.s32 0, %v150
  %v152 = vrot.slane %v147, %v151
  %vm154 = vcmask 130048
  %v156 = vsel %vm154, %v144, 0
  %158 = vmatprep.subr.mxu0 0.0
  %159 = vmatpush1.msra.mxu0 0.0
  %160 = vmatprep.subr.mxu0 0.0
  %161 = vmatpush1.msra.mxu0 0.0
  %162 = vmatprep.subr.mxu0 0.0
  %163 = vmatpush1.msra.mxu0 0.0
  %164 = vmatprep.subr.mxu0 0.0
  %165 = vmatpush1.msra.mxu0 0.0
  %166 = vmatprep.subr.mxu0 0.0
  %167 = vmatpush1.msra.mxu0 0.0
  %168 = vmatprep.subr.mxu0 0.0
  %169 = vmatpush1.msra.mxu0 0.0
  %170 = vmatprep.subr.mxu0 0.0
  %171 = vmatpush1.msra.mxu0 0.0
  %172 = vmatprep.subr.mxu0 0.0
  %173 = vmatpush1.msra.mxu0 0.0
  %174 = vmatprep.subr.mxu0 0.0
  %175 = vmatpush1.msra.mxu0 0.0
  %176 = vmatprep.subr.mxu0 0.0
  %177 = vmatpush1.msra.mxu0 0.0
  %178 = vmatprep.subr.mxu0 0.0
  %179 = vmatpush1.msra.mxu0 0.0
  %180 = vmatprep.subr.mxu0 0.0
  %181 = vmatpush1.msra.mxu0 0.0
  %182 = vmatprep.subr.mxu0 0.0
  %183 = vmatpush1.msra.mxu0 0.0
  %184 = vmatprep.subr.mxu0 0.0
  %185 = vmatpush1.msra.mxu0 0.0
  %186 = vmatprep.subr.mxu0 0.0
  %187 = vmatpush1.msra.mxu0 %v146
  %188 = vmatprep.subr.mxu0 0.0
  %189 = vmatpush1.msra.mxu0 %v145
  %190 = vmatprep.subr.mxu0 0.0
  %191 = vmatpush2.msra.mxu0 0.0
  %192 = vmatprep.subr.mxu0 0.0
  %193 = vmatpush2.msra.mxu0 0.0
  %194 = vmatprep.subr.mxu0 0.0
  %195 = vmatpush2.msra.mxu0 0.0
  %196 = vmatprep.subr.mxu0 0.0
  %197 = vmatpush2.msra.mxu0 0.0
  %198 = vmatprep.subr.mxu0 0.0
  %199 = vmatpush2.msra.mxu0 0.0
  %200 = vmatprep.subr.mxu0 0.0
  %201 = vmatpush2.msra.mxu0 0.0
  %202 = vmatprep.subr.mxu0 0.0
  %203 = vmatpush2.msra.mxu0 0.0
  %204 = vmatprep.subr.mxu0 0.0
  %205 = vmatpush2.msra.mxu0 0.0
  %206 = vmatprep.subr.mxu0 0.0
  %207 = vmatpush2.msra.mxu0 0.0
  %208 = vmatprep.subr.mxu0 0.0
  %209 = vmatpush2.msra.mxu0 0.0
  %210 = vmatprep.subr.mxu0 0.0
  %211 = vmatpush2.msra.mxu0 0.0
  %212 = vmatprep.subr.mxu0 0.0
  %213 = vmatpush2.msra.mxu0 0.0
  %214 = vmatprep.subr.mxu0 0.0
  %215 = vmatpush2.msra.mxu0 0.0
  %216 = vmatprep.subr.mxu0 0.0
  %217 = vmatpush2.msra.mxu0 0.0
  %218 = vmatprep.subr.mxu0 0.0
  %219 = vmatpush2.msra.mxu0 0.0
  %220 = vmatprep.subr.mxu0 0.0
  %221 = vmatpush2.msra.mxu0 0.0
  %222 = vmatprep.mubr.f32.mxu0 0.0
  %223 = vmatmul.mubr.f32.gmra.mxu0 %v156
  %v224 = vpop.f32.mrf.mxu0
  %v225 = vadd.f32 %v152, %v224
  %v226 = vpop.f32.mrf.mxu0
  %227 = vdwg.mxu0
  %v228 = vmax.f32 %v225, 0.0
  %229 = vst.msk [vmem:[%s7] sm:$0x3] %vm116, %v228
  // Predicated region
  $region30: #{resnet_forward.6} parent=0 // pred_check
    _
  $region31: #{resnet_forward.6} parent=0 // pred_check_branch
    %231 = sbr.rel (0) target = $region33
  $region32: #{resnet_forward.6} parent=0 // pred_region
    _
  $region33: #{resnet_forward.6} parent=0 // pred_fallthru
    _
  // Predicated region
  $region34: #{resnet_forward.6} parent=0 // pred_check
    _
  $region35: #{resnet_forward.6} parent=0 // pred_check_branch
    %233 = sbr.rel (0) target = $region37
  $region36: #{resnet_forward.6} parent=0 // pred_region
    _
  $region37: #{resnet_forward.6} parent=0 // pred_fallthru
    _

// kernel: resnet_forward.4
$region0: #{resnet_forward.4}
  #allocation0 [shape = 'u32[]', space=smem, size = 0x4, offset = 0x4, fixed_abs, tag = 'smem constant byte address 0x4 - core index']
  #allocation1 [shape = 'u32[144,128]{1,0:T(1,128)}', space=vmem, size = 0x12000, scoped, tag = 'internal scratch']
  %s0 = inlined_call_operand.vmem [shape: f32[2,16,8], index: 0, kind: input, shape index: {}]
  %s1 = inlined_call_operand.vmem [shape: f32[3,8,16], index: 1, kind: input, shape index: {}]
  %s2 = inlined_call_operand.vmem [shape: f32[1,16], index: 2, kind: input, shape index: {}]
  %s3 = inlined_call_operand.vmem [shape: f32[6,16,16], index: 3, kind: input, shape index: {}]
  %s4 = inlined_call_operand.vmem [shape: f32[1,16], index: 4, kind: input, shape index: {}]
  %s5 = inlined_call_operand.vmem [shape: f32[1,16], index: 5, kind: input, shape index: {}]
  %s6 = inlined_call_operand.vmem [shape: f32[1,16], index: 6, kind: input, shape index: {}]
  %s7 = inlined_call_operand.vmem [shape: f32[2,9,16], index: 7, kind: output, shape index: {}]
  %s8 = sld [smem:[#allocation0]]
  $region61: #{resnet_forward.4} parent=0
    _
  %s10 = ssub.s32 1, %s8
  %s11 = scalar_select 0, %s10, %s8
  loop: start=0, step=1, limit=4
  $region2: #{resnet_forward.4} parent=0 // loop_pre_header
    _
  $region3: #{resnet_forward.4} parent=0 // loop_header
    %s13 = sphi 0, %s17
    %p14 = scmp.ge.s32.totalorder %s13, 4
    %s23 = sphi 0, %s25
    %s26 = sphi 0, %s23
    %s27 = sphi 0, %s26
    %s43 = sphi 0, %s27
    %s47 = sphi 0, %s47
    %s49 = sphi 0, %s47
    %s50 = sphi 0, %s49
    %s64 = sphi 0, %s50
    %s68 = sphi 0, %s68
    %s70 = sphi 0, %s68
    %s71 = sphi 0, %s70
    %s85 = sphi 0, %s71
    %s89 = sphi 0, %s89
    %s91 = sphi 0, %s89
    %s92 = sphi 0, %s91
    %s106 = sphi 0, %s92
    %s110 = sphi 0, %s110
    %s112 = sphi 0, %s110
    %s113 = sphi 0, %s112
    %s127 = sphi 0, %s113
    %s131 = sphi 0, %s131
    %s133 = sphi 0, %s131
    %s134 = sphi 0, %s133
    %s148 = sphi 0, %s134
    %s152 = sphi 0, %s152
    %s154 = sphi 0, %s152
    %s155 = sphi 0, %s154
    %s169 = sphi 0, %s155
    %s175 = sphi 0, %s177
    %s178 = sphi 0, %s175
    %s179 = sphi 0, %s178
    %s195 = sphi 0, %s179
  $region4: #{resnet_forward.4} parent=0 // loop_header_branch
    %16 = sbr.rel (%p14) target = $region8
  $region5: #{resnet_forward.4} parent=0 // loop_body
    %s18 = ssub.s32 %s13, 1
    %s19 = ssub.s32 %s13, 2
    %s20 = sadd.s32 %s13, 1
    %s21 = ssub.s32 %s13, %s20
    %p22 = scmp.eq.s32.totalorder %s21, 0
    %s24 = sadd.s32 %s23, 1
    %s25 = scalar_select %p22, %s23, %s24
    %p28 = pneg %p22
    %p29 = scmp.eq.s32.totalorder %s13, 1
    %p30 = por %p28, %p29
    %p31 = scmp.ne.s32.totalorder %s23, %s26
    %p32 = scmp.eq.s32.totalorder %s13, 0
    %p33 = por %p31, %p32
    %p34 = scmp.ne.s32.totalorder %s23, %s26
    %p35 = scmp.eq.s32.totalorder %s18, 1
    %p36 = por %p34, %p35
    %p37 = scmp.ne.s32.totalorder %s26, %s27
    %p38 = scmp.eq.s32.totalorder %s18, 0
    %p39 = por %p37, %p38
    %p40 = scmp.ne.s32.totalorder %s26, %s27
    %p41 = scmp.eq.s32.totalorder %s19, 1
    %p42 = por %p40, %p41
    %p44 = scmp.ne.s32.totalorder %s27, %s43
    %p45 = scmp.eq.s32.totalorder %s19, 0
    %p46 = por %p44, %p45
    %s48 = sadd.s32 %s47, 1
    %p51 = scmp.eq.s32.totalorder %s13, 1
    %p52 = scmp.ne.s32.totalorder %s47, %s49
    %p53 = scmp.eq.s32.totalorder %s13, 0
    %p54 = por %p52, %p53
    %p55 = scmp.ne.s32.totalorder %s47, %s49
    %p56 = scmp.eq.s32.totalorder %s18, 1
    %p57 = por %p55, %p56
    %p58 = scmp.ne.s32.totalorder %s49, %s50
    %p59 = scmp.eq.s32.totalorder %s18, 0
    %p60 = por %p58, %p59
    %p61 = scmp.ne.s32.totalorder %s49, %s50
    %p62 = scmp.eq.s32.totalorder %s19, 1
    %p63 = por %p61, %p62
    %p65 = scmp.ne.s32.totalorder %s50, %s64
    %p66 = scmp.eq.s32.totalorder %s19, 0
    %p67 = por %p65, %p66
    %s69 = sadd.s32 %s68, 1
    %p72 = scmp.eq.s32.totalorder %s13, 1
    %p73 = scmp.ne.s32.totalorder %s68, %s70
    %p74 = scmp.eq.s32.totalorder %s13, 0
    %p75 = por %p73, %p74
    %p76 = scmp.ne.s32.totalorder %s68, %s70
    %p77 = scmp.eq.s32.totalorder %s18, 1
    %p78 = por %p76, %p77
    %p79 = scmp.ne.s32.totalorder %s70, %s71
    %p80 = scmp.eq.s32.totalorder %s18, 0
    %p81 = por %p79, %p80
    %p82 = scmp.ne.s32.totalorder %s70, %s71
    %p83 = scmp.eq.s32.totalorder %s19, 1
    %p84 = por %p82, %p83
    %p86 = scmp.ne.s32.totalorder %s71, %s85
    %p87 = scmp.eq.s32.totalorder %s19, 0
    %p88 = por %p86, %p87
    %s90 = sadd.s32 %s89, 1
    %p93 = scmp.eq.s32.totalorder %s13, 1
    %p94 = scmp.ne.s32.totalorder %s89, %s91
    %p95 = scmp.eq.s32.totalorder %s13, 0
    %p96 = por %p94, %p95
    %p97 = scmp.ne.s32.totalorder %s89, %s91
    %p98 = scmp.eq.s32.totalorder %s18, 1
    %p99 = por %p97, %p98
    %p100 = scmp.ne.s32.totalorder %s91, %s92
    %p101 = scmp.eq.s32.totalorder %s18, 0
    %p102 = por %p100, %p101
    %p103 = scmp.ne.s32.totalorder %s91, %s92
    %p104 = scmp.eq.s32.totalorder %s19, 1
    %p105 = por %p103, %p104
    %p107 = scmp.ne.s32.totalorder %s92, %s106
    %p108 = scmp.eq.s32.totalorder %s19, 0
    %p109 = por %p107, %p108
    %s111 = sadd.s32 %s110, 1
    %p114 = scmp.eq.s32.totalorder %s13, 1
    %p115 = scmp.ne.s32.totalorder %s110, %s112
    %p116 = scmp.eq.s32.totalorder %s13, 0
    %p117 = por %p115, %p116
    %p118 = scmp.ne.s32.totalorder %s110, %s112
    %p119 = scmp.eq.s32.totalorder %s18, 1
    %p120 = por %p118, %p119
    %p121 = scmp.ne.s32.totalorder %s112, %s113
    %p122 = scmp.eq.s32.totalorder %s18, 0
    %p123 = por %p121, %p122
    %p124 = scmp.ne.s32.totalorder %s112, %s113
    %p125 = scmp.eq.s32.totalorder %s19, 1
    %p126 = por %p124, %p125
    %p128 = scmp.ne.s32.totalorder %s113, %s127
    %p129 = scmp.eq.s32.totalorder %s19, 0
    %p130 = por %p128, %p129
    %s132 = sadd.s32 %s131, 1
    %p135 = scmp.eq.s32.totalorder %s13, 1
    %p136 = scmp.ne.s32.totalorder %s131, %s133
    %p137 = scmp.eq.s32.totalorder %s13, 0
    %p138 = por %p136, %p137
    %p139 = scmp.ne.s32.totalorder %s131, %s133
    %p140 = scmp.eq.s32.totalorder %s18, 1
    %p141 = por %p139, %p140
    %p142 = scmp.ne.s32.totalorder %s133, %s134
    %p143 = scmp.eq.s32.totalorder %s18, 0
    %p144 = por %p142, %p143
    %p145 = scmp.ne.s32.totalorder %s133, %s134
    %p146 = scmp.eq.s32.totalorder %s19, 1
    %p147 = por %p145, %p146
    %p149 = scmp.ne.s32.totalorder %s134, %s148
    %p150 = scmp.eq.s32.totalorder %s19, 0
    %p151 = por %p149, %p150
    %s153 = sadd.s32 %s152, 1
    %p156 = scmp.eq.s32.totalorder %s13, 1
    %p157 = scmp.ne.s32.totalorder %s152, %s154
    %p158 = scmp.eq.s32.totalorder %s13, 0
    %p159 = por %p157, %p158
    %p160 = scmp.ne.s32.totalorder %s152, %s154
    %p161 = scmp.eq.s32.totalorder %s18, 1
    %p162 = por %p160, %p161
    %p163 = scmp.ne.s32.totalorder %s154, %s155
    %p164 = scmp.eq.s32.totalorder %s18, 0
    %p165 = por %p163, %p164
    %p166 = scmp.ne.s32.totalorder %s154, %s155
    %p167 = scmp.eq.s32.totalorder %s19, 1
    %p168 = por %p166, %p167
    %p170 = scmp.ne.s32.totalorder %s155, %s169
    %p171 = scmp.eq.s32.totalorder %s19, 0
    %p172 = por %p170, %p171
    %s173 = ssub.s32 %s13, %s20
    %p174 = scmp.eq.s32.totalorder %s173, 0
    %s176 = sadd.s32 %s175, 1
    %s177 = scalar_select %p174, %s175, %s176
    %p180 = pneg %p174
    %p181 = scmp.eq.s32.totalorder %s13, 1
    %p182 = por %p180, %p181
    %p183 = scmp.ne.s32.totalorder %s175, %s178
    %p184 = scmp.eq.s32.totalorder %s13, 0
    %p185 = por %p183, %p184
    %p186 = scmp.ne.s32.totalorder %s175, %s178
    %p187 = scmp.eq.s32.totalorder %s18, 1
    %p188 = por %p186, %p187
    %p189 = scmp.ne.s32.totalorder %s178, %s179
    %p190 = scmp.eq.s32.totalorder %s18, 0
    %p191 = por %p189, %p190
    %p192 = scmp.ne.s32.totalorder %s178, %s179
    %p193 = scmp.eq.s32.totalorder %s19, 1
    %p194 = por %p192, %p193
    %p196 = scmp.ne.s32.totalorder %s179, %s195
    %p197 = scmp.eq.s32.totalorder %s19, 0
    %p198 = por %p196, %p197
    %p199 = scmp.le.s32.totalorder 1, %s13
    %p200 = scmp.lt.s32.totalorder %s13, 3
    %p201 = pnand %p199, %p200
    %p202 = pneg %p201
    // Predicated region
    $region9: #{resnet_forward.4} parent=5 // pred_check
      _
    $region10: #{resnet_forward.4} parent=5 // pred_check_branch
      %204 = sbr.rel (%p201) target = $region12
    $region11: #{resnet_forward.4} parent=5 // pred_region
      %s205 = ssub.s32 %s13, 1
      // Predicated region
      $region13: #{resnet_forward.4} parent=11 // pred_check
        %p206 = pneg %p60
      $region14: #{resnet_forward.4} parent=11 // pred_check_branch
        %208 = sbr.rel (%p206) target = $region16
      $region15: #{resnet_forward.4} parent=11 // pred_region
        _
      $region16: #{resnet_forward.4} parent=11 // pred_fallthru
        _
      // Predicated region
      $region17: #{resnet_forward.4} parent=11 // pred_check
        %p209 = pneg %p81
      $region18: #{resnet_forward.4} parent=11 // pred_check_branch
        %211 = sbr.rel (%p209) target = $region20
      $region19: #{resnet_forward.4} parent=11 // pred_region
        _
      $region20: #{resnet_forward.4} parent=11 // pred_fallthru
        _
      // Predicated region
      $region21: #{resnet_forward.4} parent=11 // pred_check
        %p212 = pneg %p102
      $region22: #{resnet_forward.4} parent=11 // pred_check_branch
        %214 = sbr.rel (%p212) target = $region24
      $region23: #{resnet_forward.4} parent=11 // pred_region
        _
      $region24: #{resnet_forward.4} parent=11 // pred_fallthru
        _
      // Predicated region
      $region25: #{resnet_forward.4} parent=11 // pred_check
        %p215 = pneg %p123
      $region26: #{resnet_forward.4} parent=11 // pred_check_branch
        %217 = sbr.rel (%p215) target = $region28
      $region27: #{resnet_forward.4} parent=11 // pred_region
        _
      $region28: #{resnet_forward.4} parent=11 // pred_fallthru
        _
      // Predicated region
      $region29: #{resnet_forward.4} parent=11 // pred_check
        %p218 = pneg %p144
      $region30: #{resnet_forward.4} parent=11 // pred_check_branch
        %220 = sbr.rel (%p218) target = $region32
      $region31: #{resnet_forward.4} parent=11 // pred_region
        _
      $region32: #{resnet_forward.4} parent=11 // pred_fallthru
        _
      // Predicated region
      $region33: #{resnet_forward.4} parent=11 // pred_check
        %p221 = pneg %p165
      $region34: #{resnet_forward.4} parent=11 // pred_check_branch
        %223 = sbr.rel (%p221) target = $region36
      $region35: #{resnet_forward.4} parent=11 // pred_region
        _
      $region36: #{resnet_forward.4} parent=11 // pred_fallthru
        _
    $region12: #{resnet_forward.4} parent=5 // pred_fallthru
      _
    %p224 = scmp.lt.s32.totalorder %s13, 2
    // Predicated region
    $region37: #{resnet_forward.4} parent=5 // pred_check
      %p225 = pneg %p224
    $region38: #{resnet_forward.4} parent=5 // pred_check_branch
      %227 = sbr.rel (%p225) target = $region40
    $region39: #{resnet_forward.4} parent=5 // pred_region
      // Predicated region
      $region41: #{resnet_forward.4} parent=39 // pred_check
        %p228 = pneg %p33
      $region42: #{resnet_forward.4} parent=39 // pred_check_branch
        %230 = sbr.rel (%p228) target = $region44
      $region43: #{resnet_forward.4} parent=39 // pred_region
        %p231 = scmp.lt.s32.totalorder %s13, 1
        %s232 = scalar_select %p231, %s13, 1
        %s233 = smul.addr %s232, 2
        %s234 = smul.addr %s233, 8
        %s235 = scalar_lea.vmem %s0, %s234
      $region44: #{resnet_forward.4} parent=39 // pred_fallthru
        _
    $region40: #{resnet_forward.4} parent=5 // pred_fallthru
      _
    %p236 = scmp.le.s32.totalorder 1, %s13
    %p237 = scmp.lt.s32.totalorder %s13, 3
    %p238 = pnand %p236, %p237
    %p239 = pneg %p238
    // Predicated region
    $region45: #{resnet_forward.4} parent=5 // pred_check
      _
    $region46: #{resnet_forward.4} parent=5 // pred_check_branch
      %241 = sbr.rel (%p238) target = $region48
    $region47: #{resnet_forward.4} parent=5 // pred_region
      %s242 = ssub.s32 %s13, 1
      %p243 = scmp.lt.s32.totalorder %s18, 1
      %s244 = scalar_select %p243, %s18, 1
      %s245 = smul.addr %s244, 2
      %s246 = smul.addr %s245, 8
      %s247 = scalar_lea.vmem %s0, %s246
      %p248 = pneg %p39
      %p249 = pneg %p36
      %p250 = pneg %p60
      %p251 = pneg %p57
      %p252 = pneg %p81
      %p253 = pneg %p78
      %p254 = pneg %p102
      %p255 = pneg %p99
      %p256 = pneg %p123
      %p257 = pneg %p120
      %p258 = pneg %p144
      %p259 = pneg %p141
      %p260 = pneg %p165
      %p261 = pneg %p162
      %p262 = pneg %p191
      %p263 = pneg %p188
      %p264 = scmp.lt.s32.totalorder %s18, 1
      %s265 = scalar_select %p264, %s18, 1
      %s266 = smul.addr %s265, 2
      %s267 = smul.addr %s266, 8
      %s268 = scalar_lea.vmem %s7, %s267
      %p269 = scmp.lt.s32.totalorder %s18, 1
      %s270 = scalar_select %p269, %s18, 1
      %s271 = smul.addr %s270, 2
      %s272 = smul.addr %s271, 8
      %s273 = scalar_lea.vmem %s0, %s272
      %p274 = scmp.lt.s32.totalorder %s18, 1
      %s275 = scalar_select %p274, %s18, 1
      %s276 = smul.addr %s275, 2
      %s277 = smul.addr %s276, 8
      %s278 = scalar_lea.vmem %s7, %s277
      %v279 = vld [vmem:[%s273] sm:$0xff]
      %v280 = vld [vmem:[%s273 + $0x8] sm:$0xff]
      %v281 = vld [vmem:[%s1] sm:$0xff]
      %s282 = scalar_lea.vmem %s1, 8
      %v283 = vld [vmem:[%s282] sm:$0xff]
      %vm286 = vcmask 1046528
      %v287 = vrot.slane %v279, 1
      %v288 = vrot.slane %v280, 1
      %v289 = vsel %vm286, %v287, %v288
      %vm290 = vcmask 64512
      %v291 = vsel %vm290, %v289, 0
      %v293 = vsel %vm290, %v288, 0
      %295 = vmatprep.subr.mxu0 0.0
      %296 = vmatpush1.msra.mxu0 0.0
      %297 = vmatprep.subr.mxu0 0.0
      %298 = vmatpush1.msra.mxu0 0.0
      %299 = vmatprep.subr.mxu0 0.0
      %300 = vmatpush1.msra.mxu0 0.0
      %301 = vmatprep.subr.mxu0 0.0
      %302 = vmatpush1.msra.mxu0 0.0
      %303 = vmatprep.subr.mxu0 0.0
      %304 = vmatpush1.msra.mxu0 0.0
      %305 = vmatprep.subr.mxu0 0.0
      %306 = vmatpush1.msra.mxu0 0.0
      %307 = vmatprep.subr.mxu0 0.0
      %308 = vmatpush1.msra.mxu0 0.0
      %309 = vmatprep.subr.mxu0 0.0
      %310 = vmatpush1.msra.mxu0 0.0
      %311 = vmatprep.subr.mxu0 0.0
      %312 = vmatpush1.msra.mxu0 0.0
      %313 = vmatprep.subr.mxu0 0.0
      %314 = vmatpush1.msra.mxu0 0.0
      %315 = vmatprep.subr.mxu0 0.0
      %316 = vmatpush1.msra.mxu0 0.0
      %317 = vmatprep.subr.mxu0 0.0
      %318 = vmatpush1.msra.mxu0 0.0
      %319 = vmatprep.subr.mxu0 0.0
      %320 = vmatpush1.msra.mxu0 0.0
      %321 = vmatprep.subr.mxu0 0.0
      %322 = vmatpush1.msra.mxu0 0.0
      %323 = vmatprep.subr.mxu0 0.0
      %324 = vmatpush1.msra.mxu0 0.0
      %325 = vmatprep.subr.mxu0 0.0
      %326 = vmatpush1.msra.mxu0 %v283
      %327 = vmatprep.subr.mxu0 0.0
      %328 = vmatpush2.msra.mxu0 0.0
      %329 = vmatprep.subr.mxu0 0.0
      %330 = vmatpush2.msra.mxu0 0.0
      %331 = vmatprep.subr.mxu0 0.0
      %332 = vmatpush2.msra.mxu0 0.0
      %333 = vmatprep.subr.mxu0 0.0
      %334 = vmatpush2.msra.mxu0 0.0
      %335 = vmatprep.subr.mxu0 0.0
      %336 = vmatpush2.msra.mxu0 0.0
      %337 = vmatprep.subr.mxu0 0.0
      %338 = vmatpush2.msra.mxu0 0.0
      %339 = vmatprep.subr.mxu0 0.0
      %340 = vmatpush2.msra.mxu0 0.0
      %341 = vmatprep.subr.mxu0 0.0
      %342 = vmatpush2.msra.mxu0 0.0
      %343 = vmatprep.subr.mxu0 0.0
      %344 = vmatpush2.msra.mxu0 0.0
      %345 = vmatprep.subr.mxu0 0.0
      %346 = vmatpush2.msra.mxu0 0.0
      %347 = vmatprep.subr.mxu0 0.0
      %348 = vmatpush2.msra.mxu0 0.0
      %349 = vmatprep.subr.mxu0 0.0
      %350 = vmatpush2.msra.mxu0 0.0
      %351 = vmatprep.subr.mxu0 0.0
      %352 = vmatpush2.msra.mxu0 0.0
      %353 = vmatprep.subr.mxu0 0.0
      %354 = vmatpush2.msra.mxu0 0.0
      %355 = vmatprep.subr.mxu0 0.0
      %356 = vmatpush2.msra.mxu0 0.0
      %357 = vmatprep.subr.mxu0 0.0
      %358 = vmatpush2.msra.mxu0 0.0
      %359 = vmatprep.mubr.f32.mxu0 0.0
      %360 = vmatmul.mubr.f32.gmra.mxu0 %v291
      %v361 = vpop.f32.mrf.mxu0
      %v362 = vadd.f32 0.0, %v361
      %v363 = vpop.f32.mrf.mxu0
      %364 = vmatprep.mubr.f32.mxu0 0.0
      %365 = vmatmul.mubr.f32.gmra.mxu0 %v293
      %v366 = vpop.f32.mrf.mxu0
      %v367 = vadd.f32 0.0, %v366
      %v368 = vpop.f32.mrf.mxu0
      %369 = vdwg.mxu0
      %v370 = vsel %vm290, %v279, 0
      %v372 = vsel %vm290, %v280, 0
      %374 = vmatprep.subr.mxu0 0.0
      %375 = vmatpush1.msra.mxu0 0.0
      %376 = vmatprep.subr.mxu0 0.0
      %377 = vmatpush1.msra.mxu0 0.0
      %378 = vmatprep.subr.mxu0 0.0
      %379 = vmatpush1.msra.mxu0 0.0
      %380 = vmatprep.subr.mxu0 0.0
      %381 = vmatpush1.msra.mxu0 0.0
      %382 = vmatprep.subr.mxu0 0.0
      %383 = vmatpush1.msra.mxu0 0.0
      %384 = vmatprep.subr.mxu0 0.0
      %385 = vmatpush1.msra.mxu0 0.0
      %386 = vmatprep.subr.mxu0 0.0
      %387 = vmatpush1.msra.mxu0 0.0
      %388 = vmatprep.subr.mxu0 0.0
      %389 = vmatpush1.msra.mxu0 0.0
      %390 = vmatprep.subr.mxu0 0.0
      %391 = vmatpush1.msra.mxu0 0.0
      %392 = vmatprep.subr.mxu0 0.0
      %393 = vmatpush1.msra.mxu0 0.0
      %394 = vmatprep.subr.mxu0 0.0
      %395 = vmatpush1.msra.mxu0 0.0
      %396 = vmatprep.subr.mxu0 0.0
      %397 = vmatpush1.msra.mxu0 0.0
      %398 = vmatprep.subr.mxu0 0.0
      %399 = vmatpush1.msra.mxu0 0.0
      %400 = vmatprep.subr.mxu0 0.0
      %401 = vmatpush1.msra.mxu0 0.0
      %402 = vmatprep.subr.mxu0 0.0
      %403 = vmatpush1.msra.mxu0 0.0
      %404 = vmatprep.subr.mxu0 0.0
      %405 = vmatpush1.msra.mxu0 %v281
      %406 = vmatprep.subr.mxu0 0.0
      %407 = vmatpush2.msra.mxu0 0.0
      %408 = vmatprep.subr.mxu0 0.0
      %409 = vmatpush2.msra.mxu0 0.0
      %410 = vmatprep.subr.mxu0 0.0
      %411 = vmatpush2.msra.mxu0 0.0
      %412 = vmatprep.subr.mxu0 0.0
      %413 = vmatpush2.msra.mxu0 0.0
      %414 = vmatprep.subr.mxu0 0.0
      %415 = vmatpush2.msra.mxu0 0.0
      %416 = vmatprep.subr.mxu0 0.0
      %417 = vmatpush2.msra.mxu0 0.0
      %418 = vmatprep.subr.mxu0 0.0
      %419 = vmatpush2.msra.mxu0 0.0
      %420 = vmatprep.subr.mxu0 0.0
      %421 = vmatpush2.msra.mxu0 0.0
      %422 = vmatprep.subr.mxu0 0.0
      %423 = vmatpush2.msra.mxu0 0.0
      %424 = vmatprep.subr.mxu0 0.0
      %425 = vmatpush2.msra.mxu0 0.0
      %426 = vmatprep.subr.mxu0 0.0
      %427 = vmatpush2.msra.mxu0 0.0
      %428 = vmatprep.subr.mxu0 0.0
      %429 = vmatpush2.msra.mxu0 0.0
      %430 = vmatprep.subr.mxu0 0.0
      %431 = vmatpush2.msra.mxu0 0.0
      %432 = vmatprep.subr.mxu0 0.0
      %433 = vmatpush2.msra.mxu0 0.0
      %434 = vmatprep.subr.mxu0 0.0
      %435 = vmatpush2.msra.mxu0 0.0
      %436 = vmatprep.subr.mxu0 0.0
      %437 = vmatpush2.msra.mxu0 0.0
      %438 = vmatprep.mubr.f32.mxu0 0.0
      %439 = vmatmul.mubr.f32.gmra.mxu0 %v370
      %v440 = vpop.f32.mrf.mxu0
      %v441 = vadd.f32 %v362, %v440
      %v442 = vpop.f32.mrf.mxu0
      %443 = vmatprep.mubr.f32.mxu0 0.0
      %444 = vmatmul.mubr.f32.gmra.mxu0 %v372
      %v445 = vpop.f32.mrf.mxu0
      %v446 = vadd.f32 %v367, %v445
      %v447 = vpop.f32.mrf.mxu0
      %448 = vdwg.mxu0
      %s449 = scalar_lea.vmem %s1, 16
      %v450 = vld [vmem:[%s449] sm:$0xff]
      %vm451 = vcmask 1045504
      %v452 = vrot.slane %v279, 2
      %v453 = vrot.slane %v280, 2
      %v454 = vsel %vm451, %v452, %v453
      %v455 = vsel %vm290, %v454, 0
      %v457 = vsel %vm290, %v453, 0
      %459 = vmatprep.subr.mxu0 0.0
      %460 = vmatpush1.msra.mxu0 0.0
      %461 = vmatprep.subr.mxu0 0.0
      %462 = vmatpush1.msra.mxu0 0.0
      %463 = vmatprep.subr.mxu0 0.0
      %464 = vmatpush1.msra.mxu0 0.0
      %465 = vmatprep.subr.mxu0 0.0
      %466 = vmatpush1.msra.mxu0 0.0
      %467 = vmatprep.subr.mxu0 0.0
      %468 = vmatpush1.msra.mxu0 0.0
      %469 = vmatprep.subr.mxu0 0.0
      %470 = vmatpush1.msra.mxu0 0.0
      %471 = vmatprep.subr.mxu0 0.0
      %472 = vmatpush1.msra.mxu0 0.0
      %473 = vmatprep.subr.mxu0 0.0
      %474 = vmatpush1.msra.mxu0 0.0
      %475 = vmatprep.subr.mxu0 0.0
      %476 = vmatpush1.msra.mxu0 0.0
      %477 = vmatprep.subr.mxu0 0.0
      %478 = vmatpush1.msra.mxu0 0.0
      %479 = vmatprep.subr.mxu0 0.0
      %480 = vmatpush1.msra.mxu0 0.0
      %481 = vmatprep.subr.mxu0 0.0
      %482 = vmatpush1.msra.mxu0 0.0
      %483 = vmatprep.subr.mxu0 0.0
      %484 = vmatpush1.msra.mxu0 0.0
      %485 = vmatprep.subr.mxu0 0.0
      %486 = vmatpush1.msra.mxu0 0.0
      %487 = vmatprep.subr.mxu0 0.0
      %488 = vmatpush1.msra.mxu0 0.0
      %489 = vmatprep.subr.mxu0 0.0
      %490 = vmatpush1.msra.mxu0 %v450
      %491 = vmatprep.subr.mxu0 0.0
      %492 = vmatpush2.msra.mxu0 0.0
      %493 = vmatprep.subr.mxu0 0.0
      %494 = vmatpush2.msra.mxu0 0.0
      %495 = vmatprep.subr.mxu0 0.0
      %496 = vmatpush2.msra.mxu0 0.0
      %497 = vmatprep.subr.mxu0 0.0
      %498 = vmatpush2.msra.mxu0 0.0
      %499 = vmatprep.subr.mxu0 0.0
      %500 = vmatpush2.msra.mxu0 0.0
      %501 = vmatprep.subr.mxu0 0.0
      %502 = vmatpush2.msra.mxu0 0.0
      %503 = vmatprep.subr.mxu0 0.0
      %504 = vmatpush2.msra.mxu0 0.0
      %505 = vmatprep.subr.mxu0 0.0
      %506 = vmatpush2.msra.mxu0 0.0
      %507 = vmatprep.subr.mxu0 0.0
      %508 = vmatpush2.msra.mxu0 0.0
      %509 = vmatprep.subr.mxu0 0.0
      %510 = vmatpush2.msra.mxu0 0.0
      %511 = vmatprep.subr.mxu0 0.0
      %512 = vmatpush2.msra.mxu0 0.0
      %513 = vmatprep.subr.mxu0 0.0
      %514 = vmatpush2.msra.mxu0 0.0
      %515 = vmatprep.subr.mxu0 0.0
      %516 = vmatpush2.msra.mxu0 0.0
      %517 = vmatprep.subr.mxu0 0.0
      %518 = vmatpush2.msra.mxu0 0.0
      %519 = vmatprep.subr.mxu0 0.0
      %520 = vmatpush2.msra.mxu0 0.0
      %521 = vmatprep.subr.mxu0 0.0
      %522 = vmatpush2.msra.mxu0 0.0
      %523 = vmatprep.mubr.f32.mxu0 0.0
      %524 = vmatmul.mubr.f32.gmra.mxu0 %v455
      %v525 = vpop.f32.mrf.mxu0
      %v526 = vadd.f32 0.0, %v525
      %v527 = vpop.f32.mrf.mxu0
      %528 = vmatprep.mubr.f32.mxu0 0.0
      %529 = vmatmul.mubr.f32.gmra.mxu0 %v457
      %v530 = vpop.f32.mrf.mxu0
      %v531 = vadd.f32 0.0, %v530
      %v532 = vpop.f32.mrf.mxu0
      %533 = vdwg.mxu0
      %v534 = vadd.f32 %v441, %v526
      %v535 = vadd.f32 %v446, %v531
      %v536 = vld [vmem:[%s2] sm:$0x1]
      %v538 = vlaneseq
      %v539 = vshrl.u32 %v538, 7
      %v540 = vsub.s32 0, %v539
      %v541 = vrot.slane %v536, %v540
      %v543 = vadd.f32 %v534, %v541
      %v544 = vadd.f32 %v535, %v541
      %v545 = vmax.f32 %v543, 0.0
      %v546 = vmax.f32 %v544, 0.0
      %v547 = vld [vmem:[%s3] sm:$0xff]
      %v548 = vld [vmem:[%s3 + $0x8] sm:$0xff]
      %s549 = scalar_lea.vmem %s3, 16
      %v550 = vld [vmem:[%s549] sm:$0xff]
      %v551 = vld [vmem:[%s549 + $0x8] sm:$0xff]
      %v554 = vrot.slane %v545, 1
      %v555 = vrot.slane %v546, 1
      %v556 = vsel %vm286, %v554, %v555
      %vm557 = vcmask 130048
      %v558 = vsel %vm557, %v556, 0
      %v560 = vsel %vm557, %v555, 0
      %562 = vmatprep.subr.mxu0 0.0
      %563 = vmatpush1.msra.mxu0 0.0
      %564 = vmatprep.subr.mxu0 0.0
      %565 = vmatpush1.msra.mxu0 0.0
      %566 = vmatprep.subr.mxu0 0.0
      %567 = vmatpush1.msra.mxu0 0.0
      %568 = vmatprep.subr.mxu0 0.0
      %569 = vmatpush1.msra.mxu0 0.0
      %570 = vmatprep.subr.mxu0 0.0
      %571 = vmatpush1.msra.mxu0 0.0
      %572 = vmatprep.subr.mxu0 0.0
      %573 = vmatpush1.msra.mxu0 0.0
      %574 = vmatprep.subr.mxu0 0.0
      %575 = vmatpush1.msra.mxu0 0.0
      %576 = vmatprep.subr.mxu0 0.0
      %577 = vmatpush1.msra.mxu0 0.0
      %578 = vmatprep.subr.mxu0 0.0
      %579 = vmatpush1.msra.mxu0 0.0
      %580 = vmatprep.subr.mxu0 0.0
      %581 = vmatpush1.msra.mxu0 0.0
      %582 = vmatprep.subr.mxu0 0.0
      %583 = vmatpush1.msra.mxu0 0.0
      %584 = vmatprep.subr.mxu0 0.0
      %585 = vmatpush1.msra.mxu0 0.0
      %586 = vmatprep.subr.mxu0 0.0
      %587 = vmatpush1.msra.mxu0 0.0
      %588 = vmatprep.subr.mxu0 0.0
      %589 = vmatpush1.msra.mxu0 0.0
      %590 = vmatprep.subr.mxu0 0.0
      %591 = vmatpush1.msra.mxu0 %v551
      %592 = vmatprep.subr.mxu0 0.0
      %593 = vmatpush1.msra.mxu0 %v550
      %594 = vmatprep.subr.mxu0 0.0
      %595 = vmatpush2.msra.mxu0 0.0
      %596 = vmatprep.subr.mxu0 0.0
      %597 = vmatpush2.msra.mxu0 0.0
      %598 = vmatprep.subr.mxu0 0.0
      %599 = vmatpush2.msra.mxu0 0.0
      %600 = vmatprep.subr.mxu0 0.0
      %601 = vmatpush2.msra.mxu0 0.0
      %602 = vmatprep.subr.mxu0 0.0
      %603 = vmatpush2.msra.mxu0 0.0
      %604 = vmatprep.subr.mxu0 0.0
      %605 = vmatpush2.msra.mxu0 0.0
      %606 = vmatprep.subr.mxu0 0.0
      %607 = vmatpush2.msra.mxu0 0.0
      %608 = vmatprep.subr.mxu0 0.0
      %609 = vmatpush2.msra.mxu0 0.0
      %610 = vmatprep.subr.mxu0 0.0
      %611 = vmatpush2.msra.mxu0 0.0
      %612 = vmatprep.subr.mxu0 0.0
      %613 = vmatpush2.msra.mxu0 0.0
      %614 = vmatprep.subr.mxu0 0.0
      %615 = vmatpush2.msra.mxu0 0.0
      %616 = vmatprep.subr.mxu0 0.0
      %617 = vmatpush2.msra.mxu0 0.0
      %618 = vmatprep.subr.mxu0 0.0
      %619 = vmatpush2.msra.mxu0 0.0
      %620 = vmatprep.subr.mxu0 0.0
      %621 = vmatpush2.msra.mxu0 0.0
      %622 = vmatprep.subr.mxu0 0.0
      %623 = vmatpush2.msra.mxu0 0.0
      %624 = vmatprep.subr.mxu0 0.0
      %625 = vmatpush2.msra.mxu0 0.0
      %626 = vmatprep.mubr.f32.mxu0 0.0
      %627 = vmatmul.mubr.f32.gmra.mxu0 %v558
      %v628 = vpop.f32.mrf.mxu0
      %v629 = vadd.f32 0.0, %v628
      %v630 = vpop.f32.mrf.mxu0
      %631 = vmatprep.mubr.f32.mxu0 0.0
      %632 = vmatmul.mubr.f32.gmra.mxu0 %v560
      %v633 = vpop.f32.mrf.mxu0
      %v634 = vadd.f32 0.0, %v633
      %v635 = vpop.f32.mrf.mxu0
      %636 = vdwg.mxu0
      %v637 = vsel %vm557, %v545, 0
      %v639 = vsel %vm557, %v546, 0
      %641 = vmatprep.subr.mxu0 0.0
      %642 = vmatpush1.msra.mxu0 0.0
      %643 = vmatprep.subr.mxu0 0.0
      %644 = vmatpush1.msra.mxu0 0.0
      %645 = vmatprep.subr.mxu0 0.0
      %646 = vmatpush1.msra.mxu0 0.0
      %647 = vmatprep.subr.mxu0 0.0
      %648 = vmatpush1.msra.mxu0 0.0
      %649 = vmatprep.subr.mxu0 0.0
      %650 = vmatpush1.msra.mxu0 0.0
      %651 = vmatprep.subr.mxu0 0.0
      %652 = vmatpush1.msra.mxu0 0.0
      %653 = vmatprep.subr.mxu0 0.0
      %654 = vmatpush1.msra.mxu0 0.0
      %655 = vmatprep.subr.mxu0 0.0
      %656 = vmatpush1.msra.mxu0 0.0
      %657 = vmatprep.subr.mxu0 0.0
      %658 = vmatpush1.msra.mxu0 0.0
      %659 = vmatprep.subr.mxu0 0.0
      %660 = vmatpush1.msra.mxu0 0.0
      %661 = vmatprep.subr.mxu0 0.0
      %662 = vmatpush1.msra.mxu0 0.0
      %663 = vmatprep.subr.mxu0 0.0
      %664 = vmatpush1.msra.mxu0 0.0
      %665 = vmatprep.subr.mxu0 0.0
      %666 = vmatpush1.msra.mxu0 0.0
      %667 = vmatprep.subr.mxu0 0.0
      %668 = vmatpush1.msra.mxu0 0.0
      %669 = vmatprep.subr.mxu0 0.0
      %670 = vmatpush1.msra.mxu0 %v548
      %671 = vmatprep.subr.mxu0 0.0
      %672 = vmatpush1.msra.mxu0 %v547
      %673 = vmatprep.subr.mxu0 0.0
      %674 = vmatpush2.msra.mxu0 0.0
      %675 = vmatprep.subr.mxu0 0.0
      %676 = vmatpush2.msra.mxu0 0.0
      %677 = vmatprep.subr.mxu0 0.0
      %678 = vmatpush2.msra.mxu0 0.0
      %679 = vmatprep.subr.mxu0 0.0
      %680 = vmatpush2.msra.mxu0 0.0
      %681 = vmatprep.subr.mxu0 0.0
      %682 = vmatpush2.msra.mxu0 0.0
      %683 = vmatprep.subr.mxu0 0.0
      %684 = vmatpush2.msra.mxu0 0.0
      %685 = vmatprep.subr.mxu0 0.0
      %686 = vmatpush2.msra.mxu0 0.0
      %687 = vmatprep.subr.mxu0 0.0
      %688 = vmatpush2.msra.mxu0 0.0
      %689 = vmatprep.subr.mxu0 0.0
      %690 = vmatpush2.msra.mxu0 0.0
      %691 = vmatprep.subr.mxu0 0.0
      %692 = vmatpush2.msra.mxu0 0.0
      %693 = vmatprep.subr.mxu0 0.0
      %694 = vmatpush2.msra.mxu0 0.0
      %695 = vmatprep.subr.mxu0 0.0
      %696 = vmatpush2.msra.mxu0 0.0
      %697 = vmatprep.subr.mxu0 0.0
      %698 = vmatpush2.msra.mxu0 0.0
      %699 = vmatprep.subr.mxu0 0.0
      %700 = vmatpush2.msra.mxu0 0.0
      %701 = vmatprep.subr.mxu0 0.0
      %702 = vmatpush2.msra.mxu0 0.0
      %703 = vmatprep.subr.mxu0 0.0
      %704 = vmatpush2.msra.mxu0 0.0
      %705 = vmatprep.mubr.f32.mxu0 0.0
      %706 = vmatmul.mubr.f32.gmra.mxu0 %v637
      %v707 = vpop.f32.mrf.mxu0
      %v708 = vadd.f32 %v629, %v707
      %v709 = vpop.f32.mrf.mxu0
      %710 = vmatprep.mubr.f32.mxu0 0.0
      %711 = vmatmul.mubr.f32.gmra.mxu0 %v639
      %v712 = vpop.f32.mrf.mxu0
      %v713 = vadd.f32 %v634, %v712
      %v714 = vpop.f32.mrf.mxu0
      %715 = vdwg.mxu0
      %s716 = scalar_lea.vmem %s3, 32
      %v717 = vld [vmem:[%s716] sm:$0xff]
      %v718 = vld [vmem:[%s716 + $0x8] sm:$0xff]
      %v719 = vrot.slane %v545, 2
      %v720 = vrot.slane %v546, 2
      %v721 = vsel %vm451, %v719, %v720
      %v722 = vsel %vm557, %v721, 0
      %v724 = vsel %vm557, %v720, 0
      %726 = vmatprep.subr.mxu0 0.0
      %727 = vmatpush1.msra.mxu0 0.0
      %728 = vmatprep.subr.mxu0 0.0
      %729 = vmatpush1.msra.mxu0 0.0
      %730 = vmatprep.subr.mxu0 0.0
      %731 = vmatpush1.msra.mxu0 0.0
      %732 = vmatprep.subr.mxu0 0.0
      %733 = vmatpush1.msra.mxu0 0.0
      %734 = vmatprep.subr.mxu0 0.0
      %735 = vmatpush1.msra.mxu0 0.0
      %736 = vmatprep.subr.mxu0 0.0
      %737 = vmatpush1.msra.mxu0 0.0
      %738 = vmatprep.subr.mxu0 0.0
      %739 = vmatpush1.msra.mxu0 0.0
      %740 = vmatprep.subr.mxu0 0.0
      %741 = vmatpush1.msra.mxu0 0.0
      %742 = vmatprep.subr.mxu0 0.0
      %743 = vmatpush1.msra.mxu0 0.0
      %744 = vmatprep.subr.mxu0 0.0
      %745 = vmatpush1.msra.mxu0 0.0
      %746 = vmatprep.subr.mxu0 0.0
      %747 = vmatpush1.msra.mxu0 0.0
      %748 = vmatprep.subr.mxu0 0.0
      %749 = vmatpush1.msra.mxu0 0.0
      %750 = vmatprep.subr.mxu0 0.0
      %751 = vmatpush1.msra.mxu0 0.0
      %752 = vmatprep.subr.mxu0 0.0
      %753 = vmatpush1.msra.mxu0 0.0
      %754 = vmatprep.subr.mxu0 0.0
      %755 = vmatpush1.msra.mxu0 %v718
      %756 = vmatprep.subr.mxu0 0.0
      %757 = vmatpush1.msra.mxu0 %v717
      %758 = vmatprep.subr.mxu0 0.0
      %759 = vmatpush2.msra.mxu0 0.0
      %760 = vmatprep.subr.mxu0 0.0
      %761 = vmatpush2.msra.mxu0 0.0
      %762 = vmatprep.subr.mxu0 0.0
      %763 = vmatpush2.msra.mxu0 0.0
      %764 = vmatprep.subr.mxu0 0.0
      %765 = vmatpush2.msra.mxu0 0.0
      %766 = vmatprep.subr.mxu0 0.0
      %767 = vmatpush2.msra.mxu0 0.0
      %768 = vmatprep.subr.mxu0 0.0
      %769 = vmatpush2.msra.mxu0 0.0
      %770 = vmatprep.subr.mxu0 0.0
      %771 = vmatpush2.msra.mxu0 0.0
      %772 = vmatprep.subr.mxu0 0.0
      %773 = vmatpush2.msra.mxu0 0.0
      %774 = vmatprep.subr.mxu0 0.0
      %775 = vmatpush2.msra.mxu0 0.0
      %776 = vmatprep.subr.mxu0 0.0
      %777 = vmatpush2.msra.mxu0 0.0
      %778 = vmatprep.subr.mxu0 0.0
      %779 = vmatpush2.msra.mxu0 0.0
      %780 = vmatprep.subr.mxu0 0.0
      %781 = vmatpush2.msra.mxu0 0.0
      %782 = vmatprep.subr.mxu0 0.0
      %783 = vmatpush2.msra.mxu0 0.0
      %784 = vmatprep.subr.mxu0 0.0
      %785 = vmatpush2.msra.mxu0 0.0
      %786 = vmatprep.subr.mxu0 0.0
      %787 = vmatpush2.msra.mxu0 0.0
      %788 = vmatprep.subr.mxu0 0.0
      %789 = vmatpush2.msra.mxu0 0.0
      %790 = vmatprep.mubr.f32.mxu0 0.0
      %791 = vmatmul.mubr.f32.gmra.mxu0 %v722
      %v792 = vpop.f32.mrf.mxu0
      %v793 = vadd.f32 0.0, %v792
      %v794 = vpop.f32.mrf.mxu0
      %795 = vmatprep.mubr.f32.mxu0 0.0
      %796 = vmatmul.mubr.f32.gmra.mxu0 %v724
      %v797 = vpop.f32.mrf.mxu0
      %v798 = vadd.f32 0.0, %v797
      %v799 = vpop.f32.mrf.mxu0
      %800 = vdwg.mxu0
      %v801 = vadd.f32 %v708, %v793
      %v802 = vadd.f32 %v713, %v798
      %s803 = scalar_lea.vmem %s3, 48
      %v804 = vld [vmem:[%s803] sm:$0xff]
      %v805 = vld [vmem:[%s803 + $0x8] sm:$0xff]
      %vm806 = vcmask 1044480
      %v807 = vrot.slane %v545, 3
      %v808 = vrot.slane %v546, 3
      %v809 = vsel %vm806, %v807, %v808
      %v810 = vsel %vm557, %v809, 0
      %v812 = vsel %vm557, %v808, 0
      %814 = vmatprep.subr.mxu0 0.0
      %815 = vmatpush1.msra.mxu0 0.0
      %816 = vmatprep.subr.mxu0 0.0
      %817 = vmatpush1.msra.mxu0 0.0
      %818 = vmatprep.subr.mxu0 0.0
      %819 = vmatpush1.msra.mxu0 0.0
      %820 = vmatprep.subr.mxu0 0.0
      %821 = vmatpush1.msra.mxu0 0.0
      %822 = vmatprep.subr.mxu0 0.0
      %823 = vmatpush1.msra.mxu0 0.0
      %824 = vmatprep.subr.mxu0 0.0
      %825 = vmatpush1.msra.mxu0 0.0
      %826 = vmatprep.subr.mxu0 0.0
      %827 = vmatpush1.msra.mxu0 0.0
      %828 = vmatprep.subr.mxu0 0.0
      %829 = vmatpush1.msra.mxu0 0.0
      %830 = vmatprep.subr.mxu0 0.0
      %831 = vmatpush1.msra.mxu0 0.0
      %832 = vmatprep.subr.mxu0 0.0
      %833 = vmatpush1.msra.mxu0 0.0
      %834 = vmatprep.subr.mxu0 0.0
      %835 = vmatpush1.msra.mxu0 0.0
      %836 = vmatprep.subr.mxu0 0.0
      %837 = vmatpush1.msra.mxu0 0.0
      %838 = vmatprep.subr.mxu0 0.0
      %839 = vmatpush1.msra.mxu0 0.0
      %840 = vmatprep.subr.mxu0 0.0
      %841 = vmatpush1.msra.mxu0 0.0
      %842 = vmatprep.subr.mxu0 0.0
      %843 = vmatpush1.msra.mxu0 %v805
      %844 = vmatprep.subr.mxu0 0.0
      %845 = vmatpush1.msra.mxu0 %v804
      %846 = vmatprep.subr.mxu0 0.0
      %847 = vmatpush2.msra.mxu0 0.0
      %848 = vmatprep.subr.mxu0 0.0
      %849 = vmatpush2.msra.mxu0 0.0
      %850 = vmatprep.subr.mxu0 0.0
      %851 = vmatpush2.msra.mxu0 0.0
      %852 = vmatprep.subr.mxu0 0.0
      %853 = vmatpush2.msra.mxu0 0.0
      %854 = vmatprep.subr.mxu0 0.0
      %855 = vmatpush2.msra.mxu0 0.0
      %856 = vmatprep.subr.mxu0 0.0
      %857 = vmatpush2.msra.mxu0 0.0
      %858 = vmatprep.subr.mxu0 0.0
      %859 = vmatpush2.msra.mxu0 0.0
      %860 = vmatprep.subr.mxu0 0.0
      %861 = vmatpush2.msra.mxu0 0.0
      %862 = vmatprep.subr.mxu0 0.0
      %863 = vmatpush2.msra.mxu0 0.0
      %864 = vmatprep.subr.mxu0 0.0
      %865 = vmatpush2.msra.mxu0 0.0
      %866 = vmatprep.subr.mxu0 0.0
      %867 = vmatpush2.msra.mxu0 0.0
      %868 = vmatprep.subr.mxu0 0.0
      %869 = vmatpush2.msra.mxu0 0.0
      %870 = vmatprep.subr.mxu0 0.0
      %871 = vmatpush2.msra.mxu0 0.0
      %872 = vmatprep.subr.mxu0 0.0
      %873 = vmatpush2.msra.mxu0 0.0
      %874 = vmatprep.subr.mxu0 0.0
      %875 = vmatpush2.msra.mxu0 0.0
      %876 = vmatprep.subr.mxu0 0.0
      %877 = vmatpush2.msra.mxu0 0.0
      %878 = vmatprep.mubr.f32.mxu0 0.0
      %879 = vmatmul.mubr.f32.gmra.mxu0 %v810
      %v880 = vpop.f32.mrf.mxu0
      %v881 = vadd.f32 0.0, %v880
      %v882 = vpop.f32.mrf.mxu0
      %883 = vmatprep.mubr.f32.mxu0 0.0
      %884 = vmatmul.mubr.f32.gmra.mxu0 %v812
      %v885 = vpop.f32.mrf.mxu0
      %v886 = vadd.f32 0.0, %v885
      %v887 = vpop.f32.mrf.mxu0
      %888 = vdwg.mxu0
      %v889 = vadd.f32 %v801, %v881
      %v890 = vadd.f32 %v802, %v886
      %s891 = scalar_lea.vmem %s3, 64
      %v892 = vld [vmem:[%s891] sm:$0xff]
      %v893 = vld [vmem:[%s891 + $0x8] sm:$0xff]
      %vm894 = vcmask 1043456
      %v895 = vrot.slane %v545, 4
      %v896 = vrot.slane %v546, 4
      %v897 = vsel %vm894, %v895, %v896
      %v898 = vsel %vm557, %v897, 0
      %v900 = vsel %vm557, %v896, 0
      %902 = vmatprep.subr.mxu0 0.0
      %903 = vmatpush1.msra.mxu0 0.0
      %904 = vmatprep.subr.mxu0 0.0
      %905 = vmatpush1.msra.mxu0 0.0
      %906 = vmatprep.subr.mxu0 0.0
      %907 = vmatpush1.msra.mxu0 0.0
      %908 = vmatprep.subr.mxu0 0.0
      %909 = vmatpush1.msra.mxu0 0.0
      %910 = vmatprep.subr.mxu0 0.0
      %911 = vmatpush1.msra.mxu0 0.0
      %912 = vmatprep.subr.mxu0 0.0
      %913 = vmatpush1.msra.mxu0 0.0
      %914 = vmatprep.subr.mxu0 0.0
      %915 = vmatpush1.msra.mxu0 0.0
      %916 = vmatprep.subr.mxu0 0.0
      %917 = vmatpush1.msra.mxu0 0.0
      %918 = vmatprep.subr.mxu0 0.0
      %919 = vmatpush1.msra.mxu0 0.0
      %920 = vmatprep.subr.mxu0 0.0
      %921 = vmatpush1.msra.mxu0 0.0
      %922 = vmatprep.subr.mxu0 0.0
      %923 = vmatpush1.msra.mxu0 0.0
      %924 = vmatprep.subr.mxu0 0.0
      %925 = vmatpush1.msra.mxu0 0.0
      %926 = vmatprep.subr.mxu0 0.0
      %927 = vmatpush1.msra.mxu0 0.0
      %928 = vmatprep.subr.mxu0 0.0
      %929 = vmatpush1.msra.mxu0 0.0
      %930 = vmatprep.subr.mxu0 0.0
      %931 = vmatpush1.msra.mxu0 %v893
      %932 = vmatprep.subr.mxu0 0.0
      %933 = vmatpush1.msra.mxu0 %v892
      %934 = vmatprep.subr.mxu0 0.0
      %935 = vmatpush2.msra.mxu0 0.0
      %936 = vmatprep.subr.mxu0 0.0
      %937 = vmatpush2.msra.mxu0 0.0
      %938 = vmatprep.subr.mxu0 0.0
      %939 = vmatpush2.msra.mxu0 0.0
      %940 = vmatprep.subr.mxu0 0.0
      %941 = vmatpush2.msra.mxu0 0.0
      %942 = vmatprep.subr.mxu0 0.0
      %943 = vmatpush2.msra.mxu0 0.0
      %944 = vmatprep.subr.mxu0 0.0
      %945 = vmatpush2.msra.mxu0 0.0
      %946 = vmatprep.subr.mxu0 0.0
      %947 = vmatpush2.msra.mxu0 0.0
      %948 = vmatprep.subr.mxu0 0.0
      %949 = vmatpush2.msra.mxu0 0.0
      %950 = vmatprep.subr.mxu0 0.0
      %951 = vmatpush2.msra.mxu0 0.0
      %952 = vmatprep.subr.mxu0 0.0
      %953 = vmatpush2.msra.mxu0 0.0
      %954 = vmatprep.subr.mxu0 0.0
      %955 = vmatpush2.msra.mxu0 0.0
      %956 = vmatprep.subr.mxu0 0.0
      %957 = vmatpush2.msra.mxu0 0.0
      %958 = vmatprep.subr.mxu0 0.0
      %959 = vmatpush2.msra.mxu0 0.0
      %960 = vmatprep.subr.mxu0 0.0
      %961 = vmatpush2.msra.mxu0 0.0
      %962 = vmatprep.subr.mxu0 0.0
      %963 = vmatpush2.msra.mxu0 0.0
      %964 = vmatprep.subr.mxu0 0.0
      %965 = vmatpush2.msra.mxu0 0.0
      %966 = vmatprep.mubr.f32.mxu0 0.0
      %967 = vmatmul.mubr.f32.gmra.mxu0 %v898
      %v968 = vpop.f32.mrf.mxu0
      %v969 = vadd.f32 0.0, %v968
      %v970 = vpop.f32.mrf.mxu0
      %971 = vmatprep.mubr.f32.mxu0 0.0
      %972 = vmatmul.mubr.f32.gmra.mxu0 %v900
      %v973 = vpop.f32.mrf.mxu0
      %v974 = vadd.f32 0.0, %v973
      %v975 = vpop.f32.mrf.mxu0
      %976 = vdwg.mxu0
      %v977 = vadd.f32 %v889, %v969
      %v978 = vadd.f32 %v890, %v974
      %s979 = scalar_lea.vmem %s3, 80
      %v980 = vld [vmem:[%s979] sm:$0xff]
      %v981 = vld [vmem:[%s979 + $0x8] sm:$0xff]
      %vm982 = vcmask 1042432
      %v983 = vrot.slane %v545, 5
      %v984 = vrot.slane %v546, 5
      %v985 = vsel %vm982, %v983, %v984
      %v986 = vsel %vm557, %v985, 0
      %v988 = vsel %vm557, %v984, 0
      %990 = vmatprep.subr.mxu0 0.0
      %991 = vmatpush1.msra.mxu0 0.0
      %992 = vmatprep.subr.mxu0 0.0
      %993 = vmatpush1.msra.mxu0 0.0
      %994 = vmatprep.subr.mxu0 0.0
      %995 = vmatpush1.msra.mxu0 0.0
      %996 = vmatprep.subr.mxu0 0.0
      %997 = vmatpush1.msra.mxu0 0.0
      %998 = vmatprep.subr.mxu0 0.0
      %999 = vmatpush1.msra.mxu0 0.0
      %1000 = vmatprep.subr.mxu0 0.0
      %1001 = vmatpush1.msra.mxu0 0.0
      %1002 = vmatprep.subr.mxu0 0.0
      %1003 = vmatpush1.msra.mxu0 0.0
      %1004 = vmatprep.subr.mxu0 0.0
      %1005 = vmatpush1.msra.mxu0 0.0
      %1006 = vmatprep.subr.mxu0 0.0
      %1007 = vmatpush1.msra.mxu0 0.0
      %1008 = vmatprep.subr.mxu0 0.0
      %1009 = vmatpush1.msra.mxu0 0.0
      %1010 = vmatprep.subr.mxu0 0.0
      %1011 = vmatpush1.msra.mxu0 0.0
      %1012 = vmatprep.subr.mxu0 0.0
      %1013 = vmatpush1.msra.mxu0 0.0
      %1014 = vmatprep.subr.mxu0 0.0
      %1015 = vmatpush1.msra.mxu0 0.0
      %1016 = vmatprep.subr.mxu0 0.0
      %1017 = vmatpush1.msra.mxu0 0.0
      %1018 = vmatprep.subr.mxu0 0.0
      %1019 = vmatpush1.msra.mxu0 %v981
      %1020 = vmatprep.subr.mxu0 0.0
      %1021 = vmatpush1.msra.mxu0 %v980
      %1022 = vmatprep.subr.mxu0 0.0
      %1023 = vmatpush2.msra.mxu0 0.0
      %1024 = vmatprep.subr.mxu0 0.0
      %1025 = vmatpush2.msra.mxu0 0.0
      %1026 = vmatprep.subr.mxu0 0.0
      %1027 = vmatpush2.msra.mxu0 0.0
      %1028 = vmatprep.subr.mxu0 0.0
      %1029 = vmatpush2.msra.mxu0 0.0
      %1030 = vmatprep.subr.mxu0 0.0
      %1031 = vmatpush2.msra.mxu0 0.0
      %1032 = vmatprep.subr.mxu0 0.0
      %1033 = vmatpush2.msra.mxu0 0.0
      %1034 = vmatprep.subr.mxu0 0.0
      %1035 = vmatpush2.msra.mxu0 0.0
      %1036 = vmatprep.subr.mxu0 0.0
      %1037 = vmatpush2.msra.mxu0 0.0
      %1038 = vmatprep.subr.mxu0 0.0
      %1039 = vmatpush2.msra.mxu0 0.0
      %1040 = vmatprep.subr.mxu0 0.0
      %1041 = vmatpush2.msra.mxu0 0.0
      %1042 = vmatprep.subr.mxu0 0.0
      %1043 = vmatpush2.msra.mxu0 0.0
      %1044 = vmatprep.subr.mxu0 0.0
      %1045 = vmatpush2.msra.mxu0 0.0
      %1046 = vmatprep.subr.mxu0 0.0
      %1047 = vmatpush2.msra.mxu0 0.0
      %1048 = vmatprep.subr.mxu0 0.0
      %1049 = vmatpush2.msra.mxu0 0.0
      %1050 = vmatprep.subr.mxu0 0.0
      %1051 = vmatpush2.msra.mxu0 0.0
      %1052 = vmatprep.subr.mxu0 0.0
      %1053 = vmatpush2.msra.mxu0 0.0
      %1054 = vmatprep.mubr.f32.mxu0 0.0
      %1055 = vmatmul.mubr.f32.gmra.mxu0 %v986
      %v1056 = vpop.f32.mrf.mxu0
      %v1057 = vadd.f32 0.0, %v1056
      %v1058 = vpop.f32.mrf.mxu0
      %1059 = vmatprep.mubr.f32.mxu0 0.0
      %1060 = vmatmul.mubr.f32.gmra.mxu0 %v988
      %v1061 = vpop.f32.mrf.mxu0
      %v1062 = vadd.f32 0.0, %v1061
      %v1063 = vpop.f32.mrf.mxu0
      %1064 = vdwg.mxu0
      %v1065 = vadd.f32 %v977, %v1057
      %v1066 = vadd.f32 %v978, %v1062
      %1067 = vrot.lane.b32.xlu0 %v279, 124
      %v1068 = vpop.permute.xlu0 %1067
      %1069 = vrot.lane.b32.xlu0 %v280, 124
      %v1070 = vpop.permute.xlu0 %1069
      %vm1073 = vcmask 31747
      %v1074 = vsel %vm1073, %v1068, 0.0
      %1075 = vadd.xlane.f32.xlu0 %v1074
      %v1076 = vpop.xlane.xlu0 %1075
      %vm1077 = vcmask 27648
      %v1078 = vsel %vm1077, %v1070, 0.0
      %1079 = vadd.xlane.f32.xlu0 %v1078
      %v1080 = vpop.xlane.xlu0 %1079
      %vm1081 = vcmask 31748
      %v1082 = vsel %vm1081, %v279, 0.0
      %1083 = vadd.xlane.f32.xlu0 %v1082
      %v1084 = vpop.xlane.xlu0 %1083
      %vm1085 = vcmask 28672
      %v1086 = vsel %vm1085, %v280, 0.0
      %1087 = vadd.xlane.f32.xlu0 %v1086
      %v1088 = vpop.xlane.xlu0 %1087
      %v1091 = vrot.slane %v1084, 1
      %v1092 = vrot.slane %v1088, 1
      %v1093 = vsel %vm286, %v1091, %v1092
      %v1096 = vadd.f32 %v1076, %v1093
      %v1097 = vadd.f32 %v1080, %v1092
      %v1098 = vld [vmem:[%s4] sm:$0x1]
      %v1100 = vlaneseq
      %v1101 = vshrl.u32 %v1100, 7
      %v1102 = vsub.s32 0, %v1101
      %v1103 = vrot.slane %v1098, %v1102
      %v1105 = vadd.f32 %v1065, %v1103
      %v1106 = vadd.f32 %v1066, %v1103
      %1108 = vset.pattern.permute.xlu0 0
      %1109 = vperm.xlu0 %1108, %v1096
      %v1110 = vpop.permute.xlu0 %1109
      %1112 = vset.pattern.permute.xlu0 0
      %1113 = vperm.xlu0 %1112, %v1097
      %v1114 = vpop.permute.xlu0 %1113
      %v1115 = vrot.slane %v1110, 3
      %v1116 = vrot.slane %v1114, 3
      %v1117 = vsel %vm806, %v1115, %v1116
      %v1120 = vadd.f32 %v1105, %v1117
      %v1121 = vadd.f32 %v1106, %v1116
      %v1122 = vmax.f32 %v1120, 0.0
      %v1123 = vmax.f32 %v1121, 0.0
      %v1124 = vld [vmem:[%s5] sm:$0x1]
      %v1126 = vlaneseq
      %v1127 = vshrl.u32 %v1126, 7
      %v1128 = vsub.s32 0, %v1127
      %v1129 = vrot.slane %v1124, %v1128
      %v1131 = vmul.f32 %v1122, %v1129
      %v1132 = vmul.f32 %v1123, %v1129
      %v1133 = vld [vmem:[%s6] sm:$0x1]
      %v1135 = vlaneseq
      %v1136 = vshrl.u32 %v1135, 7
      %v1137 = vsub.s32 0, %v1136
      %v1138 = vrot.slane %v1133, %v1137
      %v1140 = vadd.f32 %v1131, %v1138
      %v1141 = vadd.f32 %v1132, %v1138
      %1142 = vst.msk [vmem:[%s278] sm:$0xff] %vm557, %v1140
      %vm1143 = vcmask 122880
      %1144 = vst.msk [vmem:[%s278 + $0x8] sm:$0x1] %vm1143, %v1141
      %p1145 = scmp.lt.s32.totalorder %s18, 1
      %s1146 = scalar_select %p1145, %s18, 1
      %s1147 = smul.addr %s1146, 2
      %s1148 = smul.addr %s1147, 8
      %s1149 = scalar_lea.vmem %s7, %s1148
      // Predicated region
      $region49: #{resnet_forward.4} parent=47 // pred_check
        %p1150 = pneg %p188
      $region50: #{resnet_forward.4} parent=47 // pred_check_branch
        %1152 = sbr.rel (%p1150) target = $region52
      $region51: #{resnet_forward.4} parent=47 // pred_region
        _
      $region52: #{resnet_forward.4} parent=47 // pred_fallthru
        _
    $region48: #{resnet_forward.4} parent=5 // pred_fallthru
      _
    %p1153 = scmp.le.s32.totalorder 2, %s13
    // Predicated region
    $region53: #{resnet_forward.4} parent=5 // pred_check
      %p1154 = pneg %p1153
    $region54: #{resnet_forward.4} parent=5 // pred_check_branch
      %1156 = sbr.rel (%p1154) target = $region56
    $region55: #{resnet_forward.4} parent=5 // pred_region
      %s1157 = ssub.s32 %s13, 2
      // Predicated region
      $region57: #{resnet_forward.4} parent=55 // pred_check
        %p1158 = pneg %p194
      $region58: #{resnet_forward.4} parent=55 // pred_check_branch
        %1160 = sbr.rel (%p1158) target = $region60
      $region59: #{resnet_forward.4} parent=55 // pred_region
        %p1161 = scmp.lt.s32.totalorder %s19, 1
        %s1162 = scalar_select %p1161, %s19, 1
        %s1163 = smul.addr %s1162, 2
        %s1164 = smul.addr %s1163, 8
        %s1165 = scalar_lea.vmem %s7, %s1164
      $region60: #{resnet_forward.4} parent=55 // pred_fallthru
        _
    $region56: #{resnet_forward.4} parent=5 // pred_fallthru
      _
  $region6: #{resnet_forward.4} parent=0 // loop_footer
    %s17 = sadd.s32 1, %s13
  $region7: #{resnet_forward.4} parent=0 // loop_footer_branch
    %12 = sbr.rel target = $region3
  $region8: #{resnet_forward.4} parent=0 // loop_exit
    _

// kernel: resnet_forward.5
$region0: #{resnet_forward.5}
  #allocation0 [shape = 'u32[]', space=smem, size = 0x4, offset = 0x4, fixed_abs, tag = 'smem constant byte address 0x4 - core index']
  #allocation1 [shape = 'u32[144,128]{1,0:T(1,128)}', space=vmem, size = 0x12000, scoped, tag = 'internal scratch']
  %s0 = inlined_call_operand.vmem [shape: f32[2,13,32], index: 0, kind: input, shape index: {}]
  %s1 = inlined_call_operand.vmem [shape: f32[3,32,16], index: 1, kind: input, shape index: {}]
  %s2 = inlined_call_operand.vmem [shape: f32[1,16], index: 2, kind: input, shape index: {}]
  %s3 = inlined_call_operand.vmem [shape: f32[6,16,16], index: 3, kind: input, shape index: {}]
  %s4 = inlined_call_operand.vmem [shape: f32[1,16], index: 4, kind: input, shape index: {}]
  %s5 = inlined_call_operand.vmem [shape: f32[1,16], index: 5, kind: input, shape index: {}]
  %s6 = inlined_call_operand.vmem [shape: f32[1,16], index: 6, kind: input, shape index: {}]
  %s7 = inlined_call_operand.vmem [shape: f32[2,5,16], index: 7, kind: output, shape index: {}]
  %s8 = sld [smem:[#allocation0]]
  $region61: #{resnet_forward.5} parent=0
    _
  %s10 = ssub.s32 1, %s8
  %s11 = scalar_select 0, %s10, %s8
  loop: start=0, step=1, limit=4
  $region2: #{resnet_forward.5} parent=0 // loop_pre_header
    _
  $region3: #{resnet_forward.5} parent=0 // loop_header
    %s13 = sphi 0, %s17
    %p14 = scmp.ge.s32.totalorder %s13, 4
    %s23 = sphi 0, %s25
    %s26 = sphi 0, %s23
    %s27 = sphi 0, %s26
    %s43 = sphi 0, %s27
    %s47 = sphi 0, %s47
    %s49 = sphi 0, %s47
    %s50 = sphi 0, %s49
    %s64 = sphi 0, %s50
    %s68 = sphi 0, %s68
    %s70 = sphi 0, %s68
    %s71 = sphi 0, %s70
    %s85 = sphi 0, %s71
    %s89 = sphi 0, %s89
    %s91 = sphi 0, %s89
    %s92 = sphi 0, %s91
    %s106 = sphi 0, %s92
    %s110 = sphi 0, %s110
    %s112 = sphi 0, %s110
    %s113 = sphi 0, %s112
    %s127 = sphi 0, %s113
    %s131 = sphi 0, %s131
    %s133 = sphi 0, %s131
    %s134 = sphi 0, %s133
    %s148 = sphi 0, %s134
    %s152 = sphi 0, %s152
    %s154 = sphi 0, %s152
    %s155 = sphi 0, %s154
    %s169 = sphi 0, %s155
    %s175 = sphi 0, %s177
    %s178 = sphi 0, %s175
    %s179 = sphi 0, %s178
    %s195 = sphi 0, %s179
  $region4: #{resnet_forward.5} parent=0 // loop_header_branch
    %16 = sbr.rel (%p14) target = $region8
  $region5: #{resnet_forward.5} parent=0 // loop_body
    %s18 = ssub.s32 %s13, 1
    %s19 = ssub.s32 %s13, 2
    %s20 = sadd.s32 %s13, 1
    %s21 = ssub.s32 %s13, %s20
    %p22 = scmp.eq.s32.totalorder %s21, 0
    %s24 = sadd.s32 %s23, 1
    %s25 = scalar_select %p22, %s23, %s24
    %p28 = pneg %p22
    %p29 = scmp.eq.s32.totalorder %s13, 1
    %p30 = por %p28, %p29
    %p31 = scmp.ne.s32.totalorder %s23, %s26
    %p32 = scmp.eq.s32.totalorder %s13, 0
    %p33 = por %p31, %p32
    %p34 = scmp.ne.s32.totalorder %s23, %s26
    %p35 = scmp.eq.s32.totalorder %s18, 1
    %p36 = por %p34, %p35
    %p37 = scmp.ne.s32.totalorder %s26, %s27
    %p38 = scmp.eq.s32.totalorder %s18, 0
    %p39 = por %p37, %p38
    %p40 = scmp.ne.s32.totalorder %s26, %s27
    %p41 = scmp.eq.s32.totalorder %s19, 1
    %p42 = por %p40, %p41
    %p44 = scmp.ne.s32.totalorder %s27, %s43
    %p45 = scmp.eq.s32.totalorder %s19, 0
    %p46 = por %p44, %p45
    %s48 = sadd.s32 %s47, 1
    %p51 = scmp.eq.s32.totalorder %s13, 1
    %p52 = scmp.ne.s32.totalorder %s47, %s49
    %p53 = scmp.eq.s32.totalorder %s13, 0
    %p54 = por %p52, %p53
    %p55 = scmp.ne.s32.totalorder %s47, %s49
    %p56 = scmp.eq.s32.totalorder %s18, 1
    %p57 = por %p55, %p56
    %p58 = scmp.ne.s32.totalorder %s49, %s50
    %p59 = scmp.eq.s32.totalorder %s18, 0
    %p60 = por %p58, %p59
    %p61 = scmp.ne.s32.totalorder %s49, %s50
    %p62 = scmp.eq.s32.totalorder %s19, 1
    %p63 = por %p61, %p62
    %p65 = scmp.ne.s32.totalorder %s50, %s64
    %p66 = scmp.eq.s32.totalorder %s19, 0
    %p67 = por %p65, %p66
    %s69 = sadd.s32 %s68, 1
    %p72 = scmp.eq.s32.totalorder %s13, 1
    %p73 = scmp.ne.s32.totalorder %s68, %s70
    %p74 = scmp.eq.s32.totalorder %s13, 0
    %p75 = por %p73, %p74
    %p76 = scmp.ne.s32.totalorder %s68, %s70
    %p77 = scmp.eq.s32.totalorder %s18, 1
    %p78 = por %p76, %p77
    %p79 = scmp.ne.s32.totalorder %s70, %s71
    %p80 = scmp.eq.s32.totalorder %s18, 0
    %p81 = por %p79, %p80
    %p82 = scmp.ne.s32.totalorder %s70, %s71
    %p83 = scmp.eq.s32.totalorder %s19, 1
    %p84 = por %p82, %p83
    %p86 = scmp.ne.s32.totalorder %s71, %s85
    %p87 = scmp.eq.s32.totalorder %s19, 0
    %p88 = por %p86, %p87
    %s90 = sadd.s32 %s89, 1
    %p93 = scmp.eq.s32.totalorder %s13, 1
    %p94 = scmp.ne.s32.totalorder %s89, %s91
    %p95 = scmp.eq.s32.totalorder %s13, 0
    %p96 = por %p94, %p95
    %p97 = scmp.ne.s32.totalorder %s89, %s91
    %p98 = scmp.eq.s32.totalorder %s18, 1
    %p99 = por %p97, %p98
    %p100 = scmp.ne.s32.totalorder %s91, %s92
    %p101 = scmp.eq.s32.totalorder %s18, 0
    %p102 = por %p100, %p101
    %p103 = scmp.ne.s32.totalorder %s91, %s92
    %p104 = scmp.eq.s32.totalorder %s19, 1
    %p105 = por %p103, %p104
    %p107 = scmp.ne.s32.totalorder %s92, %s106
    %p108 = scmp.eq.s32.totalorder %s19, 0
    %p109 = por %p107, %p108
    %s111 = sadd.s32 %s110, 1
    %p114 = scmp.eq.s32.totalorder %s13, 1
    %p115 = scmp.ne.s32.totalorder %s110, %s112
    %p116 = scmp.eq.s32.totalorder %s13, 0
    %p117 = por %p115, %p116
    %p118 = scmp.ne.s32.totalorder %s110, %s112
    %p119 = scmp.eq.s32.totalorder %s18, 1
    %p120 = por %p118, %p119
    %p121 = scmp.ne.s32.totalorder %s112, %s113
    %p122 = scmp.eq.s32.totalorder %s18, 0
    %p123 = por %p121, %p122
    %p124 = scmp.ne.s32.totalorder %s112, %s113
    %p125 = scmp.eq.s32.totalorder %s19, 1
    %p126 = por %p124, %p125
    %p128 = scmp.ne.s32.totalorder %s113, %s127
    %p129 = scmp.eq.s32.totalorder %s19, 0
    %p130 = por %p128, %p129
    %s132 = sadd.s32 %s131, 1
    %p135 = scmp.eq.s32.totalorder %s13, 1
    %p136 = scmp.ne.s32.totalorder %s131, %s133
    %p137 = scmp.eq.s32.totalorder %s13, 0
    %p138 = por %p136, %p137
    %p139 = scmp.ne.s32.totalorder %s131, %s133
    %p140 = scmp.eq.s32.totalorder %s18, 1
    %p141 = por %p139, %p140
    %p142 = scmp.ne.s32.totalorder %s133, %s134
    %p143 = scmp.eq.s32.totalorder %s18, 0
    %p144 = por %p142, %p143
    %p145 = scmp.ne.s32.totalorder %s133, %s134
    %p146 = scmp.eq.s32.totalorder %s19, 1
    %p147 = por %p145, %p146
    %p149 = scmp.ne.s32.totalorder %s134, %s148
    %p150 = scmp.eq.s32.totalorder %s19, 0
    %p151 = por %p149, %p150
    %s153 = sadd.s32 %s152, 1
    %p156 = scmp.eq.s32.totalorder %s13, 1
    %p157 = scmp.ne.s32.totalorder %s152, %s154
    %p158 = scmp.eq.s32.totalorder %s13, 0
    %p159 = por %p157, %p158
    %p160 = scmp.ne.s32.totalorder %s152, %s154
    %p161 = scmp.eq.s32.totalorder %s18, 1
    %p162 = por %p160, %p161
    %p163 = scmp.ne.s32.totalorder %s154, %s155
    %p164 = scmp.eq.s32.totalorder %s18, 0
    %p165 = por %p163, %p164
    %p166 = scmp.ne.s32.totalorder %s154, %s155
    %p167 = scmp.eq.s32.totalorder %s19, 1
    %p168 = por %p166, %p167
    %p170 = scmp.ne.s32.totalorder %s155, %s169
    %p171 = scmp.eq.s32.totalorder %s19, 0
    %p172 = por %p170, %p171
    %s173 = ssub.s32 %s13, %s20
    %p174 = scmp.eq.s32.totalorder %s173, 0
    %s176 = sadd.s32 %s175, 1
    %s177 = scalar_select %p174, %s175, %s176
    %p180 = pneg %p174
    %p181 = scmp.eq.s32.totalorder %s13, 1
    %p182 = por %p180, %p181
    %p183 = scmp.ne.s32.totalorder %s175, %s178
    %p184 = scmp.eq.s32.totalorder %s13, 0
    %p185 = por %p183, %p184
    %p186 = scmp.ne.s32.totalorder %s175, %s178
    %p187 = scmp.eq.s32.totalorder %s18, 1
    %p188 = por %p186, %p187
    %p189 = scmp.ne.s32.totalorder %s178, %s179
    %p190 = scmp.eq.s32.totalorder %s18, 0
    %p191 = por %p189, %p190
    %p192 = scmp.ne.s32.totalorder %s178, %s179
    %p193 = scmp.eq.s32.totalorder %s19, 1
    %p194 = por %p192, %p193
    %p196 = scmp.ne.s32.totalorder %s179, %s195
    %p197 = scmp.eq.s32.totalorder %s19, 0
    %p198 = por %p196, %p197
    %p199 = scmp.le.s32.totalorder 1, %s13
    %p200 = scmp.lt.s32.totalorder %s13, 3
    %p201 = pnand %p199, %p200
    %p202 = pneg %p201
    // Predicated region
    $region9: #{resnet_forward.5} parent=5 // pred_check
      _
    $region10: #{resnet_forward.5} parent=5 // pred_check_branch
      %204 = sbr.rel (%p201) target = $region12
    $region11: #{resnet_forward.5} parent=5 // pred_region
      %s205 = ssub.s32 %s13, 1
      // Predicated region
      $region13: #{resnet_forward.5} parent=11 // pred_check
        %p206 = pneg %p60
      $region14: #{resnet_forward.5} parent=11 // pred_check_branch
        %208 = sbr.rel (%p206) target = $region16
      $region15: #{resnet_forward.5} parent=11 // pred_region
        _
      $region16: #{resnet_forward.5} parent=11 // pred_fallthru
        _
      // Predicated region
      $region17: #{resnet_forward.5} parent=11 // pred_check
        %p209 = pneg %p81
      $region18: #{resnet_forward.5} parent=11 // pred_check_branch
        %211 = sbr.rel (%p209) target = $region20
      $region19: #{resnet_forward.5} parent=11 // pred_region
        _
      $region20: #{resnet_forward.5} parent=11 // pred_fallthru
        _
      // Predicated region
      $region21: #{resnet_forward.5} parent=11 // pred_check
        %p212 = pneg %p102
      $region22: #{resnet_forward.5} parent=11 // pred_check_branch
        %214 = sbr.rel (%p212) target = $region24
      $region23: #{resnet_forward.5} parent=11 // pred_region
        _
      $region24: #{resnet_forward.5} parent=11 // pred_fallthru
        _
      // Predicated region
      $region25: #{resnet_forward.5} parent=11 // pred_check
        %p215 = pneg %p123
      $region26: #{resnet_forward.5} parent=11 // pred_check_branch
        %217 = sbr.rel (%p215) target = $region28
      $region27: #{resnet_forward.5} parent=11 // pred_region
        _
      $region28: #{resnet_forward.5} parent=11 // pred_fallthru
        _
      // Predicated region
      $region29: #{resnet_forward.5} parent=11 // pred_check
        %p218 = pneg %p144
      $region30: #{resnet_forward.5} parent=11 // pred_check_branch
        %220 = sbr.rel (%p218) target = $region32
      $region31: #{resnet_forward.5} parent=11 // pred_region
        _
      $region32: #{resnet_forward.5} parent=11 // pred_fallthru
        _
      // Predicated region
      $region33: #{resnet_forward.5} parent=11 // pred_check
        %p221 = pneg %p165
      $region34: #{resnet_forward.5} parent=11 // pred_check_branch
        %223 = sbr.rel (%p221) target = $region36
      $region35: #{resnet_forward.5} parent=11 // pred_region
        _
      $region36: #{resnet_forward.5} parent=11 // pred_fallthru
        _
    $region12: #{resnet_forward.5} parent=5 // pred_fallthru
      _
    %p224 = scmp.lt.s32.totalorder %s13, 2
    // Predicated region
    $region37: #{resnet_forward.5} parent=5 // pred_check
      %p225 = pneg %p224
    $region38: #{resnet_forward.5} parent=5 // pred_check_branch
      %227 = sbr.rel (%p225) target = $region40
    $region39: #{resnet_forward.5} parent=5 // pred_region
      // Predicated region
      $region41: #{resnet_forward.5} parent=39 // pred_check
        %p228 = pneg %p33
      $region42: #{resnet_forward.5} parent=39 // pred_check_branch
        %230 = sbr.rel (%p228) target = $region44
      $region43: #{resnet_forward.5} parent=39 // pred_region
        %p231 = scmp.lt.s32.totalorder %s13, 1
        %s232 = scalar_select %p231, %s13, 1
        %s233 = smul.addr %s232, 2
        %s234 = smul.addr %s233, 8
        %s235 = scalar_lea.vmem %s0, %s234
      $region44: #{resnet_forward.5} parent=39 // pred_fallthru
        _
    $region40: #{resnet_forward.5} parent=5 // pred_fallthru
      _
    %p236 = scmp.le.s32.totalorder 1, %s13
    %p237 = scmp.lt.s32.totalorder %s13, 3
    %p238 = pnand %p236, %p237
    %p239 = pneg %p238
    // Predicated region
    $region45: #{resnet_forward.5} parent=5 // pred_check
      _
    $region46: #{resnet_forward.5} parent=5 // pred_check_branch
      %241 = sbr.rel (%p238) target = $region48
    $region47: #{resnet_forward.5} parent=5 // pred_region
      %s242 = ssub.s32 %s13, 1
      %p243 = scmp.lt.s32.totalorder %s18, 1
      %s244 = scalar_select %p243, %s18, 1
      %s245 = smul.addr %s244, 2
      %s246 = smul.addr %s245, 8
      %s247 = scalar_lea.vmem %s0, %s246
      %p248 = pneg %p39
      %p249 = pneg %p36
      %p250 = pneg %p60
      %p251 = pneg %p57
      %p252 = pneg %p81
      %p253 = pneg %p78
      %p254 = pneg %p102
      %p255 = pneg %p99
      %p256 = pneg %p123
      %p257 = pneg %p120
      %p258 = pneg %p144
      %p259 = pneg %p141
      %p260 = pneg %p165
      %p261 = pneg %p162
      %p262 = pneg %p191
      %p263 = pneg %p188
      %p264 = scmp.lt.s32.totalorder %s18, 1
      %s265 = scalar_select %p264, %s18, 1
      %s266 = smul.addr %s265, 8
      %s267 = scalar_lea.vmem %s7, %s266
      %p268 = scmp.lt.s32.totalorder %s18, 1
      %s269 = scalar_select %p268, %s18, 1
      %s270 = smul.addr %s269, 2
      %s271 = smul.addr %s270, 8
      %s272 = scalar_lea.vmem %s0, %s271
      %p273 = scmp.lt.s32.totalorder %s18, 1
      %s274 = scalar_select %p273, %s18, 1
      %s275 = smul.addr %s274, 8
      %s276 = scalar_lea.vmem %s7, %s275
      %v277 = vld [vmem:[%s272] sm:$0xff]
      %v278 = vld [vmem:[%s272 + $0x8] sm:$0x1f]
      %v279 = vld [vmem:[%s1] sm:$0xff]
      %v280 = vld [vmem:[%s1 + $0x8] sm:$0xff]
      %v281 = vld [vmem:[%s1 + $0x10] sm:$0xff]
      %v282 = vld [vmem:[%s1 + $0x18] sm:$0xff]
      %s283 = scalar_lea.vmem %s1, 32
      %v284 = vld [vmem:[%s283] sm:$0xff]
      %v285 = vld [vmem:[%s283 + $0x8] sm:$0xff]
      %v286 = vld [vmem:[%s283 + $0x10] sm:$0xff]
      %v287 = vld [vmem:[%s283 + $0x18] sm:$0xff]
      %vm290 = vcmask 1046528
      %v291 = vrot.slane %v277, 1
      %v292 = vrot.slane %v278, 1
      %v293 = vsel %vm290, %v291, %v292
      %vm294 = vcmask 261120
      %v295 = vsel %vm294, %v293, 0
      %v297 = vsel %vm294, %v292, 0
      %299 = vmatprep.subr.mxu0 0.0
      %300 = vmatpush1.msra.mxu0 0.0
      %301 = vmatprep.subr.mxu0 0.0
      %302 = vmatpush1.msra.mxu0 0.0
      %303 = vmatprep.subr.mxu0 0.0
      %304 = vmatpush1.msra.mxu0 0.0
      %305 = vmatprep.subr.mxu0 0.0
      %306 = vmatpush1.msra.mxu0 0.0
      %307 = vmatprep.subr.mxu0 0.0
      %308 = vmatpush1.msra.mxu0 0.0
      %309 = vmatprep.subr.mxu0 0.0
      %310 = vmatpush1.msra.mxu0 0.0
      %311 = vmatprep.subr.mxu0 0.0
      %312 = vmatpush1.msra.mxu0 0.0
      %313 = vmatprep.subr.mxu0 0.0
      %314 = vmatpush1.msra.mxu0 0.0
      %315 = vmatprep.subr.mxu0 0.0
      %316 = vmatpush1.msra.mxu0 0.0
      %317 = vmatprep.subr.mxu0 0.0
      %318 = vmatpush1.msra.mxu0 0.0
      %319 = vmatprep.subr.mxu0 0.0
      %320 = vmatpush1.msra.mxu0 0.0
      %321 = vmatprep.subr.mxu0 0.0
      %322 = vmatpush1.msra.mxu0 0.0
      %323 = vmatprep.subr.mxu0 0.0
      %324 = vmatpush1.msra.mxu0 %v287
      %325 = vmatprep.subr.mxu0 0.0
      %326 = vmatpush1.msra.mxu0 %v286
      %327 = vmatprep.subr.mxu0 0.0
      %328 = vmatpush1.msra.mxu0 %v285
      %329 = vmatprep.subr.mxu0 0.0
      %330 = vmatpush1.msra.mxu0 %v284
      %331 = vmatprep.subr.mxu0 0.0
      %332 = vmatpush2.msra.mxu0 0.0
      %333 = vmatprep.subr.mxu0 0.0
      %334 = vmatpush2.msra.mxu0 0.0
      %335 = vmatprep.subr.mxu0 0.0
      %336 = vmatpush2.msra.mxu0 0.0
      %337 = vmatprep.subr.mxu0 0.0
      %338 = vmatpush2.msra.mxu0 0.0
      %339 = vmatprep.subr.mxu0 0.0
      %340 = vmatpush2.msra.mxu0 0.0
      %341 = vmatprep.subr.mxu0 0.0
      %342 = vmatpush2.msra.mxu0 0.0
      %343 = vmatprep.subr.mxu0 0.0
      %344 = vmatpush2.msra.mxu0 0.0
      %345 = vmatprep.subr.mxu0 0.0
      %346 = vmatpush2.msra.mxu0 0.0
      %347 = vmatprep.subr.mxu0 0.0
      %348 = vmatpush2.msra.mxu0 0.0
      %349 = vmatprep.subr.mxu0 0.0
      %350 = vmatpush2.msra.mxu0 0.0
      %351 = vmatprep.subr.mxu0 0.0
      %352 = vmatpush2.msra.mxu0 0.0
      %353 = vmatprep.subr.mxu0 0.0
      %354 = vmatpush2.msra.mxu0 0.0
      %355 = vmatprep.subr.mxu0 0.0
      %356 = vmatpush2.msra.mxu0 0.0
      %357 = vmatprep.subr.mxu0 0.0
      %358 = vmatpush2.msra.mxu0 0.0
      %359 = vmatprep.subr.mxu0 0.0
      %360 = vmatpush2.msra.mxu0 0.0
      %361 = vmatprep.subr.mxu0 0.0
      %362 = vmatpush2.msra.mxu0 0.0
      %363 = vmatprep.mubr.f32.mxu0 0.0
      %364 = vmatmul.mubr.f32.gmra.mxu0 %v295
      %v365 = vpop.f32.mrf.mxu0
      %v366 = vadd.f32 0.0, %v365
      %v367 = vpop.f32.mrf.mxu0
      %368 = vmatprep.mubr.f32.mxu0 0.0
      %369 = vmatmul.mubr.f32.gmra.mxu0 %v297
      %v370 = vpop.f32.mrf.mxu0
      %v371 = vadd.f32 0.0, %v370
      %v372 = vpop.f32.mrf.mxu0
      %373 = vdwg.mxu0
      %v374 = vsel %vm294, %v277, 0
      %v376 = vsel %vm294, %v278, 0
      %378 = vmatprep.subr.mxu0 0.0
      %379 = vmatpush1.msra.mxu0 0.0
      %380 = vmatprep.subr.mxu0 0.0
      %381 = vmatpush1.msra.mxu0 0.0
      %382 = vmatprep.subr.mxu0 0.0
      %383 = vmatpush1.msra.mxu0 0.0
      %384 = vmatprep.subr.mxu0 0.0
      %385 = vmatpush1.msra.mxu0 0.0
      %386 = vmatprep.subr.mxu0 0.0
      %387 = vmatpush1.msra.mxu0 0.0
      %388 = vmatprep.subr.mxu0 0.0
      %389 = vmatpush1.msra.mxu0 0.0
      %390 = vmatprep.subr.mxu0 0.0
      %391 = vmatpush1.msra.mxu0 0.0
      %392 = vmatprep.subr.mxu0 0.0
      %393 = vmatpush1.msra.mxu0 0.0
      %394 = vmatprep.subr.mxu0 0.0
      %395 = vmatpush1.msra.mxu0 0.0
      %396 = vmatprep.subr.mxu0 0.0
      %397 = vmatpush1.msra.mxu0 0.0
      %398 = vmatprep.subr.mxu0 0.0
      %399 = vmatpush1.msra.mxu0 0.0
      %400 = vmatprep.subr.mxu0 0.0
      %401 = vmatpush1.msra.mxu0 0.0
      %402 = vmatprep.subr.mxu0 0.0
      %403 = vmatpush1.msra.mxu0 %v282
      %404 = vmatprep.subr.mxu0 0.0
      %405 = vmatpush1.msra.mxu0 %v281
      %406 = vmatprep.subr.mxu0 0.0
      %407 = vmatpush1.msra.mxu0 %v280
      %408 = vmatprep.subr.mxu0 0.0
      %409 = vmatpush1.msra.mxu0 %v279
      %410 = vmatprep.subr.mxu0 0.0
      %411 = vmatpush2.msra.mxu0 0.0
      %412 = vmatprep.subr.mxu0 0.0
      %413 = vmatpush2.msra.mxu0 0.0
      %414 = vmatprep.subr.mxu0 0.0
      %415 = vmatpush2.msra.mxu0 0.0
      %416 = vmatprep.subr.mxu0 0.0
      %417 = vmatpush2.msra.mxu0 0.0
      %418 = vmatprep.subr.mxu0 0.0
      %419 = vmatpush2.msra.mxu0 0.0
      %420 = vmatprep.subr.mxu0 0.0
      %421 = vmatpush2.msra.mxu0 0.0
      %422 = vmatprep.subr.mxu0 0.0
      %423 = vmatpush2.msra.mxu0 0.0
      %424 = vmatprep.subr.mxu0 0.0
      %425 = vmatpush2.msra.mxu0 0.0
      %426 = vmatprep.subr.mxu0 0.0
      %427 = vmatpush2.msra.mxu0 0.0
      %428 = vmatprep.subr.mxu0 0.0
      %429 = vmatpush2.msra.mxu0 0.0
      %430 = vmatprep.subr.mxu0 0.0
      %431 = vmatpush2.msra.mxu0 0.0
      %432 = vmatprep.subr.mxu0 0.0
      %433 = vmatpush2.msra.mxu0 0.0
      %434 = vmatprep.subr.mxu0 0.0
      %435 = vmatpush2.msra.mxu0 0.0
      %436 = vmatprep.subr.mxu0 0.0
      %437 = vmatpush2.msra.mxu0 0.0
      %438 = vmatprep.subr.mxu0 0.0
      %439 = vmatpush2.msra.mxu0 0.0
      %440 = vmatprep.subr.mxu0 0.0
      %441 = vmatpush2.msra.mxu0 0.0
      %442 = vmatprep.mubr.f32.mxu0 0.0
      %443 = vmatmul.mubr.f32.gmra.mxu0 %v374
      %v444 = vpop.f32.mrf.mxu0
      %v445 = vadd.f32 %v366, %v444
      %v446 = vpop.f32.mrf.mxu0
      %447 = vmatprep.mubr.f32.mxu0 0.0
      %448 = vmatmul.mubr.f32.gmra.mxu0 %v376
      %v449 = vpop.f32.mrf.mxu0
      %v450 = vadd.f32 %v371, %v449
      %v451 = vpop.f32.mrf.mxu0
      %452 = vdwg.mxu0
      %s453 = scalar_lea.vmem %s1, 64
      %v454 = vld [vmem:[%s453] sm:$0xff]
      %v455 = vld [vmem:[%s453 + $0x8] sm:$0xff]
      %v456 = vld [vmem:[%s453 + $0x10] sm:$0xff]
      %v457 = vld [vmem:[%s453 + $0x18] sm:$0xff]
      %vm458 = vcmask 1045504
      %v459 = vrot.slane %v277, 2
      %v460 = vrot.slane %v278, 2
      %v461 = vsel %vm458, %v459, %v460
      %v462 = vsel %vm294, %v461, 0
      %v464 = vsel %vm294, %v460, 0
      %466 = vmatprep.subr.mxu0 0.0
      %467 = vmatpush1.msra.mxu0 0.0
      %468 = vmatprep.subr.mxu0 0.0
      %469 = vmatpush1.msra.mxu0 0.0
      %470 = vmatprep.subr.mxu0 0.0
      %471 = vmatpush1.msra.mxu0 0.0
      %472 = vmatprep.subr.mxu0 0.0
      %473 = vmatpush1.msra.mxu0 0.0
      %474 = vmatprep.subr.mxu0 0.0
      %475 = vmatpush1.msra.mxu0 0.0
      %476 = vmatprep.subr.mxu0 0.0
      %477 = vmatpush1.msra.mxu0 0.0
      %478 = vmatprep.subr.mxu0 0.0
      %479 = vmatpush1.msra.mxu0 0.0
      %480 = vmatprep.subr.mxu0 0.0
      %481 = vmatpush1.msra.mxu0 0.0
      %482 = vmatprep.subr.mxu0 0.0
      %483 = vmatpush1.msra.mxu0 0.0
      %484 = vmatprep.subr.mxu0 0.0
      %485 = vmatpush1.msra.mxu0 0.0
      %486 = vmatprep.subr.mxu0 0.0
      %487 = vmatpush1.msra.mxu0 0.0
      %488 = vmatprep.subr.mxu0 0.0
      %489 = vmatpush1.msra.mxu0 0.0
      %490 = vmatprep.subr.mxu0 0.0
      %491 = vmatpush1.msra.mxu0 %v457
      %492 = vmatprep.subr.mxu0 0.0
      %493 = vmatpush1.msra.mxu0 %v456
      %494 = vmatprep.subr.mxu0 0.0
      %495 = vmatpush1.msra.mxu0 %v455
      %496 = vmatprep.subr.mxu0 0.0
      %497 = vmatpush1.msra.mxu0 %v454
      %498 = vmatprep.subr.mxu0 0.0
      %499 = vmatpush2.msra.mxu0 0.0
      %500 = vmatprep.subr.mxu0 0.0
      %501 = vmatpush2.msra.mxu0 0.0
      %502 = vmatprep.subr.mxu0 0.0
      %503 = vmatpush2.msra.mxu0 0.0
      %504 = vmatprep.subr.mxu0 0.0
      %505 = vmatpush2.msra.mxu0 0.0
      %506 = vmatprep.subr.mxu0 0.0
      %507 = vmatpush2.msra.mxu0 0.0
      %508 = vmatprep.subr.mxu0 0.0
      %509 = vmatpush2.msra.mxu0 0.0
      %510 = vmatprep.subr.mxu0 0.0
      %511 = vmatpush2.msra.mxu0 0.0
      %512 = vmatprep.subr.mxu0 0.0
      %513 = vmatpush2.msra.mxu0 0.0
      %514 = vmatprep.subr.mxu0 0.0
      %515 = vmatpush2.msra.mxu0 0.0
      %516 = vmatprep.subr.mxu0 0.0
      %517 = vmatpush2.msra.mxu0 0.0
      %518 = vmatprep.subr.mxu0 0.0
      %519 = vmatpush2.msra.mxu0 0.0
      %520 = vmatprep.subr.mxu0 0.0
      %521 = vmatpush2.msra.mxu0 0.0
      %522 = vmatprep.subr.mxu0 0.0
      %523 = vmatpush2.msra.mxu0 0.0
      %524 = vmatprep.subr.mxu0 0.0
      %525 = vmatpush2.msra.mxu0 0.0
      %526 = vmatprep.subr.mxu0 0.0
      %527 = vmatpush2.msra.mxu0 0.0
      %528 = vmatprep.subr.mxu0 0.0
      %529 = vmatpush2.msra.mxu0 0.0
      %530 = vmatprep.mubr.f32.mxu0 0.0
      %531 = vmatmul.mubr.f32.gmra.mxu0 %v462
      %v532 = vpop.f32.mrf.mxu0
      %v533 = vadd.f32 0.0, %v532
      %v534 = vpop.f32.mrf.mxu0
      %535 = vmatprep.mubr.f32.mxu0 0.0
      %536 = vmatmul.mubr.f32.gmra.mxu0 %v464
      %v537 = vpop.f32.mrf.mxu0
      %v538 = vadd.f32 0.0, %v537
      %v539 = vpop.f32.mrf.mxu0
      %540 = vdwg.mxu0
      %v541 = vadd.f32 %v445, %v533
      %v542 = vadd.f32 %v450, %v538
      %v543 = vld [vmem:[%s2] sm:$0x1]
      %v545 = vlaneseq
      %v546 = vshrl.u32 %v545, 7
      %v547 = vsub.s32 0, %v546
      %v548 = vrot.slane %v543, %v547
      %v550 = vadd.f32 %v541, %v548
      %v551 = vadd.f32 %v542, %v548
      %v552 = vmax.f32 %v550, 0.0
      %v553 = vmax.f32 %v551, 0.0
      %v554 = vld [vmem:[%s3] sm:$0xff]
      %v555 = vld [vmem:[%s3 + $0x8] sm:$0xff]
      %s556 = scalar_lea.vmem %s3, 16
      %v557 = vld [vmem:[%s556] sm:$0xff]
      %v558 = vld [vmem:[%s556 + $0x8] sm:$0xff]
      %v560 = vrot.slane %v552, 1
      %vm561 = vcmask 130048
      %v562 = vsel %vm561, %v560, 0
      %564 = vmatprep.subr.mxu0 0.0
      %565 = vmatpush1.msra.mxu0 0.0
      %566 = vmatprep.subr.mxu0 0.0
      %567 = vmatpush1.msra.mxu0 0.0
      %568 = vmatprep.subr.mxu0 0.0
      %569 = vmatpush1.msra.mxu0 0.0
      %570 = vmatprep.subr.mxu0 0.0
      %571 = vmatpush1.msra.mxu0 0.0
      %572 = vmatprep.subr.mxu0 0.0
      %573 = vmatpush1.msra.mxu0 0.0
      %574 = vmatprep.subr.mxu0 0.0
      %575 = vmatpush1.msra.mxu0 0.0
      %576 = vmatprep.subr.mxu0 0.0
      %577 = vmatpush1.msra.mxu0 0.0
      %578 = vmatprep.subr.mxu0 0.0
      %579 = vmatpush1.msra.mxu0 0.0
      %580 = vmatprep.subr.mxu0 0.0
      %581 = vmatpush1.msra.mxu0 0.0
      %582 = vmatprep.subr.mxu0 0.0
      %583 = vmatpush1.msra.mxu0 0.0
      %584 = vmatprep.subr.mxu0 0.0
      %585 = vmatpush1.msra.mxu0 0.0
      %586 = vmatprep.subr.mxu0 0.0
      %587 = vmatpush1.msra.mxu0 0.0
      %588 = vmatprep.subr.mxu0 0.0
      %589 = vmatpush1.msra.mxu0 0.0
      %590 = vmatprep.subr.mxu0 0.0
      %591 = vmatpush1.msra.mxu0 0.0
      %592 = vmatprep.subr.mxu0 0.0
      %593 = vmatpush1.msra.mxu0 %v558
      %594 = vmatprep.subr.mxu0 0.0
      %595 = vmatpush1.msra.mxu0 %v557
      %596 = vmatprep.subr.mxu0 0.0
      %597 = vmatpush2.msra.mxu0 0.0
      %598 = vmatprep.subr.mxu0 0.0
      %599 = vmatpush2.msra.mxu0 0.0
      %600 = vmatprep.subr.mxu0 0.0
      %601 = vmatpush2.msra.mxu0 0.0
      %602 = vmatprep.subr.mxu0 0.0
      %603 = vmatpush2.msra.mxu0 0.0
      %604 = vmatprep.subr.mxu0 0.0
      %605 = vmatpush2.msra.mxu0 0.0
      %606 = vmatprep.subr.mxu0 0.0
      %607 = vmatpush2.msra.mxu0 0.0
      %608 = vmatprep.subr.mxu0 0.0
      %609 = vmatpush2.msra.mxu0 0.0
      %610 = vmatprep.subr.mxu0 0.0
      %611 = vmatpush2.msra.mxu0 0.0
      %612 = vmatprep.subr.mxu0 0.0
      %613 = vmatpush2.msra.mxu0 0.0
      %614 = vmatprep.subr.mxu0 0.0
      %615 = vmatpush2.msra.mxu0 0.0
      %616 = vmatprep.subr.mxu0 0.0
      %617 = vmatpush2.msra.mxu0 0.0
      %618 = vmatprep.subr.mxu0 0.0
      %619 = vmatpush2.msra.mxu0 0.0
      %620 = vmatprep.subr.mxu0 0.0
      %621 = vmatpush2.msra.mxu0 0.0
      %622 = vmatprep.subr.mxu0 0.0
      %623 = vmatpush2.msra.mxu0 0.0
      %624 = vmatprep.subr.mxu0 0.0
      %625 = vmatpush2.msra.mxu0 0.0
      %626 = vmatprep.subr.mxu0 0.0
      %627 = vmatpush2.msra.mxu0 0.0
      %628 = vmatprep.mubr.f32.mxu0 0.0
      %629 = vmatmul.mubr.f32.gmra.mxu0 %v562
      %v630 = vpop.f32.mrf.mxu0
      %v631 = vadd.f32 0.0, %v630
      %v632 = vpop.f32.mrf.mxu0
      %633 = vdwg.mxu0
      %v634 = vsel %vm561, %v552, 0
      %636 = vmatprep.subr.mxu0 0.0
      %637 = vmatpush1.msra.mxu0 0.0
      %638 = vmatprep.subr.mxu0 0.0
      %639 = vmatpush1.msra.mxu0 0.0
      %640 = vmatprep.subr.mxu0 0.0
      %641 = vmatpush1.msra.mxu0 0.0
      %642 = vmatprep.subr.mxu0 0.0
      %643 = vmatpush1.msra.mxu0 0.0
      %644 = vmatprep.subr.mxu0 0.0
      %645 = vmatpush1.msra.mxu0 0.0
      %646 = vmatprep.subr.mxu0 0.0
      %647 = vmatpush1.msra.mxu0 0.0
      %648 = vmatprep.subr.mxu0 0.0
      %649 = vmatpush1.msra.mxu0 0.0
      %650 = vmatprep.subr.mxu0 0.0
      %651 = vmatpush1.msra.mxu0 0.0
      %652 = vmatprep.subr.mxu0 0.0
      %653 = vmatpush1.msra.mxu0 0.0
      %654 = vmatprep.subr.mxu0 0.0
      %655 = vmatpush1.msra.mxu0 0.0
      %656 = vmatprep.subr.mxu0 0.0
      %657 = vmatpush1.msra.mxu0 0.0
      %658 = vmatprep.subr.mxu0 0.0
      %659 = vmatpush1.msra.mxu0 0.0
      %660 = vmatprep.subr.mxu0 0.0
      %661 = vmatpush1.msra.mxu0 0.0
      %662 = vmatprep.subr.mxu0 0.0
      %663 = vmatpush1.msra.mxu0 0.0
      %664 = vmatprep.subr.mxu0 0.0
      %665 = vmatpush1.msra.mxu0 %v555
      %666 = vmatprep.subr.mxu0 0.0
      %667 = vmatpush1.msra.mxu0 %v554
      %668 = vmatprep.subr.mxu0 0.0
      %669 = vmatpush2.msra.mxu0 0.0
      %670 = vmatprep.subr.mxu0 0.0
      %671 = vmatpush2.msra.mxu0 0.0
      %672 = vmatprep.subr.mxu0 0.0
      %673 = vmatpush2.msra.mxu0 0.0
      %674 = vmatprep.subr.mxu0 0.0
      %675 = vmatpush2.msra.mxu0 0.0
      %676 = vmatprep.subr.mxu0 0.0
      %677 = vmatpush2.msra.mxu0 0.0
      %678 = vmatprep.subr.mxu0 0.0
      %679 = vmatpush2.msra.mxu0 0.0
      %680 = vmatprep.subr.mxu0 0.0
      %681 = vmatpush2.msra.mxu0 0.0
      %682 = vmatprep.subr.mxu0 0.0
      %683 = vmatpush2.msra.mxu0 0.0
      %684 = vmatprep.subr.mxu0 0.0
      %685 = vmatpush2.msra.mxu0 0.0
      %686 = vmatprep.subr.mxu0 0.0
      %687 = vmatpush2.msra.mxu0 0.0
      %688 = vmatprep.subr.mxu0 0.0
      %689 = vmatpush2.msra.mxu0 0.0
      %690 = vmatprep.subr.mxu0 0.0
      %691 = vmatpush2.msra.mxu0 0.0
      %692 = vmatprep.subr.mxu0 0.0
      %693 = vmatpush2.msra.mxu0 0.0
      %694 = vmatprep.subr.mxu0 0.0
      %695 = vmatpush2.msra.mxu0 0.0
      %696 = vmatprep.subr.mxu0 0.0
      %697 = vmatpush2.msra.mxu0 0.0
      %698 = vmatprep.subr.mxu0 0.0
      %699 = vmatpush2.msra.mxu0 0.0
      %700 = vmatprep.mubr.f32.mxu0 0.0
      %701 = vmatmul.mubr.f32.gmra.mxu0 %v634
      %v702 = vpop.f32.mrf.mxu0
      %v703 = vadd.f32 %v631, %v702
      %v704 = vpop.f32.mrf.mxu0
      %705 = vdwg.mxu0
      %s706 = scalar_lea.vmem %s3, 32
      %v707 = vld [vmem:[%s706] sm:$0xff]
      %v708 = vld [vmem:[%s706 + $0x8] sm:$0xff]
      %v709 = vrot.slane %v552, 2
      %v710 = vsel %vm561, %v709, 0
      %712 = vmatprep.subr.mxu0 0.0
      %713 = vmatpush1.msra.mxu0 0.0
      %714 = vmatprep.subr.mxu0 0.0
      %715 = vmatpush1.msra.mxu0 0.0
      %716 = vmatprep.subr.mxu0 0.0
      %717 = vmatpush1.msra.mxu0 0.0
      %718 = vmatprep.subr.mxu0 0.0
      %719 = vmatpush1.msra.mxu0 0.0
      %720 = vmatprep.subr.mxu0 0.0
      %721 = vmatpush1.msra.mxu0 0.0
      %722 = vmatprep.subr.mxu0 0.0
      %723 = vmatpush1.msra.mxu0 0.0
      %724 = vmatprep.subr.mxu0 0.0
      %725 = vmatpush1.msra.mxu0 0.0
      %726 = vmatprep.subr.mxu0 0.0
      %727 = vmatpush1.msra.mxu0 0.0
      %728 = vmatprep.subr.mxu0 0.0
      %729 = vmatpush1.msra.mxu0 0.0
      %730 = vmatprep.subr.mxu0 0.0
      %731 = vmatpush1.msra.mxu0 0.0
      %732 = vmatprep.subr.mxu0 0.0
      %733 = vmatpush1.msra.mxu0 0.0
      %734 = vmatprep.subr.mxu0 0.0
      %735 = vmatpush1.msra.mxu0 0.0
      %736 = vmatprep.subr.mxu0 0.0
      %737 = vmatpush1.msra.mxu0 0.0
      %738 = vmatprep.subr.mxu0 0.0
      %739 = vmatpush1.msra.mxu0 0.0
      %740 = vmatprep.subr.mxu0 0.0
      %741 = vmatpush1.msra.mxu0 %v708
      %742 = vmatprep.subr.mxu0 0.0
      %743 = vmatpush1.msra.mxu0 %v707
      %744 = vmatprep.subr.mxu0 0.0
      %745 = vmatpush2.msra.mxu0 0.0
      %746 = vmatprep.subr.mxu0 0.0
      %747 = vmatpush2.msra.mxu0 0.0
      %748 = vmatprep.subr.mxu0 0.0
      %749 = vmatpush2.msra.mxu0 0.0
      %750 = vmatprep.subr.mxu0 0.0
      %751 = vmatpush2.msra.mxu0 0.0
      %752 = vmatprep.subr.mxu0 0.0
      %753 = vmatpush2.msra.mxu0 0.0
      %754 = vmatprep.subr.mxu0 0.0
      %755 = vmatpush2.msra.mxu0 0.0
      %756 = vmatprep.subr.mxu0 0.0
      %757 = vmatpush2.msra.mxu0 0.0
      %758 = vmatprep.subr.mxu0 0.0
      %759 = vmatpush2.msra.mxu0 0.0
      %760 = vmatprep.subr.mxu0 0.0
      %761 = vmatpush2.msra.mxu0 0.0
      %762 = vmatprep.subr.mxu0 0.0
      %763 = vmatpush2.msra.mxu0 0.0
      %764 = vmatprep.subr.mxu0 0.0
      %765 = vmatpush2.msra.mxu0 0.0
      %766 = vmatprep.subr.mxu0 0.0
      %767 = vmatpush2.msra.mxu0 0.0
      %768 = vmatprep.subr.mxu0 0.0
      %769 = vmatpush2.msra.mxu0 0.0
      %770 = vmatprep.subr.mxu0 0.0
      %771 = vmatpush2.msra.mxu0 0.0
      %772 = vmatprep.subr.mxu0 0.0
      %773 = vmatpush2.msra.mxu0 0.0
      %774 = vmatprep.subr.mxu0 0.0
      %775 = vmatpush2.msra.mxu0 0.0
      %776 = vmatprep.mubr.f32.mxu0 0.0
      %777 = vmatmul.mubr.f32.gmra.mxu0 %v710
      %v778 = vpop.f32.mrf.mxu0
      %v779 = vadd.f32 0.0, %v778
      %v780 = vpop.f32.mrf.mxu0
      %781 = vdwg.mxu0
      %v782 = vadd.f32 %v703, %v779
      %s783 = scalar_lea.vmem %s3, 48
      %v784 = vld [vmem:[%s783] sm:$0xff]
      %v785 = vld [vmem:[%s783 + $0x8] sm:$0xff]
      %v786 = vrot.slane %v552, 3
      %v787 = vsel %vm561, %v786, 0
      %789 = vmatprep.subr.mxu0 0.0
      %790 = vmatpush1.msra.mxu0 0.0
      %791 = vmatprep.subr.mxu0 0.0
      %792 = vmatpush1.msra.mxu0 0.0
      %793 = vmatprep.subr.mxu0 0.0
      %794 = vmatpush1.msra.mxu0 0.0
      %795 = vmatprep.subr.mxu0 0.0
      %796 = vmatpush1.msra.mxu0 0.0
      %797 = vmatprep.subr.mxu0 0.0
      %798 = vmatpush1.msra.mxu0 0.0
      %799 = vmatprep.subr.mxu0 0.0
      %800 = vmatpush1.msra.mxu0 0.0
      %801 = vmatprep.subr.mxu0 0.0
      %802 = vmatpush1.msra.mxu0 0.0
      %803 = vmatprep.subr.mxu0 0.0
      %804 = vmatpush1.msra.mxu0 0.0
      %805 = vmatprep.subr.mxu0 0.0
      %806 = vmatpush1.msra.mxu0 0.0
      %807 = vmatprep.subr.mxu0 0.0
      %808 = vmatpush1.msra.mxu0 0.0
      %809 = vmatprep.subr.mxu0 0.0
      %810 = vmatpush1.msra.mxu0 0.0
      %811 = vmatprep.subr.mxu0 0.0
      %812 = vmatpush1.msra.mxu0 0.0
      %813 = vmatprep.subr.mxu0 0.0
      %814 = vmatpush1.msra.mxu0 0.0
      %815 = vmatprep.subr.mxu0 0.0
      %816 = vmatpush1.msra.mxu0 0.0
      %817 = vmatprep.subr.mxu0 0.0
      %818 = vmatpush1.msra.mxu0 %v785
      %819 = vmatprep.subr.mxu0 0.0
      %820 = vmatpush1.msra.mxu0 %v784
      %821 = vmatprep.subr.mxu0 0.0
      %822 = vmatpush2.msra.mxu0 0.0
      %823 = vmatprep.subr.mxu0 0.0
      %824 = vmatpush2.msra.mxu0 0.0
      %825 = vmatprep.subr.mxu0 0.0
      %826 = vmatpush2.msra.mxu0 0.0
      %827 = vmatprep.subr.mxu0 0.0
      %828 = vmatpush2.msra.mxu0 0.0
      %829 = vmatprep.subr.mxu0 0.0
      %830 = vmatpush2.msra.mxu0 0.0
      %831 = vmatprep.subr.mxu0 0.0
      %832 = vmatpush2.msra.mxu0 0.0
      %833 = vmatprep.subr.mxu0 0.0
      %834 = vmatpush2.msra.mxu0 0.0
      %835 = vmatprep.subr.mxu0 0.0
      %836 = vmatpush2.msra.mxu0 0.0
      %837 = vmatprep.subr.mxu0 0.0
      %838 = vmatpush2.msra.mxu0 0.0
      %839 = vmatprep.subr.mxu0 0.0
      %840 = vmatpush2.msra.mxu0 0.0
      %841 = vmatprep.subr.mxu0 0.0
      %842 = vmatpush2.msra.mxu0 0.0
      %843 = vmatprep.subr.mxu0 0.0
      %844 = vmatpush2.msra.mxu0 0.0
      %845 = vmatprep.subr.mxu0 0.0
      %846 = vmatpush2.msra.mxu0 0.0
      %847 = vmatprep.subr.mxu0 0.0
      %848 = vmatpush2.msra.mxu0 0.0
      %849 = vmatprep.subr.mxu0 0.0
      %850 = vmatpush2.msra.mxu0 0.0
      %851 = vmatprep.subr.mxu0 0.0
      %852 = vmatpush2.msra.mxu0 0.0
      %853 = vmatprep.mubr.f32.mxu0 0.0
      %854 = vmatmul.mubr.f32.gmra.mxu0 %v787
      %v855 = vpop.f32.mrf.mxu0
      %v856 = vadd.f32 0.0, %v855
      %v857 = vpop.f32.mrf.mxu0
      %858 = vdwg.mxu0
      %v859 = vadd.f32 %v782, %v856
      %s860 = scalar_lea.vmem %s3, 64
      %v861 = vld [vmem:[%s860] sm:$0xff]
      %v862 = vld [vmem:[%s860 + $0x8] sm:$0xff]
      %vm864 = vcmask 1043456
      %v865 = vrot.slane %v552, 4
      %v866 = vrot.slane %v553, 4
      %v867 = vsel %vm864, %v865, %v866
      %v868 = vsel %vm561, %v867, 0
      %870 = vmatprep.subr.mxu0 0.0
      %871 = vmatpush1.msra.mxu0 0.0
      %872 = vmatprep.subr.mxu0 0.0
      %873 = vmatpush1.msra.mxu0 0.0
      %874 = vmatprep.subr.mxu0 0.0
      %875 = vmatpush1.msra.mxu0 0.0
      %876 = vmatprep.subr.mxu0 0.0
      %877 = vmatpush1.msra.mxu0 0.0
      %878 = vmatprep.subr.mxu0 0.0
      %879 = vmatpush1.msra.mxu0 0.0
      %880 = vmatprep.subr.mxu0 0.0
      %881 = vmatpush1.msra.mxu0 0.0
      %882 = vmatprep.subr.mxu0 0.0
      %883 = vmatpush1.msra.mxu0 0.0
      %884 = vmatprep.subr.mxu0 0.0
      %885 = vmatpush1.msra.mxu0 0.0
      %886 = vmatprep.subr.mxu0 0.0
      %887 = vmatpush1.msra.mxu0 0.0
      %888 = vmatprep.subr.mxu0 0.0
      %889 = vmatpush1.msra.mxu0 0.0
      %890 = vmatprep.subr.mxu0 0.0
      %891 = vmatpush1.msra.mxu0 0.0
      %892 = vmatprep.subr.mxu0 0.0
      %893 = vmatpush1.msra.mxu0 0.0
      %894 = vmatprep.subr.mxu0 0.0
      %895 = vmatpush1.msra.mxu0 0.0
      %896 = vmatprep.subr.mxu0 0.0
      %897 = vmatpush1.msra.mxu0 0.0
      %898 = vmatprep.subr.mxu0 0.0
      %899 = vmatpush1.msra.mxu0 %v862
      %900 = vmatprep.subr.mxu0 0.0
      %901 = vmatpush1.msra.mxu0 %v861
      %902 = vmatprep.subr.mxu0 0.0
      %903 = vmatpush2.msra.mxu0 0.0
      %904 = vmatprep.subr.mxu0 0.0
      %905 = vmatpush2.msra.mxu0 0.0
      %906 = vmatprep.subr.mxu0 0.0
      %907 = vmatpush2.msra.mxu0 0.0
      %908 = vmatprep.subr.mxu0 0.0
      %909 = vmatpush2.msra.mxu0 0.0
      %910 = vmatprep.subr.mxu0 0.0
      %911 = vmatpush2.msra.mxu0 0.0
      %912 = vmatprep.subr.mxu0 0.0
      %913 = vmatpush2.msra.mxu0 0.0
      %914 = vmatprep.subr.mxu0 0.0
      %915 = vmatpush2.msra.mxu0 0.0
      %916 = vmatprep.subr.mxu0 0.0
      %917 = vmatpush2.msra.mxu0 0.0
      %918 = vmatprep.subr.mxu0 0.0
      %919 = vmatpush2.msra.mxu0 0.0
      %920 = vmatprep.subr.mxu0 0.0
      %921 = vmatpush2.msra.mxu0 0.0
      %922 = vmatprep.subr.mxu0 0.0
      %923 = vmatpush2.msra.mxu0 0.0
      %924 = vmatprep.subr.mxu0 0.0
      %925 = vmatpush2.msra.mxu0 0.0
      %926 = vmatprep.subr.mxu0 0.0
      %927 = vmatpush2.msra.mxu0 0.0
      %928 = vmatprep.subr.mxu0 0.0
      %929 = vmatpush2.msra.mxu0 0.0
      %930 = vmatprep.subr.mxu0 0.0
      %931 = vmatpush2.msra.mxu0 0.0
      %932 = vmatprep.subr.mxu0 0.0
      %933 = vmatpush2.msra.mxu0 0.0
      %934 = vmatprep.mubr.f32.mxu0 0.0
      %935 = vmatmul.mubr.f32.gmra.mxu0 %v868
      %v936 = vpop.f32.mrf.mxu0
      %v937 = vadd.f32 0.0, %v936
      %v938 = vpop.f32.mrf.mxu0
      %939 = vdwg.mxu0
      %v940 = vadd.f32 %v859, %v937
      %s941 = scalar_lea.vmem %s3, 80
      %v942 = vld [vmem:[%s941] sm:$0xff]
      %v943 = vld [vmem:[%s941 + $0x8] sm:$0xff]
      %vm944 = vcmask 1042432
      %v945 = vrot.slane %v552, 5
      %v946 = vrot.slane %v553, 5
      %v947 = vsel %vm944, %v945, %v946
      %v948 = vsel %vm561, %v947, 0
      %950 = vmatprep.subr.mxu0 0.0
      %951 = vmatpush1.msra.mxu0 0.0
      %952 = vmatprep.subr.mxu0 0.0
      %953 = vmatpush1.msra.mxu0 0.0
      %954 = vmatprep.subr.mxu0 0.0
      %955 = vmatpush1.msra.mxu0 0.0
      %956 = vmatprep.subr.mxu0 0.0
      %957 = vmatpush1.msra.mxu0 0.0
      %958 = vmatprep.subr.mxu0 0.0
      %959 = vmatpush1.msra.mxu0 0.0
      %960 = vmatprep.subr.mxu0 0.0
      %961 = vmatpush1.msra.mxu0 0.0
      %962 = vmatprep.subr.mxu0 0.0
      %963 = vmatpush1.msra.mxu0 0.0
      %964 = vmatprep.subr.mxu0 0.0
      %965 = vmatpush1.msra.mxu0 0.0
      %966 = vmatprep.subr.mxu0 0.0
      %967 = vmatpush1.msra.mxu0 0.0
      %968 = vmatprep.subr.mxu0 0.0
      %969 = vmatpush1.msra.mxu0 0.0
      %970 = vmatprep.subr.mxu0 0.0
      %971 = vmatpush1.msra.mxu0 0.0
      %972 = vmatprep.subr.mxu0 0.0
      %973 = vmatpush1.msra.mxu0 0.0
      %974 = vmatprep.subr.mxu0 0.0
      %975 = vmatpush1.msra.mxu0 0.0
      %976 = vmatprep.subr.mxu0 0.0
      %977 = vmatpush1.msra.mxu0 0.0
      %978 = vmatprep.subr.mxu0 0.0
      %979 = vmatpush1.msra.mxu0 %v943
      %980 = vmatprep.subr.mxu0 0.0
      %981 = vmatpush1.msra.mxu0 %v942
      %982 = vmatprep.subr.mxu0 0.0
      %983 = vmatpush2.msra.mxu0 0.0
      %984 = vmatprep.subr.mxu0 0.0
      %985 = vmatpush2.msra.mxu0 0.0
      %986 = vmatprep.subr.mxu0 0.0
      %987 = vmatpush2.msra.mxu0 0.0
      %988 = vmatprep.subr.mxu0 0.0
      %989 = vmatpush2.msra.mxu0 0.0
      %990 = vmatprep.subr.mxu0 0.0
      %991 = vmatpush2.msra.mxu0 0.0
      %992 = vmatprep.subr.mxu0 0.0
      %993 = vmatpush2.msra.mxu0 0.0
      %994 = vmatprep.subr.mxu0 0.0
      %995 = vmatpush2.msra.mxu0 0.0
      %996 = vmatprep.subr.mxu0 0.0
      %997 = vmatpush2.msra.mxu0 0.0
      %998 = vmatprep.subr.mxu0 0.0
      %999 = vmatpush2.msra.mxu0 0.0
      %1000 = vmatprep.subr.mxu0 0.0
      %1001 = vmatpush2.msra.mxu0 0.0
      %1002 = vmatprep.subr.mxu0 0.0
      %1003 = vmatpush2.msra.mxu0 0.0
      %1004 = vmatprep.subr.mxu0 0.0
      %1005 = vmatpush2.msra.mxu0 0.0
      %1006 = vmatprep.subr.mxu0 0.0
      %1007 = vmatpush2.msra.mxu0 0.0
      %1008 = vmatprep.subr.mxu0 0.0
      %1009 = vmatpush2.msra.mxu0 0.0
      %1010 = vmatprep.subr.mxu0 0.0
      %1011 = vmatpush2.msra.mxu0 0.0
      %1012 = vmatprep.subr.mxu0 0.0
      %1013 = vmatpush2.msra.mxu0 0.0
      %1014 = vmatprep.mubr.f32.mxu0 0.0
      %1015 = vmatmul.mubr.f32.gmra.mxu0 %v948
      %v1016 = vpop.f32.mrf.mxu0
      %v1017 = vadd.f32 0.0, %v1016
      %v1018 = vpop.f32.mrf.mxu0
      %1019 = vdwg.mxu0
      %v1020 = vadd.f32 %v940, %v1017
      %1021 = vrot.lane.b32.xlu0 %v277, 112
      %v1022 = vpop.permute.xlu0 %1021
      %vm1024 = vcmask 130051
      %v1025 = vsel %vm1024, %v1022, 0.0
      %1026 = vadd.xlane.f32.xlu0 %v1025
      %v1027 = vpop.xlane.xlu0 %1026
      %vm1028 = vcmask 130052
      %v1029 = vsel %vm1028, %v277, 0.0
      %1030 = vadd.xlane.f32.xlu0 %v1029
      %v1031 = vpop.xlane.xlu0 %1030
      %vm1032 = vcmask 122880
      %v1033 = vsel %vm1032, %v278, 0.0
      %1034 = vadd.xlane.f32.xlu0 %v1033
      %v1035 = vpop.xlane.xlu0 %1034
      %v1038 = vrot.slane %v1031, 1
      %v1039 = vrot.slane %v1035, 1
      %v1040 = vsel %vm290, %v1038, %v1039
      %v1042 = vadd.f32 %v1027, %v1040
      %v1043 = vld [vmem:[%s4] sm:$0x1]
      %v1045 = vlaneseq
      %v1046 = vshrl.u32 %v1045, 7
      %v1047 = vsub.s32 0, %v1046
      %v1048 = vrot.slane %v1043, %v1047
      %v1050 = vadd.f32 %v1020, %v1048
      %1052 = vset.pattern.permute.xlu0 0
      %1053 = vperm.xlu0 %1052, %v1042
      %v1054 = vpop.permute.xlu0 %1053
      %v1055 = vrot.slane %v1054, 3
      %v1057 = vadd.f32 %v1050, %v1055
      %v1058 = vmax.f32 %v1057, 0.0
      %v1059 = vld [vmem:[%s5] sm:$0x1]
      %v1061 = vlaneseq
      %v1062 = vshrl.u32 %v1061, 7
      %v1063 = vsub.s32 0, %v1062
      %v1064 = vrot.slane %v1059, %v1063
      %v1066 = vmul.f32 %v1058, %v1064
      %v1067 = vld [vmem:[%s6] sm:$0x1]
      %v1069 = vlaneseq
      %v1070 = vshrl.u32 %v1069, 7
      %v1071 = vsub.s32 0, %v1070
      %v1072 = vrot.slane %v1067, %v1071
      %v1074 = vadd.f32 %v1066, %v1072
      %vm1075 = vcmask 126976
      %1076 = vst.msk [vmem:[%s276] sm:$0x1f] %vm1075, %v1074
      %p1077 = scmp.lt.s32.totalorder %s18, 1
      %s1078 = scalar_select %p1077, %s18, 1
      %s1079 = smul.addr %s1078, 8
      %s1080 = scalar_lea.vmem %s7, %s1079
      // Predicated region
      $region49: #{resnet_forward.5} parent=47 // pred_check
        %p1081 = pneg %p188
      $region50: #{resnet_forward.5} parent=47 // pred_check_branch
        %1083 = sbr.rel (%p1081) target = $region52
      $region51: #{resnet_forward.5} parent=47 // pred_region
        _
      $region52: #{resnet_forward.5} parent=47 // pred_fallthru
        _
    $region48: #{resnet_forward.5} parent=5 // pred_fallthru
      _
    %p1084 = scmp.le.s32.totalorder 2, %s13
    // Predicated region
    $region53: #{resnet_forward.5} parent=5 // pred_check
      %p1085 = pneg %p1084
    $region54: #{resnet_forward.5} parent=5 // pred_check_branch
      %1087 = sbr.rel (%p1085) target = $region56
    $region55: #{resnet_forward.5} parent=5 // pred_region
      %s1088 = ssub.s32 %s13, 2
      // Predicated region
      $region57: #{resnet_forward.5} parent=55 // pred_check
        %p1089 = pneg %p194
      $region58: #{resnet_forward.5} parent=55 // pred_check_branch
        %1091 = sbr.rel (%p1089) target = $region60
      $region59: #{resnet_forward.5} parent=55 // pred_region
        %p1092 = scmp.lt.s32.totalorder %s19, 1
        %s1093 = scalar_select %p1092, %s19, 1
        %s1094 = smul.addr %s1093, 8
        %s1095 = scalar_lea.vmem %s7, %s1094
      $region60: #{resnet_forward.5} parent=55 // pred_fallthru
        _
    $region56: #{resnet_forward.5} parent=5 // pred_fallthru
      _
  $region6: #{resnet_forward.5} parent=0 // loop_footer
    %s17 = sadd.s32 1, %s13
  $region7: #{resnet_forward.5} parent=0 // loop_footer_branch
    %12 = sbr.rel target = $region3
  $region8: #{resnet_forward.5} parent=0 // loop_exit
    _

// kernel: resnet_forward.7
$region0: #{resnet_forward.7}
  #allocation0 [shape = 'u32[]', space=smem, size = 0x4, offset = 0x4, fixed_abs, tag = 'smem constant byte address 0x4 - core index']
  #allocation1 [shape = 'u32[144,128]{1,0:T(1,128)}', space=vmem, size = 0x12000, scoped, tag = 'internal scratch']
  #allocation2 [shape = 'f32[1,1]{1,0:T(1,128)S(1)}', space=vmem, size = 0x200, scoped, tag = 'scoped memory for resnet_forward.7']
  %s0 = inlined_call_operand.vmem [shape: f32[2,96], index: 0, kind: input, shape index: {}]
  %s1 = inlined_call_operand.vmem [shape: f32[1,96], index: 1, kind: input, shape index: {}]
  %s2 = inlined_call_operand.vmem [shape: f32[1,96], index: 2, kind: input, shape index: {}]
  %s3 = inlined_call_operand.vmem [shape: f32[96,32], index: 3, kind: input, shape index: {}]
  %s4 = inlined_call_operand.vmem [shape: f32[1,32], index: 4, kind: input, shape index: {}]
  %s5 = inlined_call_operand.vmem [shape: f32[32,1], index: 5, kind: input, shape index: {}]
  %s6 = inlined_call_operand.<no memory space> [shape: f32[1,1], index: 6, kind: input, shape index: {}]
  %s7 = inlined_call_operand.vmem [shape: f32[2,1], index: 7, kind: output, shape index: {}]
  %s8 = sld [smem:[#allocation0]]
  $region38: #{resnet_forward.7} parent=0
    _
  %s10 = ssub.s32 1, %s8
  %s11 = scalar_select 0, %s10, %s8
  %v12 = vstv %s6
  %13 = vst [vmem:[#allocation2] sm:$0x1] %v12
  // Predicated region
  $region2: #{resnet_forward.7} parent=0 // pred_check
    _
  $region3: #{resnet_forward.7} parent=0 // pred_check_branch
    %15 = sbr.rel (0) target = $region5
  $region4: #{resnet_forward.7} parent=0 // pred_region
    _
  $region5: #{resnet_forward.7} parent=0 // pred_fallthru
    _
  // Predicated region
  $region6: #{resnet_forward.7} parent=0 // pred_check
    _
  $region7: #{resnet_forward.7} parent=0 // pred_check_branch
    %17 = sbr.rel (0) target = $region9
  $region8: #{resnet_forward.7} parent=0 // pred_region
    _
  $region9: #{resnet_forward.7} parent=0 // pred_fallthru
    _
  // Predicated region
  $region10: #{resnet_forward.7} parent=0 // pred_check
    _
  $region11: #{resnet_forward.7} parent=0 // pred_check_branch
    %19 = sbr.rel (0) target = $region13
  $region12: #{resnet_forward.7} parent=0 // pred_region
    _
  $region13: #{resnet_forward.7} parent=0 // pred_fallthru
    _
  // Predicated region
  $region14: #{resnet_forward.7} parent=0 // pred_check
    _
  $region15: #{resnet_forward.7} parent=0 // pred_check_branch
    %21 = sbr.rel (0) target = $region17
  $region16: #{resnet_forward.7} parent=0 // pred_region
    _
  $region17: #{resnet_forward.7} parent=0 // pred_fallthru
    _
  // Predicated region
  $region18: #{resnet_forward.7} parent=0 // pred_check
    _
  $region19: #{resnet_forward.7} parent=0 // pred_check_branch
    %23 = sbr.rel (0) target = $region21
  $region20: #{resnet_forward.7} parent=0 // pred_region
    _
  $region21: #{resnet_forward.7} parent=0 // pred_fallthru
    _
  // Predicated region
  $region22: #{resnet_forward.7} parent=0 // pred_check
    _
  $region23: #{resnet_forward.7} parent=0 // pred_check_branch
    %25 = sbr.rel (0) target = $region25
  $region24: #{resnet_forward.7} parent=0 // pred_region
    _
  $region25: #{resnet_forward.7} parent=0 // pred_fallthru
    _
  // Predicated region
  $region26: #{resnet_forward.7} parent=0 // pred_check
    _
  $region27: #{resnet_forward.7} parent=0 // pred_check_branch
    %27 = sbr.rel (0) target = $region29
  $region28: #{resnet_forward.7} parent=0 // pred_region
    _
  $region29: #{resnet_forward.7} parent=0 // pred_fallthru
    _
  %v28 = vld [vmem:[%s0] sm:$0x3]
  %vm29 = vcmask 779264
  %v30 = vsel %vm29, %v28, 0.0
  %31 = vadd.xlane.f32.xlu0 %v30
  %v32 = vpop.xlane.xlu0 %31
  %v33 = vrcp.pop 96.0
  %v34 = vmul.f32 %v32, %v33
  %v35 = vsub.f32 %v28, %v34
  %v36 = vmul.f32 %v35, %v35
  %v37 = vsel %vm29, %v36, 0.0
  %38 = vadd.xlane.f32.xlu0 %v37
  %v39 = vpop.xlane.xlu0 %38
  %v40 = vmul.f32 %v39, %v33
  %v41 = vadd.f32 %v40, 1e-05
  %v42 = vrsqrt.pop %v41
  %v43 = vmul.f32 %v35, %v42
  %v44 = vld [vmem:[%s1] sm:$0x1]
  %v46 = vlaneseq
  %v47 = vshrl.u32 %v46, 7
  %v48 = vsub.s32 0, %v47
  %v49 = vrot.slane %v44, %v48
  %v51 = vmul.f32 %v43, %v49
  %v52 = vld [vmem:[%s2] sm:$0x1]
  %v54 = vlaneseq
  %v55 = vshrl.u32 %v54, 7
  %v56 = vsub.s32 0, %v55
  %v57 = vrot.slane %v52, %v56
  %v59 = vadd.f32 %v51, %v57
  %v60 = vld [vmem:[%s3] sm:$0xff]
  %v61 = vld [vmem:[%s3 + $0x8] sm:$0xff]
  %v62 = vld [vmem:[%s3 + $0x10] sm:$0xff]
  %v63 = vld [vmem:[%s3 + $0x18] sm:$0xff]
  %v64 = vld [vmem:[%s3 + $0x20] sm:$0xff]
  %v65 = vld [vmem:[%s3 + $0x28] sm:$0xff]
  %v66 = vld [vmem:[%s3 + $0x30] sm:$0xff]
  %v67 = vld [vmem:[%s3 + $0x38] sm:$0xff]
  %v68 = vld [vmem:[%s3 + $0x40] sm:$0xff]
  %v69 = vld [vmem:[%s3 + $0x48] sm:$0xff]
  %v70 = vld [vmem:[%s3 + $0x50] sm:$0xff]
  %v71 = vld [vmem:[%s3 + $0x58] sm:$0xff]
  %v72 = vld [vmem:[%s4] sm:$0x1]
  %v74 = vlaneseq
  %v75 = vshrl.u32 %v74, 7
  %v76 = vsub.s32 0, %v75
  %v77 = vrot.slane %v72, %v76
  %vm79 = vcmask 785408
  %v81 = vsel %vm79, %v59, 0
  %83 = vmatprep.subr.mxu0 0.0
  %84 = vmatpush1.msra.mxu0 0.0
  %85 = vmatprep.subr.mxu0 0.0
  %86 = vmatpush1.msra.mxu0 0.0
  %87 = vmatprep.subr.mxu0 0.0
  %88 = vmatpush1.msra.mxu0 0.0
  %89 = vmatprep.subr.mxu0 0.0
  %90 = vmatpush1.msra.mxu0 0.0
  %91 = vmatprep.subr.mxu0 0.0
  %92 = vmatpush1.msra.mxu0 %v71
  %93 = vmatprep.subr.mxu0 0.0
  %94 = vmatpush1.msra.mxu0 %v70
  %95 = vmatprep.subr.mxu0 0.0
  %96 = vmatpush1.msra.mxu0 %v69
  %97 = vmatprep.subr.mxu0 0.0
  %98 = vmatpush1.msra.mxu0 %v68
  %99 = vmatprep.subr.mxu0 0.0
  %100 = vmatpush1.msra.mxu0 %v67
  %101 = vmatprep.subr.mxu0 0.0
  %102 = vmatpush1.msra.mxu0 %v66
  %103 = vmatprep.subr.mxu0 0.0
  %104 = vmatpush1.msra.mxu0 %v65
  %105 = vmatprep.subr.mxu0 0.0
  %106 = vmatpush1.msra.mxu0 %v64
  %107 = vmatprep.subr.mxu0 0.0
  %108 = vmatpush1.msra.mxu0 %v63
  %109 = vmatprep.subr.mxu0 0.0
  %110 = vmatpush1.msra.mxu0 %v62
  %111 = vmatprep.subr.mxu0 0.0
  %112 = vmatpush1.msra.mxu0 %v61
  %113 = vmatprep.subr.mxu0 0.0
  %114 = vmatpush1.msra.mxu0 %v60
  %115 = vmatprep.subr.mxu0 0.0
  %116 = vmatpush2.msra.mxu0 0.0
  %117 = vmatprep.subr.mxu0 0.0
  %118 = vmatpush2.msra.mxu0 0.0
  %119 = vmatprep.subr.mxu0 0.0
  %120 = vmatpush2.msra.mxu0 0.0
  %121 = vmatprep.subr.mxu0 0.0
  %122 = vmatpush2.msra.mxu0 0.0
  %123 = vmatprep.subr.mxu0 0.0
  %124 = vmatpush2.msra.mxu0 0.0
  %125 = vmatprep.subr.mxu0 0.0
  %126 = vmatpush2.msra.mxu0 0.0
  %127 = vmatprep.subr.mxu0 0.0
  %128 = vmatpush2.msra.mxu0 0.0
  %129 = vmatprep.subr.mxu0 0.0
  %130 = vmatpush2.msra.mxu0 0.0
  %131 = vmatprep.subr.mxu0 0.0
  %132 = vmatpush2.msra.mxu0 0.0
  %133 = vmatprep.subr.mxu0 0.0
  %134 = vmatpush2.msra.mxu0 0.0
  %135 = vmatprep.subr.mxu0 0.0
  %136 = vmatpush2.msra.mxu0 0.0
  %137 = vmatprep.subr.mxu0 0.0
  %138 = vmatpush2.msra.mxu0 0.0
  %139 = vmatprep.subr.mxu0 0.0
  %140 = vmatpush2.msra.mxu0 0.0
  %141 = vmatprep.subr.mxu0 0.0
  %142 = vmatpush2.msra.mxu0 0.0
  %143 = vmatprep.subr.mxu0 0.0
  %144 = vmatpush2.msra.mxu0 0.0
  %145 = vmatprep.subr.mxu0 0.0
  %146 = vmatpush2.msra.mxu0 0.0
  %147 = vmatprep.mubr.f32.mxu0 0.0
  %148 = vmatmul.mubr.f32.gmra.mxu0 %v81
  %v149 = vpop.f32.mrf.mxu0
  %v150 = vadd.f32 %v77, %v149
  %v151 = vpop.f32.mrf.mxu0
  %152 = vdwg.mxu0
  %v153 = vmax.f32 %v150, 0.0
  %v154 = vld [vmem:[%s5] sm:$0xff]
  %v155 = vld [vmem:[%s5 + $0x8] sm:$0xff]
  %v156 = vld [vmem:[%s5 + $0x10] sm:$0xff]
  %v157 = vld [vmem:[%s5 + $0x18] sm:$0xff]
  %v158 = vld [vmem:[#allocation2] sm:$0x1]
  %v160 = vlaneseq
  %v161 = vshrl.u32 %v160, 7
  %v162 = vsub.s32 0, %v161
  %v163 = vrot.slane %v158, %v162
  %vm165 = vcmask 261120
  %v167 = vsel %vm165, %v153, 0
  %169 = vmatprep.subr.mxu0 0.0
  %170 = vmatpush1.msra.mxu0 0.0
  %171 = vmatprep.subr.mxu0 0.0
  %172 = vmatpush1.msra.mxu0 0.0
  %173 = vmatprep.subr.mxu0 0.0
  %174 = vmatpush1.msra.mxu0 0.0
  %175 = vmatprep.subr.mxu0 0.0
  %176 = vmatpush1.msra.mxu0 0.0
  %177 = vmatprep.subr.mxu0 0.0
  %178 = vmatpush1.msra.mxu0 0.0
  %179 = vmatprep.subr.mxu0 0.0
  %180 = vmatpush1.msra.mxu0 0.0
  %181 = vmatprep.subr.mxu0 0.0
  %182 = vmatpush1.msra.mxu0 0.0
  %183 = vmatprep.subr.mxu0 0.0
  %184 = vmatpush1.msra.mxu0 0.0
  %185 = vmatprep.subr.mxu0 0.0
  %186 = vmatpush1.msra.mxu0 0.0
  %187 = vmatprep.subr.mxu0 0.0
  %188 = vmatpush1.msra.mxu0 0.0
  %189 = vmatprep.subr.mxu0 0.0
  %190 = vmatpush1.msra.mxu0 0.0
  %191 = vmatprep.subr.mxu0 0.0
  %192 = vmatpush1.msra.mxu0 0.0
  %193 = vmatprep.subr.mxu0 0.0
  %194 = vmatpush1.msra.mxu0 %v157
  %195 = vmatprep.subr.mxu0 0.0
  %196 = vmatpush1.msra.mxu0 %v156
  %197 = vmatprep.subr.mxu0 0.0
  %198 = vmatpush1.msra.mxu0 %v155
  %199 = vmatprep.subr.mxu0 0.0
  %200 = vmatpush1.msra.mxu0 %v154
  %201 = vmatprep.subr.mxu0 0.0
  %202 = vmatpush2.msra.mxu0 0.0
  %203 = vmatprep.subr.mxu0 0.0
  %204 = vmatpush2.msra.mxu0 0.0
  %205 = vmatprep.subr.mxu0 0.0
  %206 = vmatpush2.msra.mxu0 0.0
  %207 = vmatprep.subr.mxu0 0.0
  %208 = vmatpush2.msra.mxu0 0.0
  %209 = vmatprep.subr.mxu0 0.0
  %210 = vmatpush2.msra.mxu0 0.0
  %211 = vmatprep.subr.mxu0 0.0
  %212 = vmatpush2.msra.mxu0 0.0
  %213 = vmatprep.subr.mxu0 0.0
  %214 = vmatpush2.msra.mxu0 0.0
  %215 = vmatprep.subr.mxu0 0.0
  %216 = vmatpush2.msra.mxu0 0.0
  %217 = vmatprep.subr.mxu0 0.0
  %218 = vmatpush2.msra.mxu0 0.0
  %219 = vmatprep.subr.mxu0 0.0
  %220 = vmatpush2.msra.mxu0 0.0
  %221 = vmatprep.subr.mxu0 0.0
  %222 = vmatpush2.msra.mxu0 0.0
  %223 = vmatprep.subr.mxu0 0.0
  %224 = vmatpush2.msra.mxu0 0.0
  %225 = vmatprep.subr.mxu0 0.0
  %226 = vmatpush2.msra.mxu0 0.0
  %227 = vmatprep.subr.mxu0 0.0
  %228 = vmatpush2.msra.mxu0 0.0
  %229 = vmatprep.subr.mxu0 0.0
  %230 = vmatpush2.msra.mxu0 0.0
  %231 = vmatprep.subr.mxu0 0.0
  %232 = vmatpush2.msra.mxu0 0.0
  %233 = vmatprep.mubr.f32.mxu0 0.0
  %234 = vmatmul.mubr.f32.gmra.mxu0 %v167
  %v235 = vpop.f32.mrf.mxu0
  %v236 = vadd.f32 %v163, %v235
  %v237 = vpop.f32.mrf.mxu0
  %238 = vdwg.mxu0
  %v239 = vsub.f32 0.0, %v236
  %v240 = vmul.f32 %v239, 1.442695
  %v241 = vpow.pop %v240
  %v242 = vadd.f32 %v241, 1.0
  %v243 = vrcp.pop %v242
  %v244 = vmul.f32 1.0, %v243
  %vm245 = vcmask 1024
  %246 = vst.msk [vmem:[%s7] sm:$0x3] %vm245, %v244
  // Predicated region
  $region30: #{resnet_forward.7} parent=0 // pred_check
    _
  $region31: #{resnet_forward.7} parent=0 // pred_check_branch
    %248 = sbr.rel (0) target = $region33
  $region32: #{resnet_forward.7} parent=0 // pred_region
    _
  $region33: #{resnet_forward.7} parent=0 // pred_fallthru
    _
  // Predicated region
  $region34: #{resnet_forward.7} parent=0 // pred_check
    _
  $region35: #{resnet_forward.7} parent=0 // pred_check_branch
    %250 = sbr.rel (0) target = $region37
  $region36: #{resnet_forward.7} parent=0 // pred_region
    _
  $region37: #{resnet_forward.7} parent=0 // pred_fallthru
    _

</llo_original>
